<compile_context>
chip_gen: v6e
topology: v6e:2x2x1
jax: 0.10.0
libtpu: 0.0.40
codegen_flags: <defaults>
</compile_context>

<pallas_src>
import functools
import numpy as np

import jax
import jax.numpy as jnp
from jax import lax
from jax.experimental import pallas as pl
from jax.experimental.pallas import tpu as pltpu

_CONV_STRIDES = (1, 2, 2, 1)   # strides of the 4 Conv1d layers (kernel_size=3)


def _elu(x):
    # F.elu(alpha=1.0); overflow-safe, f32 math (v5e has no bf16 VPU/EUP).
    return jnp.where(x > 0, x, jnp.exp(jnp.minimum(x, 0.0)) - 1.0)


def _cdiv(a, b):
    return (a + b - 1) // b


def _round_up(a, m):
    return _cdiv(a, m) * m


def _tap_spacings(strides):
    # Tap spacing of layer i (in its input's dense index space) = product of
    # the strides of all earlier layers.  Computing every layer densely with
    # these spacings makes every tap a CONTIGUOUS slice of the previous
    # activation, and the torch output for layer i sits at dense anchor 0
    # multiples (final torch output == dense anchor 0).
    sp, cum = [], 1
    for s in strides:
        sp.append(cum)
        cum *= s
    return tuple(sp)


def _surname_kernel(tb, seq_len, apply_softmax,
                    x_ref, w1_ref, w234_ref, bconv_ref, wfc_ref, bfc_ref,
                    out_ref):
    """One batch tile of `tb` samples.

    Activation layout: 2-D (channels, dense_len * tb) — channels on sublanes,
    (time, batch) fused on lanes with lane = t*tb + b.  Each conv layer is
    3 accumulating bf16 MXU matmuls (one per tap) + f32 bias/ELU; each tap is
    a contiguous lane-group-aligned slice (tb is a multiple of 128).
    """
    spacings = _tap_spacings(_CONV_STRIDES)

    def dense_conv_elu(h_bf, d_in, spacing, w_tap, b_col):
        d_out = d_in - 2 * spacing            # dense output length
        n = d_out * tb
        acc = None
        for k in range(3):
            start = k * spacing * tb          # lane-group aligned
            tap = lax.slice_in_dim(h_bf, start, start + n, axis=1)
            r = jnp.dot(w_tap(k), tap, preferred_element_type=jnp.float32)
            acc = r if acc is None else acc + r
        return _elu(acc + b_col), d_out       # bias + ELU in f32

    h_bf = x_ref[0]                            # (c_in, seq_len*tb) bf16
    d = seq_len
    h, d = dense_conv_elu(h_bf, d, spacings[0],
                          lambda k: w1_ref[k], bconv_ref[0])
    for li in range(3):
        h, d = dense_conv_elu(h.astype(jnp.bfloat16), d, spacings[li + 1],
                              lambda k, li=li: w234_ref[li, k],
                              bconv_ref[li + 1])

    # torch `.squeeze(dim=2)`: the single torch output is dense anchor 0.
    feats = lax.slice_in_dim(h, 0, tb, axis=1)             # (c_mid, tb) f32
    logits = jnp.dot(wfc_ref[...], feats.astype(jnp.bfloat16),
                     preferred_element_type=jnp.float32) + bfc_ref[...]

    if apply_softmax:
        # Softmax over the (small) class/sublane axis.  approx reciprocal:
        # probabilities sum to 1 only to ~1e-3 — fine for classification.
        m = jnp.max(logits, axis=0, keepdims=True)
        e = jnp.exp(logits - m)
        logits = e * pl.reciprocal(jnp.sum(e, axis=0, keepdims=True),
                                   approx=True)

    out_ref[...] = logits                                   # (num_classes, tb)


def surname_classifier_forward(x_ncw, params, apply_softmax=False):
    """x_ncw: (B, initial_num_channels, seq_len) float32 (PyTorch NCW layout)."""
    (w1, b1), (w2, b2), (w3, b3), (w4, b4) = params["convs"]
    wfc, bfc = params["fc"]
    B, c_in, L = x_ncw.shape
    c_mid = w1.shape[0]
    num_classes = wfc.shape[0]

    # torch .squeeze(dim=2) requires the conv stack to collapse time to 1.
    l = L
    for s in _CONV_STRIDES:
        l = (l - 3) // s + 1
    assert l == 1, "seq_len must collapse to 1 after the conv stack"

    # Batch tile: lane-aligned (multiple of 128), capped at 512; for large B
    # keep >=2 tiles so v7x's second TensorCore gets work via 'parallel'.
    TB = min(512, max(128, _round_up(_cdiv(B, 2), 128)))
    nt = _cdiv(B, TB)
    Bp = nt * TB

    # Lane-dense input tiles (nt, c_in, L*TB) bf16, lane = t*TB + b.
    # (Small host-side relayout of a tiny input; buys fully lane-dense DMAs
    #  and contiguous lane-aligned in-kernel tap slices.)
    x_t = jnp.transpose(x_ncw, (1, 2, 0))                   # (c_in, L, B)
    if Bp != B:
        x_t = jnp.pad(x_t, ((0, 0), (0, 0), (0, Bp - B)))
    x_tiles = (x_t.reshape(c_in, L, nt, TB)
                  .transpose(2, 0, 1, 3)
                  .reshape(nt, c_in, L * TB)
                  .astype(jnp.bfloat16))

    def tapw(w):   # torch (O, I, K) -> per-tap (K, O, I), bf16 MXU operand
        return jnp.transpose(w, (2, 0, 1)).astype(jnp.bfloat16)

    w1k = tapw(w1)                                          # (3, c_mid, c_in)
    w234 = jnp.stack([tapw(w2), tapw(w3), tapw(w4)])        # (3, 3, c_mid, c_mid)
    bconv = jnp.stack([b1, b2, b3, b4]).astype(jnp.float32)[:, :, None]   # (4, c_mid, 1)
    wfc_b = wfc.astype(jnp.bfloat16)                        # (num_classes, c_mid)
    bfc_c = bfc.astype(jnp.float32)[:, None]                # (num_classes, 1)

    kernel = functools.partial(_surname_kernel, TB, L, apply_softmax)

    out = pl.pallas_call(
        kernel,
        out_shape=jax.ShapeDtypeStruct((num_classes, Bp), jnp.float32),
        grid=(nt,),
        in_specs=[
            pl.BlockSpec((1, c_in, L * TB), lambda i: (i, 0, 0)),
            pl.BlockSpec((3, c_mid, c_in), lambda i: (0, 0, 0)),
            pl.BlockSpec((3, 3, c_mid, c_mid), lambda i: (0, 0, 0, 0)),
            pl.BlockSpec((4, c_mid, 1), lambda i: (0, 0, 0)),
            pl.BlockSpec((num_classes, c_mid), lambda i: (0, 0)),
            pl.BlockSpec((num_classes, 1), lambda i: (0, 0)),
        ],
        out_specs=pl.BlockSpec((num_classes, TB), lambda i: (0, i)),
        compiler_params=pltpu.CompilerParams(
            dimension_semantics=("parallel",),
            vmem_limit_bytes=32 * 1024 * 1024),
    )(x_tiles, w1k, w234, bconv, wfc_b, bfc_c)

    return jnp.transpose(out)[:B, :]                        # (B, num_classes)


# ---------------- pure-JAX reference (semantics check) ----------------

def _ref_forward(x_ncw, params, apply_softmax=False):
    h = x_ncw
    for (w, b), s in zip(params["convs"], _CONV_STRIDES):
        h = lax.conv_general_dilated(
            h, w, window_strides=(s,), padding="VALID",
            dimension_numbers=("NCH", "OIH", "NCH"),
            precision=lax.Precision.HIGHEST)
        h = h + b[None, :, None]
        h = _elu(h)
    feats = h[:, :, 0]                                      # squeeze(dim=2)
    wfc, bfc = params["fc"]
    out = jnp.dot(feats, wfc.T, precision=lax.Precision.HIGHEST) + bfc
    if apply_softmax:
        out = jax.nn.softmax(out, axis=1)
    return out


def _init_params(key, initial_num_channels, num_classes, num_channels):
    ks = jax.random.split(key, 10)
    def conv(kw, kb, cin, cout):
        w = 0.1 * jax.random.normal(kw, (cout, cin, 3), jnp.float32)    # (O, I, K)
        b = 0.1 * jax.random.normal(kb, (cout,), jnp.float32)
        return w, b
    convs = (
        conv(ks[0], ks[1], initial_num_channels, num_channels),
        conv(ks[2], ks[3], num_channels, num_channels),
        conv(ks[4], ks[5], num_channels, num_channels),
        conv(ks[6], ks[7], num_channels, num_channels),
    )
    wfc = 0.1 * jax.random.normal(ks[8], (num_classes, num_channels), jnp.float32)
    bfc = 0.1 * jax.random.normal(ks[9], (num_classes,), jnp.float32)
    return {"convs": convs, "fc": (wfc, bfc)}


if __name__ == "__main__":
    # seq_len=17 collapses to 1 after the conv stack (17 -> 15 -> 7 -> 3 -> 1),
    # matching torch .squeeze(dim=2).
    B, CIN, L = 2, 8, 17
    NUM_CHANNELS, NUM_CLASSES = 32, 16

    key = jax.random.PRNGKey(0)
    k_x, k_p = jax.random.split(key)
    x = jax.random.normal(k_x, (B, CIN, L), jnp.float32)    # NCW
    params = _init_params(k_p, CIN, NUM_CLASSES, NUM_CHANNELS)

    out = surname_classifier_forward(x, params, apply_softmax=False)
    out = jax.block_until_ready(out)
    ref = _ref_forward(x, params, apply_softmax=False)
    assert out.shape == (B, NUM_CLASSES)
    # bf16 MXU operands (4 chained matmuls) => looser tolerance than pure-f32.
    np.testing.assert_allclose(np.asarray(out), np.asarray(ref),
                               atol=2e-2, rtol=2e-2)

    out_sm = surname_classifier_forward(x, params, apply_softmax=True)
    out_sm = jax.block_until_ready(out_sm)
    ref_sm = _ref_forward(x, params, apply_softmax=True)
    np.testing.assert_allclose(np.asarray(out_sm), np.asarray(ref_sm),
                               atol=2e-2, rtol=2e-2)

    print("KERNEL_OK")
</pallas_src>

<mosaic_0001>
module attributes {stable_mosaic.version = 11 : i64} {
  func.func @_surname_kernel(%arg0: i32, %arg1: memref<1x8x2176xbf16, #tpu.memory_space<vmem>>, %arg2: memref<3x32x8xbf16, #tpu.memory_space<vmem>>, %arg3: memref<3x3x32x32xbf16, #tpu.memory_space<vmem>>, %arg4: memref<4x32x1xf32, #tpu.memory_space<vmem>>, %arg5: memref<16x32xbf16, #tpu.memory_space<vmem>>, %arg6: memref<16x1xf32, #tpu.memory_space<vmem>>, %arg7: memref<16x128xf32, #tpu.memory_space<vmem>>) attributes {dimension_semantics = [#tpu.dimension_semantics<parallel>], iteration_bounds = array<i64: 1>, scalar_prefetch = 0 : i64, scratch_operands = 0 : i64, tpu.core_type = #tpu.core_type<tc>, window_params = [{transform_indices = @transform_0, window_bounds = array<i64: 1, 8, 2176>}, {pipeline_mode = #tpu.pipeline_mode<synchronous>, transform_indices = @transform_1, window_bounds = array<i64: 3, 32, 8>}, {pipeline_mode = #tpu.pipeline_mode<synchronous>, transform_indices = @transform_2, window_bounds = array<i64: 3, 3, 32, 32>}, {pipeline_mode = #tpu.pipeline_mode<synchronous>, transform_indices = @transform_3, window_bounds = array<i64: 4, 32, 1>}, {pipeline_mode = #tpu.pipeline_mode<synchronous>, transform_indices = @transform_4, window_bounds = array<i64: 16, 32>}, {pipeline_mode = #tpu.pipeline_mode<synchronous>, transform_indices = @transform_5, window_bounds = array<i64: 16, 1>}, {transform_indices = @transform_6, window_bounds = array<i64: 16, 128>}]} {
    %c0 = arith.constant 0 : index
    %c0_0 = arith.constant 0 : index
    %c0_1 = arith.constant 0 : index
    %0 = vector.load %arg1[%c0, %c0_0, %c0_1] : memref<1x8x2176xbf16, #tpu.memory_space<vmem>>, vector<1x8x2176xbf16>
    %1 = vector.shape_cast %0 : vector<1x8x2176xbf16> to vector<8x2176xbf16>
    %c0_2 = arith.constant 0 : index
    %c0_3 = arith.constant 0 : index
    %c0_4 = arith.constant 0 : index
    %2 = vector.load %arg4[%c0_2, %c0_3, %c0_4] : memref<4x32x1xf32, #tpu.memory_space<vmem>>, vector<1x32x1xf32>
    %3 = vector.shape_cast %2 : vector<1x32x1xf32> to vector<32x1xf32>
    %4 = vector.extract_strided_slice %1 {offsets = [0, 0], sizes = [8, 1920], strides = [1, 1]} : vector<8x2176xbf16> to vector<8x1920xbf16>
    %c0_5 = arith.constant 0 : index
    %c0_6 = arith.constant 0 : index
    %c0_7 = arith.constant 0 : index
    %5 = vector.load %arg2[%c0_5, %c0_6, %c0_7] : memref<3x32x8xbf16, #tpu.memory_space<vmem>>, vector<1x32x8xbf16>
    %6 = vector.shape_cast %5 : vector<1x32x8xbf16> to vector<32x8xbf16>
    %cst = arith.constant dense<0.000000e+00> : vector<32x1920xf32>
    %7 = tpu.matmul %6, %4, %cst {dimension_numbers = #tpu.dot_dimension_numbers<[1], [0], [0], [1], [0, 0, 1, 1], [], []>} : vector<32x8xbf16>, vector<8x1920xbf16>, vector<32x1920xf32> -> vector<32x1920xf32>
    %8 = vector.extract_strided_slice %1 {offsets = [0, 128], sizes = [8, 1920], strides = [1, 1]} : vector<8x2176xbf16> to vector<8x1920xbf16>
    %c1 = arith.constant 1 : index
    %c0_8 = arith.constant 0 : index
    %c0_9 = arith.constant 0 : index
    %9 = vector.load %arg2[%c1, %c0_8, %c0_9] : memref<3x32x8xbf16, #tpu.memory_space<vmem>>, vector<1x32x8xbf16>
    %10 = vector.shape_cast %9 : vector<1x32x8xbf16> to vector<32x8xbf16>
    %cst_10 = arith.constant dense<0.000000e+00> : vector<32x1920xf32>
    %11 = tpu.matmul %10, %8, %cst_10 {dimension_numbers = #tpu.dot_dimension_numbers<[1], [0], [0], [1], [0, 0, 1, 1], [], []>} : vector<32x8xbf16>, vector<8x1920xbf16>, vector<32x1920xf32> -> vector<32x1920xf32>
    %12 = arith.addf %7, %11 : vector<32x1920xf32>
    %13 = vector.extract_strided_slice %1 {offsets = [0, 256], sizes = [8, 1920], strides = [1, 1]} : vector<8x2176xbf16> to vector<8x1920xbf16>
    %c2 = arith.constant 2 : index
    %c0_11 = arith.constant 0 : index
    %c0_12 = arith.constant 0 : index
    %14 = vector.load %arg2[%c2, %c0_11, %c0_12] : memref<3x32x8xbf16, #tpu.memory_space<vmem>>, vector<1x32x8xbf16>
    %15 = vector.shape_cast %14 : vector<1x32x8xbf16> to vector<32x8xbf16>
    %cst_13 = arith.constant dense<0.000000e+00> : vector<32x1920xf32>
    %16 = tpu.matmul %15, %13, %cst_13 {dimension_numbers = #tpu.dot_dimension_numbers<[1], [0], [0], [1], [0, 0, 1, 1], [], []>} : vector<32x8xbf16>, vector<8x1920xbf16>, vector<32x1920xf32> -> vector<32x1920xf32>
    %17 = arith.addf %12, %16 : vector<32x1920xf32>
    %18 = vector.broadcast %3 : vector<32x1xf32> to vector<32x1920xf32>
    %19 = arith.addf %17, %18 : vector<32x1920xf32>
    %cst_14 = arith.constant 0.000000e+00 : f32
    %20 = vector.broadcast %cst_14 : f32 to vector<32x1920xf32>
    %21 = arith.cmpf ogt, %19, %20 : vector<32x1920xf32>
    %cst_15 = arith.constant 0.000000e+00 : f32
    %22 = vector.broadcast %cst_15 : f32 to vector<32x1920xf32>
    %23 = arith.minimumf %19, %22 : vector<32x1920xf32>
    %24 = math.exp %23 : vector<32x1920xf32>
    %cst_16 = arith.constant 1.000000e+00 : f32
    %25 = vector.broadcast %cst_16 : f32 to vector<32x1920xf32>
    %26 = arith.subf %24, %25 : vector<32x1920xf32>
    %27 = arith.select %21, %19, %26 : vector<32x1920xi1>, vector<32x1920xf32>
    %28 = arith.truncf %27 : vector<32x1920xf32> to vector<32x1920xbf16>
    %c1_17 = arith.constant 1 : index
    %c0_18 = arith.constant 0 : index
    %c0_19 = arith.constant 0 : index
    %29 = vector.load %arg4[%c1_17, %c0_18, %c0_19] : memref<4x32x1xf32, #tpu.memory_space<vmem>>, vector<1x32x1xf32>
    %30 = vector.shape_cast %29 : vector<1x32x1xf32> to vector<32x1xf32>
    %31 = vector.extract_strided_slice %28 {offsets = [0, 0], sizes = [32, 1664], strides = [1, 1]} : vector<32x1920xbf16> to vector<32x1664xbf16>
    %c0_20 = arith.constant 0 : index
    %c0_21 = arith.constant 0 : index
    %c0_22 = arith.constant 0 : index
    %c0_23 = arith.constant 0 : index
    %32 = vector.load %arg3[%c0_20, %c0_21, %c0_22, %c0_23] : memref<3x3x32x32xbf16, #tpu.memory_space<vmem>>, vector<1x1x32x32xbf16>
    %33 = vector.shape_cast %32 : vector<1x1x32x32xbf16> to vector<32x32xbf16>
    %cst_24 = arith.constant dense<0.000000e+00> : vector<32x1664xf32>
    %34 = tpu.matmul %33, %31, %cst_24 {dimension_numbers = #tpu.dot_dimension_numbers<[1], [0], [0], [1], [0, 0, 1, 1], [], []>} : vector<32x32xbf16>, vector<32x1664xbf16>, vector<32x1664xf32> -> vector<32x1664xf32>
    %35 = vector.extract_strided_slice %28 {offsets = [0, 128], sizes = [32, 1664], strides = [1, 1]} : vector<32x1920xbf16> to vector<32x1664xbf16>
    %c0_25 = arith.constant 0 : index
    %c1_26 = arith.constant 1 : index
    %c0_27 = arith.constant 0 : index
    %c0_28 = arith.constant 0 : index
    %36 = vector.load %arg3[%c0_25, %c1_26, %c0_27, %c0_28] : memref<3x3x32x32xbf16, #tpu.memory_space<vmem>>, vector<1x1x32x32xbf16>
    %37 = vector.shape_cast %36 : vector<1x1x32x32xbf16> to vector<32x32xbf16>
    %cst_29 = arith.constant dense<0.000000e+00> : vector<32x1664xf32>
    %38 = tpu.matmul %37, %35, %cst_29 {dimension_numbers = #tpu.dot_dimension_numbers<[1], [0], [0], [1], [0, 0, 1, 1], [], []>} : vector<32x32xbf16>, vector<32x1664xbf16>, vector<32x1664xf32> -> vector<32x1664xf32>
    %39 = arith.addf %34, %38 : vector<32x1664xf32>
    %40 = vector.extract_strided_slice %28 {offsets = [0, 256], sizes = [32, 1664], strides = [1, 1]} : vector<32x1920xbf16> to vector<32x1664xbf16>
    %c0_30 = arith.constant 0 : index
    %c2_31 = arith.constant 2 : index
    %c0_32 = arith.constant 0 : index
    %c0_33 = arith.constant 0 : index
    %41 = vector.load %arg3[%c0_30, %c2_31, %c0_32, %c0_33] : memref<3x3x32x32xbf16, #tpu.memory_space<vmem>>, vector<1x1x32x32xbf16>
    %42 = vector.shape_cast %41 : vector<1x1x32x32xbf16> to vector<32x32xbf16>
    %cst_34 = arith.constant dense<0.000000e+00> : vector<32x1664xf32>
    %43 = tpu.matmul %42, %40, %cst_34 {dimension_numbers = #tpu.dot_dimension_numbers<[1], [0], [0], [1], [0, 0, 1, 1], [], []>} : vector<32x32xbf16>, vector<32x1664xbf16>, vector<32x1664xf32> -> vector<32x1664xf32>
    %44 = arith.addf %39, %43 : vector<32x1664xf32>
    %45 = vector.broadcast %30 : vector<32x1xf32> to vector<32x1664xf32>
    %46 = arith.addf %44, %45 : vector<32x1664xf32>
    %cst_35 = arith.constant 0.000000e+00 : f32
    %47 = vector.broadcast %cst_35 : f32 to vector<32x1664xf32>
    %48 = arith.cmpf ogt, %46, %47 : vector<32x1664xf32>
    %cst_36 = arith.constant 0.000000e+00 : f32
    %49 = vector.broadcast %cst_36 : f32 to vector<32x1664xf32>
    %50 = arith.minimumf %46, %49 : vector<32x1664xf32>
    %51 = math.exp %50 : vector<32x1664xf32>
    %cst_37 = arith.constant 1.000000e+00 : f32
    %52 = vector.broadcast %cst_37 : f32 to vector<32x1664xf32>
    %53 = arith.subf %51, %52 : vector<32x1664xf32>
    %54 = arith.select %48, %46, %53 : vector<32x1664xi1>, vector<32x1664xf32>
    %55 = arith.truncf %54 : vector<32x1664xf32> to vector<32x1664xbf16>
    %c2_38 = arith.constant 2 : index
    %c0_39 = arith.constant 0 : index
    %c0_40 = arith.constant 0 : index
    %56 = vector.load %arg4[%c2_38, %c0_39, %c0_40] : memref<4x32x1xf32, #tpu.memory_space<vmem>>, vector<1x32x1xf32>
    %57 = vector.shape_cast %56 : vector<1x32x1xf32> to vector<32x1xf32>
    %58 = vector.extract_strided_slice %55 {offsets = [0, 0], sizes = [32, 1152], strides = [1, 1]} : vector<32x1664xbf16> to vector<32x1152xbf16>
    %c1_41 = arith.constant 1 : index
    %c0_42 = arith.constant 0 : index
    %c0_43 = arith.constant 0 : index
    %c0_44 = arith.constant 0 : index
    %59 = vector.load %arg3[%c1_41, %c0_42, %c0_43, %c0_44] : memref<3x3x32x32xbf16, #tpu.memory_space<vmem>>, vector<1x1x32x32xbf16>
    %60 = vector.shape_cast %59 : vector<1x1x32x32xbf16> to vector<32x32xbf16>
    %cst_45 = arith.constant dense<0.000000e+00> : vector<32x1152xf32>
    %61 = tpu.matmul %60, %58, %cst_45 {dimension_numbers = #tpu.dot_dimension_numbers<[1], [0], [0], [1], [0, 0, 1, 1], [], []>} : vector<32x32xbf16>, vector<32x1152xbf16>, vector<32x1152xf32> -> vector<32x1152xf32>
    %62 = vector.extract_strided_slice %55 {offsets = [0, 256], sizes = [32, 1152], strides = [1, 1]} : vector<32x1664xbf16> to vector<32x1152xbf16>
    %c1_46 = arith.constant 1 : index
    %c1_47 = arith.constant 1 : index
    %c0_48 = arith.constant 0 : index
    %c0_49 = arith.constant 0 : index
    %63 = vector.load %arg3[%c1_46, %c1_47, %c0_48, %c0_49] : memref<3x3x32x32xbf16, #tpu.memory_space<vmem>>, vector<1x1x32x32xbf16>
    %64 = vector.shape_cast %63 : vector<1x1x32x32xbf16> to vector<32x32xbf16>
    %cst_50 = arith.constant dense<0.000000e+00> : vector<32x1152xf32>
    %65 = tpu.matmul %64, %62, %cst_50 {dimension_numbers = #tpu.dot_dimension_numbers<[1], [0], [0], [1], [0, 0, 1, 1], [], []>} : vector<32x32xbf16>, vector<32x1152xbf16>, vector<32x1152xf32> -> vector<32x1152xf32>
    %66 = arith.addf %61, %65 : vector<32x1152xf32>
    %67 = vector.extract_strided_slice %55 {offsets = [0, 512], sizes = [32, 1152], strides = [1, 1]} : vector<32x1664xbf16> to vector<32x1152xbf16>
    %c1_51 = arith.constant 1 : index
    %c2_52 = arith.constant 2 : index
    %c0_53 = arith.constant 0 : index
    %c0_54 = arith.constant 0 : index
    %68 = vector.load %arg3[%c1_51, %c2_52, %c0_53, %c0_54] : memref<3x3x32x32xbf16, #tpu.memory_space<vmem>>, vector<1x1x32x32xbf16>
    %69 = vector.shape_cast %68 : vector<1x1x32x32xbf16> to vector<32x32xbf16>
    %cst_55 = arith.constant dense<0.000000e+00> : vector<32x1152xf32>
    %70 = tpu.matmul %69, %67, %cst_55 {dimension_numbers = #tpu.dot_dimension_numbers<[1], [0], [0], [1], [0, 0, 1, 1], [], []>} : vector<32x32xbf16>, vector<32x1152xbf16>, vector<32x1152xf32> -> vector<32x1152xf32>
    %71 = arith.addf %66, %70 : vector<32x1152xf32>
    %72 = vector.broadcast %57 : vector<32x1xf32> to vector<32x1152xf32>
    %73 = arith.addf %71, %72 : vector<32x1152xf32>
    %cst_56 = arith.constant 0.000000e+00 : f32
    %74 = vector.broadcast %cst_56 : f32 to vector<32x1152xf32>
    %75 = arith.cmpf ogt, %73, %74 : vector<32x1152xf32>
    %cst_57 = arith.constant 0.000000e+00 : f32
    %76 = vector.broadcast %cst_57 : f32 to vector<32x1152xf32>
    %77 = arith.minimumf %73, %76 : vector<32x1152xf32>
    %78 = math.exp %77 : vector<32x1152xf32>
    %cst_58 = arith.constant 1.000000e+00 : f32
    %79 = vector.broadcast %cst_58 : f32 to vector<32x1152xf32>
    %80 = arith.subf %78, %79 : vector<32x1152xf32>
    %81 = arith.select %75, %73, %80 : vector<32x1152xi1>, vector<32x1152xf32>
    %82 = arith.truncf %81 : vector<32x1152xf32> to vector<32x1152xbf16>
    %c3 = arith.constant 3 : index
    %c0_59 = arith.constant 0 : index
    %c0_60 = arith.constant 0 : index
    %83 = vector.load %arg4[%c3, %c0_59, %c0_60] : memref<4x32x1xf32, #tpu.memory_space<vmem>>, vector<1x32x1xf32>
    %84 = vector.shape_cast %83 : vector<1x32x1xf32> to vector<32x1xf32>
    %85 = vector.extract_strided_slice %82 {offsets = [0, 0], sizes = [32, 128], strides = [1, 1]} : vector<32x1152xbf16> to vector<32x128xbf16>
    %c2_61 = arith.constant 2 : index
    %c0_62 = arith.constant 0 : index
    %c0_63 = arith.constant 0 : index
    %c0_64 = arith.constant 0 : index
    %86 = vector.load %arg3[%c2_61, %c0_62, %c0_63, %c0_64] : memref<3x3x32x32xbf16, #tpu.memory_space<vmem>>, vector<1x1x32x32xbf16>
    %87 = vector.shape_cast %86 : vector<1x1x32x32xbf16> to vector<32x32xbf16>
    %cst_65 = arith.constant dense<0.000000e+00> : vector<32x128xf32>
    %88 = tpu.matmul %87, %85, %cst_65 {dimension_numbers = #tpu.dot_dimension_numbers<[1], [0], [0], [1], [0, 0, 1, 1], [], []>} : vector<32x32xbf16>, vector<32x128xbf16>, vector<32x128xf32> -> vector<32x128xf32>
    %89 = vector.extract_strided_slice %82 {offsets = [0, 512], sizes = [32, 128], strides = [1, 1]} : vector<32x1152xbf16> to vector<32x128xbf16>
    %c2_66 = arith.constant 2 : index
    %c1_67 = arith.constant 1 : index
    %c0_68 = arith.constant 0 : index
    %c0_69 = arith.constant 0 : index
    %90 = vector.load %arg3[%c2_66, %c1_67, %c0_68, %c0_69] : memref<3x3x32x32xbf16, #tpu.memory_space<vmem>>, vector<1x1x32x32xbf16>
    %91 = vector.shape_cast %90 : vector<1x1x32x32xbf16> to vector<32x32xbf16>
    %cst_70 = arith.constant dense<0.000000e+00> : vector<32x128xf32>
    %92 = tpu.matmul %91, %89, %cst_70 {dimension_numbers = #tpu.dot_dimension_numbers<[1], [0], [0], [1], [0, 0, 1, 1], [], []>} : vector<32x32xbf16>, vector<32x128xbf16>, vector<32x128xf32> -> vector<32x128xf32>
    %93 = arith.addf %88, %92 : vector<32x128xf32>
    %94 = vector.extract_strided_slice %82 {offsets = [0, 1024], sizes = [32, 128], strides = [1, 1]} : vector<32x1152xbf16> to vector<32x128xbf16>
    %c2_71 = arith.constant 2 : index
    %c2_72 = arith.constant 2 : index
    %c0_73 = arith.constant 0 : index
    %c0_74 = arith.constant 0 : index
    %95 = vector.load %arg3[%c2_71, %c2_72, %c0_73, %c0_74] : memref<3x3x32x32xbf16, #tpu.memory_space<vmem>>, vector<1x1x32x32xbf16>
    %96 = vector.shape_cast %95 : vector<1x1x32x32xbf16> to vector<32x32xbf16>
    %cst_75 = arith.constant dense<0.000000e+00> : vector<32x128xf32>
    %97 = tpu.matmul %96, %94, %cst_75 {dimension_numbers = #tpu.dot_dimension_numbers<[1], [0], [0], [1], [0, 0, 1, 1], [], []>} : vector<32x32xbf16>, vector<32x128xbf16>, vector<32x128xf32> -> vector<32x128xf32>
    %98 = arith.addf %93, %97 : vector<32x128xf32>
    %99 = vector.broadcast %84 : vector<32x1xf32> to vector<32x128xf32>
    %100 = arith.addf %98, %99 : vector<32x128xf32>
    %cst_76 = arith.constant 0.000000e+00 : f32
    %101 = vector.broadcast %cst_76 : f32 to vector<32x128xf32>
    %102 = arith.cmpf ogt, %100, %101 : vector<32x128xf32>
    %cst_77 = arith.constant 0.000000e+00 : f32
    %103 = vector.broadcast %cst_77 : f32 to vector<32x128xf32>
    %104 = arith.minimumf %100, %103 : vector<32x128xf32>
    %105 = math.exp %104 : vector<32x128xf32>
    %cst_78 = arith.constant 1.000000e+00 : f32
    %106 = vector.broadcast %cst_78 : f32 to vector<32x128xf32>
    %107 = arith.subf %105, %106 : vector<32x128xf32>
    %108 = arith.select %102, %100, %107 : vector<32x128xi1>, vector<32x128xf32>
    %109 = vector.extract_strided_slice %108 {offsets = [0, 0], sizes = [32, 128], strides = [1, 1]} : vector<32x128xf32> to vector<32x128xf32>
    %c0_79 = arith.constant 0 : index
    %c0_80 = arith.constant 0 : index
    %110 = vector.load %arg5[%c0_79, %c0_80] : memref<16x32xbf16, #tpu.memory_space<vmem>>, vector<16x32xbf16>
    %111 = arith.truncf %109 : vector<32x128xf32> to vector<32x128xbf16>
    %cst_81 = arith.constant dense<0.000000e+00> : vector<16x128xf32>
    %112 = tpu.matmul %110, %111, %cst_81 {dimension_numbers = #tpu.dot_dimension_numbers<[1], [0], [0], [1], [0, 0, 1, 1], [], []>} : vector<16x32xbf16>, vector<32x128xbf16>, vector<16x128xf32> -> vector<16x128xf32>
    %c0_82 = arith.constant 0 : index
    %c0_83 = arith.constant 0 : index
    %113 = vector.load %arg6[%c0_82, %c0_83] : memref<16x1xf32, #tpu.memory_space<vmem>>, vector<16x1xf32>
    %114 = vector.broadcast %113 : vector<16x1xf32> to vector<16x128xf32>
    %115 = arith.addf %112, %114 : vector<16x128xf32>
    %c0_84 = arith.constant 0 : index
    %c0_85 = arith.constant 0 : index
    %116 = vector.load %arg7[%c0_84, %c0_85] : memref<16x128xf32, #tpu.memory_space<vmem>>, vector<16x128xf32>
    tpu.vector_store %arg7[%c0_84, %c0_85], %115 {strides = array<i32>} : memref<16x128xf32, #tpu.memory_space<vmem>>, vector<16x128xf32>,
    return
  }
  func.func @transform_0(%arg0: i32) -> (i32, i32, i32) {
    %c0_i32 = arith.constant 0 : i32
    %c0_i32_0 = arith.constant 0 : i32
    %c0_i32_1 = arith.constant 0 : i32
    return %arg0, %c0_i32, %c0_i32_0 : i32, i32, i32
  }
  func.func @transform_1(%arg0: i32) -> (i32, i32, i32) {
    %c0_i32 = arith.constant 0 : i32
    %c0_i32_0 = arith.constant 0 : i32
    %c0_i32_1 = arith.constant 0 : i32
    %c0_i32_2 = arith.constant 0 : i32
    return %c0_i32, %c0_i32_0, %c0_i32_1 : i32, i32, i32
  }
  func.func @transform_2(%arg0: i32) -> (i32, i32, i32, i32) {
    %c0_i32 = arith.constant 0 : i32
    %c0_i32_0 = arith.constant 0 : i32
    %c0_i32_1 = arith.constant 0 : i32
    %c0_i32_2 = arith.constant 0 : i32
    %c0_i32_3 = arith.constant 0 : i32
    return %c0_i32, %c0_i32_0, %c0_i32_1, %c0_i32_2 : i32, i32, i32, i32
  }
  func.func @transform_3(%arg0: i32) -> (i32, i32, i32) {
    %c0_i32 = arith.constant 0 : i32
    %c0_i32_0 = arith.constant 0 : i32
    %c0_i32_1 = arith.constant 0 : i32
    %c0_i32_2 = arith.constant 0 : i32
    return %c0_i32, %c0_i32_0, %c0_i32_1 : i32, i32, i32
  }
  func.func @transform_4(%arg0: i32) -> (i32, i32) {
    %c0_i32 = arith.constant 0 : i32
    %c0_i32_0 = arith.constant 0 : i32
    %c0_i32_1 = arith.constant 0 : i32
    return %c0_i32, %c0_i32_0 : i32, i32
  }
  func.func @transform_5(%arg0: i32) -> (i32, i32) {
    %c0_i32 = arith.constant 0 : i32
    %c0_i32_0 = arith.constant 0 : i32
    %c0_i32_1 = arith.constant 0 : i32
    return %c0_i32, %c0_i32_0 : i32, i32
  }
  func.func @transform_6(%arg0: i32) -> (i32, i32) {
    %c0_i32 = arith.constant 0 : i32
    %c0_i32_0 = arith.constant 0 : i32
    return %c0_i32, %arg0 : i32, i32
  }
}

</mosaic_0001>

<llo_original>
// kernel: tpu_custom_call.1
$region0: #{tpu_custom_call.1}
  #allocation0 [shape = 'u32[]', space=smem, size = 0x4, offset = 0x4, fixed_abs, tag = 'smem constant byte address 0x4 - core index']
  #allocation1 [shape = 'u32[144,128]{1,0:T(1,128)}', space=vmem, size = 0x12000, scoped, tag = 'internal scratch']
  %s0 = inlined_call_operand.vmem [shape: bf16[1,8,2176], index: 0, kind: input, shape index: {}]
  %s1 = inlined_call_operand.vmem [shape: bf16[3,32,8], index: 1, kind: input, shape index: {}]
  %s2 = inlined_call_operand.vmem [shape: bf16[3,3,32,32], index: 2, kind: input, shape index: {}]
  %s3 = inlined_call_operand.vmem [shape: f32[4,32,1], index: 3, kind: input, shape index: {}]
  %s4 = inlined_call_operand.hbm [shape: bf16[16,32], index: 4, kind: input, shape index: {}]
  %s5 = inlined_call_operand.vmem [shape: f32[16,1], index: 5, kind: input, shape index: {}]
  %s6 = inlined_call_operand.hbm [shape: f32[16,128], index: 6, kind: output, shape index: {}]
  %s7 = sld [smem:[#allocation0]]
  $region38: #{tpu_custom_call.1} parent=0
    _
  %s9 = ssub.s32 1, %s7
  %s10 = scalar_select 0, %s9, %s7
  $region1: #{tpu_custom_call.1} parent=0
    #allocation2 [shape = 'u8[4096]{0}', space=vmem, size = 0x1000, scoped, tag = 'input window, operand 4, single buffered']
    #allocation3 [shape = 's32[1]{0}', space=sflag, size = 0x4, scoped, tag = 'scoped memory for tpu_custom_call.1']
    #allocation4 [shape = 's32[1]{0}', space=sflag, size = 0x4, scoped, tag = 'scoped memory for tpu_custom_call.1']
    #allocation5 [shape = 'u8[8192]{0}', space=vmem, size = 0x2000, scoped, tag = 'output window, operand 0, single buffered']
    %11 = vsyncpa [#allocation3], 0
    %12 = vsyncpa [#allocation4], 0
    // Predicated region
    $region2: #{tpu_custom_call.1} parent=1 // pred_check
      _
    $region3: #{tpu_custom_call.1} parent=1 // pred_check_branch
      %14 = sbr.rel (0) target = $region5
    $region4: #{tpu_custom_call.1} parent=1 // pred_region
      _
    $region5: #{tpu_custom_call.1} parent=1 // pred_fallthru
      _
    // Predicated region
    $region6: #{tpu_custom_call.1} parent=1 // pred_check
      _
    $region7: #{tpu_custom_call.1} parent=1 // pred_check_branch
      %16 = sbr.rel (0) target = $region9
    $region8: #{tpu_custom_call.1} parent=1 // pred_region
      _
    $region9: #{tpu_custom_call.1} parent=1 // pred_fallthru
      _
    // Predicated region
    $region10: #{tpu_custom_call.1} parent=1 // pred_check
      _
    $region11: #{tpu_custom_call.1} parent=1 // pred_check_branch
      %18 = sbr.rel (0) target = $region13
    $region12: #{tpu_custom_call.1} parent=1 // pred_region
      _
    $region13: #{tpu_custom_call.1} parent=1 // pred_fallthru
      _
    // Predicated region
    $region14: #{tpu_custom_call.1} parent=1 // pred_check
      _
    $region15: #{tpu_custom_call.1} parent=1 // pred_check_branch
      %20 = sbr.rel (0) target = $region17
    $region16: #{tpu_custom_call.1} parent=1 // pred_region
      _
    $region17: #{tpu_custom_call.1} parent=1 // pred_fallthru
      _
    // Predicated region
    $region18: #{tpu_custom_call.1} parent=1 // pred_check
      _
    $region19: #{tpu_custom_call.1} parent=1 // pred_check_branch
      %22 = sbr.rel (0) target = $region21
    $region20: #{tpu_custom_call.1} parent=1 // pred_region
      %s24 = ssub.s32 128, 128
      %25 = vsyncadd [#allocation3], %s24
      %s26 = sshll.u32 [#allocation2], 4
      %s27 = int_to_ptr.vmem [resolvable:$true] %s26
      %32 = dma.hbm_to_vmem [thread:$0]  %s4, 128, %s27, [#allocation3], 64, 64, 4
    $region21: #{tpu_custom_call.1} parent=1 // pred_fallthru
      _
    // Predicated region
    $region22: #{tpu_custom_call.1} parent=1 // pred_check
      _
    $region23: #{tpu_custom_call.1} parent=1 // pred_check_branch
      %34 = sbr.rel (0) target = $region25
    $region24: #{tpu_custom_call.1} parent=1 // pred_region
      _
    $region25: #{tpu_custom_call.1} parent=1 // pred_fallthru
      _
    // Predicated region
    $region26: #{tpu_custom_call.1} parent=1 // pred_check
      _
    $region27: #{tpu_custom_call.1} parent=1 // pred_check_branch
      %36 = sbr.rel (0) target = $region29
    $region28: #{tpu_custom_call.1} parent=1 // pred_region
      %37 = dma.done [#allocation3], 128
    $region29: #{tpu_custom_call.1} parent=1 // pred_fallthru
      _
    %v39 = vld [vmem:[%s0] sm:$0xff]
    %v40 = vld [vmem:[%s0 + $0x8] sm:$0xff]
    %v41 = vld [vmem:[%s0 + $0x10] sm:$0xff]
    %v42 = vld [vmem:[%s0 + $0x18] sm:$0xff]
    %v43 = vld [vmem:[%s0 + $0x20] sm:$0xff]
    %v44 = vld [vmem:[%s0 + $0x28] sm:$0xff]
    %v45 = vld [vmem:[%s0 + $0x30] sm:$0xff]
    %v46 = vld [vmem:[%s0 + $0x38] sm:$0xff]
    %v47 = vld [vmem:[%s0 + $0x40] sm:$0xf]
    %v48 = vld [vmem:[%s3] sm:$0xff]
    %v49 = vld [vmem:[%s3 + $0x8] sm:$0xff]
    %v50 = vld [vmem:[%s3 + $0x10] sm:$0xff]
    %v51 = vld [vmem:[%s3 + $0x18] sm:$0xff]
    %v52 = vld [vmem:[%s1] sm:$0xf]
    %v53 = vld [vmem:[%s1 + $0x4] sm:$0xf]
    %v54 = vld [vmem:[%s1 + $0x8] sm:$0xf]
    %v55 = vld [vmem:[%s1 + $0xc] sm:$0xf]
    %s56 = scalar_lea.vmem %s1, 16
    %v57 = vld [vmem:[%s56] sm:$0xf]
    %v58 = vld [vmem:[%s56 + $0x4] sm:$0xf]
    %v59 = vld [vmem:[%s56 + $0x8] sm:$0xf]
    %v60 = vld [vmem:[%s56 + $0xc] sm:$0xf]
    %v65 = vunpack.c.l.b16 %v57
    %v66 = vunpack.c.l.b16 %v58
    %v67 = vunpack.c.l.b16 %v59
    %v68 = vunpack.c.l.b16 %v60
    %v69 = vpack.c.b16 %v66, %v65
    %v70 = vpack.c.b16 %v68, %v67
    %v79 = vunpack.c.h.b16 %v39
    %v80 = vunpack.c.l.b16 %v40
    %v81 = vunpack.c.h.b16 %v40
    %v82 = vunpack.c.l.b16 %v41
    %v83 = vunpack.c.h.b16 %v41
    %v84 = vunpack.c.l.b16 %v42
    %v85 = vunpack.c.h.b16 %v42
    %v86 = vunpack.c.l.b16 %v43
    %v87 = vunpack.c.h.b16 %v43
    %v88 = vunpack.c.l.b16 %v44
    %v89 = vunpack.c.h.b16 %v44
    %v90 = vunpack.c.l.b16 %v45
    %v91 = vunpack.c.h.b16 %v45
    %v92 = vunpack.c.l.b16 %v46
    %v93 = vunpack.c.h.b16 %v46
    %v94 = vpack.c.b16 %v79, %v79
    %v95 = vpack.c.b16 %v80, %v80
    %v96 = vpack.c.b16 %v81, %v81
    %v97 = vpack.c.b16 %v82, %v82
    %v98 = vpack.c.b16 %v83, %v83
    %v99 = vpack.c.b16 %v84, %v84
    %v100 = vpack.c.b16 %v85, %v85
    %v101 = vpack.c.b16 %v86, %v86
    %v102 = vpack.c.b16 %v87, %v87
    %v103 = vpack.c.b16 %v88, %v88
    %v104 = vpack.c.b16 %v89, %v89
    %v105 = vpack.c.b16 %v90, %v90
    %v106 = vpack.c.b16 %v91, %v91
    %v107 = vpack.c.b16 %v92, %v92
    %v108 = vpack.c.b16 %v93, %v93
    %vm109 = vcmask 64512
    %v111 = vsel %vm109, %v69, 0
    %v114 = vsel %vm109, %v70, 0
    %vm116 = vcmask 1043456
    %v118 = vsel %vm116, %v94, 0
    %v121 = vsel %vm116, %v95, 0
    %v124 = vsel %vm116, %v96, 0
    %v127 = vsel %vm116, %v97, 0
    %v130 = vsel %vm116, %v98, 0
    %v133 = vsel %vm116, %v99, 0
    %v136 = vsel %vm116, %v100, 0
    %v139 = vsel %vm116, %v101, 0
    %v142 = vsel %vm116, %v102, 0
    %v145 = vsel %vm116, %v103, 0
    %v148 = vsel %vm116, %v104, 0
    %v151 = vsel %vm116, %v105, 0
    %v154 = vsel %vm116, %v106, 0
    %v157 = vsel %vm116, %v107, 0
    %v160 = vsel %vm116, %v108, 0
    %162 = vmatprep.subr.bf16.mxu0 0
    %163 = vmatpush1.bf16.msra.mxu0 0
    %164 = vmatprep.subr.bf16.mxu0 0
    %165 = vmatpush1.bf16.msra.mxu0 0
    %166 = vmatprep.subr.bf16.mxu0 0
    %167 = vmatpush1.bf16.msra.mxu0 0
    %168 = vmatprep.subr.bf16.mxu0 0
    %169 = vmatpush1.bf16.msra.mxu0 0
    %170 = vmatprep.subr.bf16.mxu0 0
    %171 = vmatpush1.bf16.msra.mxu0 0
    %172 = vmatprep.subr.bf16.mxu0 0
    %173 = vmatpush1.bf16.msra.mxu0 0
    %174 = vmatprep.subr.bf16.mxu0 0
    %175 = vmatpush1.bf16.msra.mxu0 0
    %176 = vmatprep.subr.bf16.mxu0 %v121
    %177 = vmatpush1.bf16.msra.mxu0 %v118
    %178 = vmatprep.subr.bf16.mxu0 0
    %179 = vmatpush2.bf16.msra.mxu0 0
    %180 = vmatprep.subr.bf16.mxu0 0
    %181 = vmatpush2.bf16.msra.mxu0 0
    %182 = vmatprep.subr.bf16.mxu0 0
    %183 = vmatpush2.bf16.msra.mxu0 0
    %184 = vmatprep.subr.bf16.mxu0 0
    %185 = vmatpush2.bf16.msra.mxu0 0
    %186 = vmatprep.subr.bf16.mxu0 0
    %187 = vmatpush2.bf16.msra.mxu0 0
    %188 = vmatprep.subr.bf16.mxu0 0
    %189 = vmatpush2.bf16.msra.mxu0 0
    %190 = vmatprep.subr.bf16.mxu0 0
    %191 = vmatpush2.bf16.msra.mxu0 0
    %192 = vmatprep.subr.bf16.mxu0 0
    %193 = vmatpush2.bf16.msra.mxu0 0
    %194 = vmatprep.mubr.bf16.mxu0 0
    %195 = vmatmul.mubr.bf16.gmra.mxu0 %v111
    %v196 = vpop.f32.mrf.mxu0
    %v197 = vadd.f32 0.0, %v196
    %v198 = vpop.f32.mrf.mxu0
    %v199 = vadd.f32 0.0, %v198
    %v200 = vpop.f32.mrf.mxu0
    %v201 = vadd.f32 0.0, %v200
    %v202 = vpop.f32.mrf.mxu0
    %v203 = vadd.f32 0.0, %v202
    %204 = vmatprep.mubr.bf16.mxu0 0
    %205 = vmatmul.mubr.bf16.gmra.mxu0 %v114
    %v206 = vpop.f32.mrf.mxu0
    %v207 = vadd.f32 0.0, %v206
    %v208 = vpop.f32.mrf.mxu0
    %v209 = vadd.f32 0.0, %v208
    %v210 = vpop.f32.mrf.mxu0
    %v211 = vadd.f32 0.0, %v210
    %v212 = vpop.f32.mrf.mxu0
    %v213 = vadd.f32 0.0, %v212
    %214 = vdwg.mxu0
    %215 = vmatprep.subr.bf16.mxu0 0
    %216 = vmatpush1.bf16.msra.mxu0 0
    %217 = vmatprep.subr.bf16.mxu0 0
    %218 = vmatpush1.bf16.msra.mxu0 0
    %219 = vmatprep.subr.bf16.mxu0 0
    %220 = vmatpush1.bf16.msra.mxu0 0
    %221 = vmatprep.subr.bf16.mxu0 0
    %222 = vmatpush1.bf16.msra.mxu0 0
    %223 = vmatprep.subr.bf16.mxu0 0
    %224 = vmatpush1.bf16.msra.mxu0 0
    %225 = vmatprep.subr.bf16.mxu0 0
    %226 = vmatpush1.bf16.msra.mxu0 0
    %227 = vmatprep.subr.bf16.mxu0 0
    %228 = vmatpush1.bf16.msra.mxu0 0
    %229 = vmatprep.subr.bf16.mxu0 %v127
    %230 = vmatpush1.bf16.msra.mxu0 %v124
    %231 = vmatprep.subr.bf16.mxu0 0
    %232 = vmatpush2.bf16.msra.mxu0 0
    %233 = vmatprep.subr.bf16.mxu0 0
    %234 = vmatpush2.bf16.msra.mxu0 0
    %235 = vmatprep.subr.bf16.mxu0 0
    %236 = vmatpush2.bf16.msra.mxu0 0
    %237 = vmatprep.subr.bf16.mxu0 0
    %238 = vmatpush2.bf16.msra.mxu0 0
    %239 = vmatprep.subr.bf16.mxu0 0
    %240 = vmatpush2.bf16.msra.mxu0 0
    %241 = vmatprep.subr.bf16.mxu0 0
    %242 = vmatpush2.bf16.msra.mxu0 0
    %243 = vmatprep.subr.bf16.mxu0 0
    %244 = vmatpush2.bf16.msra.mxu0 0
    %245 = vmatprep.subr.bf16.mxu0 0
    %246 = vmatpush2.bf16.msra.mxu0 0
    %247 = vmatprep.mubr.bf16.mxu0 0
    %248 = vmatmul.mubr.bf16.gmra.mxu0 %v111
    %v249 = vpop.f32.mrf.mxu0
    %v250 = vadd.f32 0.0, %v249
    %v251 = vpop.f32.mrf.mxu0
    %v252 = vadd.f32 0.0, %v251
    %v253 = vpop.f32.mrf.mxu0
    %v254 = vadd.f32 0.0, %v253
    %v255 = vpop.f32.mrf.mxu0
    %v256 = vadd.f32 0.0, %v255
    %257 = vmatprep.mubr.bf16.mxu0 0
    %258 = vmatmul.mubr.bf16.gmra.mxu0 %v114
    %v259 = vpop.f32.mrf.mxu0
    %v260 = vadd.f32 0.0, %v259
    %v261 = vpop.f32.mrf.mxu0
    %v262 = vadd.f32 0.0, %v261
    %v263 = vpop.f32.mrf.mxu0
    %v264 = vadd.f32 0.0, %v263
    %v265 = vpop.f32.mrf.mxu0
    %v266 = vadd.f32 0.0, %v265
    %267 = vdwg.mxu0
    %268 = vmatprep.subr.bf16.mxu0 0
    %269 = vmatpush1.bf16.msra.mxu0 0
    %270 = vmatprep.subr.bf16.mxu0 0
    %271 = vmatpush1.bf16.msra.mxu0 0
    %272 = vmatprep.subr.bf16.mxu0 0
    %273 = vmatpush1.bf16.msra.mxu0 0
    %274 = vmatprep.subr.bf16.mxu0 0
    %275 = vmatpush1.bf16.msra.mxu0 0
    %276 = vmatprep.subr.bf16.mxu0 0
    %277 = vmatpush1.bf16.msra.mxu0 0
    %278 = vmatprep.subr.bf16.mxu0 0
    %279 = vmatpush1.bf16.msra.mxu0 0
    %280 = vmatprep.subr.bf16.mxu0 0
    %281 = vmatpush1.bf16.msra.mxu0 0
    %282 = vmatprep.subr.bf16.mxu0 %v133
    %283 = vmatpush1.bf16.msra.mxu0 %v130
    %284 = vmatprep.subr.bf16.mxu0 0
    %285 = vmatpush2.bf16.msra.mxu0 0
    %286 = vmatprep.subr.bf16.mxu0 0
    %287 = vmatpush2.bf16.msra.mxu0 0
    %288 = vmatprep.subr.bf16.mxu0 0
    %289 = vmatpush2.bf16.msra.mxu0 0
    %290 = vmatprep.subr.bf16.mxu0 0
    %291 = vmatpush2.bf16.msra.mxu0 0
    %292 = vmatprep.subr.bf16.mxu0 0
    %293 = vmatpush2.bf16.msra.mxu0 0
    %294 = vmatprep.subr.bf16.mxu0 0
    %295 = vmatpush2.bf16.msra.mxu0 0
    %296 = vmatprep.subr.bf16.mxu0 0
    %297 = vmatpush2.bf16.msra.mxu0 0
    %298 = vmatprep.subr.bf16.mxu0 0
    %299 = vmatpush2.bf16.msra.mxu0 0
    %300 = vmatprep.mubr.bf16.mxu0 0
    %301 = vmatmul.mubr.bf16.gmra.mxu0 %v111
    %v302 = vpop.f32.mrf.mxu0
    %v303 = vadd.f32 0.0, %v302
    %v304 = vpop.f32.mrf.mxu0
    %v305 = vadd.f32 0.0, %v304
    %v306 = vpop.f32.mrf.mxu0
    %v307 = vadd.f32 0.0, %v306
    %v308 = vpop.f32.mrf.mxu0
    %v309 = vadd.f32 0.0, %v308
    %310 = vmatprep.mubr.bf16.mxu0 0
    %311 = vmatmul.mubr.bf16.gmra.mxu0 %v114
    %v312 = vpop.f32.mrf.mxu0
    %v313 = vadd.f32 0.0, %v312
    %v314 = vpop.f32.mrf.mxu0
    %v315 = vadd.f32 0.0, %v314
    %v316 = vpop.f32.mrf.mxu0
    %v317 = vadd.f32 0.0, %v316
    %v318 = vpop.f32.mrf.mxu0
    %v319 = vadd.f32 0.0, %v318
    %320 = vdwg.mxu0
    %321 = vmatprep.subr.bf16.mxu0 0
    %322 = vmatpush1.bf16.msra.mxu0 0
    %323 = vmatprep.subr.bf16.mxu0 0
    %324 = vmatpush1.bf16.msra.mxu0 0
    %325 = vmatprep.subr.bf16.mxu0 0
    %326 = vmatpush1.bf16.msra.mxu0 0
    %327 = vmatprep.subr.bf16.mxu0 0
    %328 = vmatpush1.bf16.msra.mxu0 0
    %329 = vmatprep.subr.bf16.mxu0 0
    %330 = vmatpush1.bf16.msra.mxu0 0
    %331 = vmatprep.subr.bf16.mxu0 0
    %332 = vmatpush1.bf16.msra.mxu0 0
    %333 = vmatprep.subr.bf16.mxu0 0
    %334 = vmatpush1.bf16.msra.mxu0 0
    %335 = vmatprep.subr.bf16.mxu0 %v139
    %336 = vmatpush1.bf16.msra.mxu0 %v136
    %337 = vmatprep.subr.bf16.mxu0 0
    %338 = vmatpush2.bf16.msra.mxu0 0
    %339 = vmatprep.subr.bf16.mxu0 0
    %340 = vmatpush2.bf16.msra.mxu0 0
    %341 = vmatprep.subr.bf16.mxu0 0
    %342 = vmatpush2.bf16.msra.mxu0 0
    %343 = vmatprep.subr.bf16.mxu0 0
    %344 = vmatpush2.bf16.msra.mxu0 0
    %345 = vmatprep.subr.bf16.mxu0 0
    %346 = vmatpush2.bf16.msra.mxu0 0
    %347 = vmatprep.subr.bf16.mxu0 0
    %348 = vmatpush2.bf16.msra.mxu0 0
    %349 = vmatprep.subr.bf16.mxu0 0
    %350 = vmatpush2.bf16.msra.mxu0 0
    %351 = vmatprep.subr.bf16.mxu0 0
    %352 = vmatpush2.bf16.msra.mxu0 0
    %353 = vmatprep.mubr.bf16.mxu0 0
    %354 = vmatmul.mubr.bf16.gmra.mxu0 %v111
    %v355 = vpop.f32.mrf.mxu0
    %v356 = vadd.f32 0.0, %v355
    %v357 = vpop.f32.mrf.mxu0
    %v358 = vadd.f32 0.0, %v357
    %v359 = vpop.f32.mrf.mxu0
    %v360 = vadd.f32 0.0, %v359
    %v361 = vpop.f32.mrf.mxu0
    %v362 = vadd.f32 0.0, %v361
    %363 = vmatprep.mubr.bf16.mxu0 0
    %364 = vmatmul.mubr.bf16.gmra.mxu0 %v114
    %v365 = vpop.f32.mrf.mxu0
    %v366 = vadd.f32 0.0, %v365
    %v367 = vpop.f32.mrf.mxu0
    %v368 = vadd.f32 0.0, %v367
    %v369 = vpop.f32.mrf.mxu0
    %v370 = vadd.f32 0.0, %v369
    %v371 = vpop.f32.mrf.mxu0
    %v372 = vadd.f32 0.0, %v371
    %373 = vdwg.mxu0
    %374 = vmatprep.subr.bf16.mxu0 0
    %375 = vmatpush1.bf16.msra.mxu0 0
    %376 = vmatprep.subr.bf16.mxu0 0
    %377 = vmatpush1.bf16.msra.mxu0 0
    %378 = vmatprep.subr.bf16.mxu0 0
    %379 = vmatpush1.bf16.msra.mxu0 0
    %380 = vmatprep.subr.bf16.mxu0 0
    %381 = vmatpush1.bf16.msra.mxu0 0
    %382 = vmatprep.subr.bf16.mxu0 0
    %383 = vmatpush1.bf16.msra.mxu0 0
    %384 = vmatprep.subr.bf16.mxu0 0
    %385 = vmatpush1.bf16.msra.mxu0 0
    %386 = vmatprep.subr.bf16.mxu0 0
    %387 = vmatpush1.bf16.msra.mxu0 0
    %388 = vmatprep.subr.bf16.mxu0 %v145
    %389 = vmatpush1.bf16.msra.mxu0 %v142
    %390 = vmatprep.subr.bf16.mxu0 0
    %391 = vmatpush2.bf16.msra.mxu0 0
    %392 = vmatprep.subr.bf16.mxu0 0
    %393 = vmatpush2.bf16.msra.mxu0 0
    %394 = vmatprep.subr.bf16.mxu0 0
    %395 = vmatpush2.bf16.msra.mxu0 0
    %396 = vmatprep.subr.bf16.mxu0 0
    %397 = vmatpush2.bf16.msra.mxu0 0
    %398 = vmatprep.subr.bf16.mxu0 0
    %399 = vmatpush2.bf16.msra.mxu0 0
    %400 = vmatprep.subr.bf16.mxu0 0
    %401 = vmatpush2.bf16.msra.mxu0 0
    %402 = vmatprep.subr.bf16.mxu0 0
    %403 = vmatpush2.bf16.msra.mxu0 0
    %404 = vmatprep.subr.bf16.mxu0 0
    %405 = vmatpush2.bf16.msra.mxu0 0
    %406 = vmatprep.mubr.bf16.mxu0 0
    %407 = vmatmul.mubr.bf16.gmra.mxu0 %v111
    %v408 = vpop.f32.mrf.mxu0
    %v409 = vadd.f32 0.0, %v408
    %v410 = vpop.f32.mrf.mxu0
    %v411 = vadd.f32 0.0, %v410
    %v412 = vpop.f32.mrf.mxu0
    %v413 = vadd.f32 0.0, %v412
    %v414 = vpop.f32.mrf.mxu0
    %v415 = vadd.f32 0.0, %v414
    %416 = vmatprep.mubr.bf16.mxu0 0
    %417 = vmatmul.mubr.bf16.gmra.mxu0 %v114
    %v418 = vpop.f32.mrf.mxu0
    %v419 = vadd.f32 0.0, %v418
    %v420 = vpop.f32.mrf.mxu0
    %v421 = vadd.f32 0.0, %v420
    %v422 = vpop.f32.mrf.mxu0
    %v423 = vadd.f32 0.0, %v422
    %v424 = vpop.f32.mrf.mxu0
    %v425 = vadd.f32 0.0, %v424
    %426 = vdwg.mxu0
    %427 = vmatprep.subr.bf16.mxu0 0
    %428 = vmatpush1.bf16.msra.mxu0 0
    %429 = vmatprep.subr.bf16.mxu0 0
    %430 = vmatpush1.bf16.msra.mxu0 0
    %431 = vmatprep.subr.bf16.mxu0 0
    %432 = vmatpush1.bf16.msra.mxu0 0
    %433 = vmatprep.subr.bf16.mxu0 0
    %434 = vmatpush1.bf16.msra.mxu0 0
    %435 = vmatprep.subr.bf16.mxu0 0
    %436 = vmatpush1.bf16.msra.mxu0 0
    %437 = vmatprep.subr.bf16.mxu0 0
    %438 = vmatpush1.bf16.msra.mxu0 0
    %439 = vmatprep.subr.bf16.mxu0 0
    %440 = vmatpush1.bf16.msra.mxu0 0
    %441 = vmatprep.subr.bf16.mxu0 %v151
    %442 = vmatpush1.bf16.msra.mxu0 %v148
    %443 = vmatprep.subr.bf16.mxu0 0
    %444 = vmatpush2.bf16.msra.mxu0 0
    %445 = vmatprep.subr.bf16.mxu0 0
    %446 = vmatpush2.bf16.msra.mxu0 0
    %447 = vmatprep.subr.bf16.mxu0 0
    %448 = vmatpush2.bf16.msra.mxu0 0
    %449 = vmatprep.subr.bf16.mxu0 0
    %450 = vmatpush2.bf16.msra.mxu0 0
    %451 = vmatprep.subr.bf16.mxu0 0
    %452 = vmatpush2.bf16.msra.mxu0 0
    %453 = vmatprep.subr.bf16.mxu0 0
    %454 = vmatpush2.bf16.msra.mxu0 0
    %455 = vmatprep.subr.bf16.mxu0 0
    %456 = vmatpush2.bf16.msra.mxu0 0
    %457 = vmatprep.subr.bf16.mxu0 0
    %458 = vmatpush2.bf16.msra.mxu0 0
    %459 = vmatprep.mubr.bf16.mxu0 0
    %460 = vmatmul.mubr.bf16.gmra.mxu0 %v111
    %v461 = vpop.f32.mrf.mxu0
    %v462 = vadd.f32 0.0, %v461
    %v463 = vpop.f32.mrf.mxu0
    %v464 = vadd.f32 0.0, %v463
    %v465 = vpop.f32.mrf.mxu0
    %v466 = vadd.f32 0.0, %v465
    %v467 = vpop.f32.mrf.mxu0
    %v468 = vadd.f32 0.0, %v467
    %469 = vmatprep.mubr.bf16.mxu0 0
    %470 = vmatmul.mubr.bf16.gmra.mxu0 %v114
    %v471 = vpop.f32.mrf.mxu0
    %v472 = vadd.f32 0.0, %v471
    %v473 = vpop.f32.mrf.mxu0
    %v474 = vadd.f32 0.0, %v473
    %v475 = vpop.f32.mrf.mxu0
    %v476 = vadd.f32 0.0, %v475
    %v477 = vpop.f32.mrf.mxu0
    %v478 = vadd.f32 0.0, %v477
    %479 = vdwg.mxu0
    %480 = vmatprep.subr.bf16.mxu0 0
    %481 = vmatpush1.bf16.msra.mxu0 0
    %482 = vmatprep.subr.bf16.mxu0 0
    %483 = vmatpush1.bf16.msra.mxu0 0
    %484 = vmatprep.subr.bf16.mxu0 0
    %485 = vmatpush1.bf16.msra.mxu0 0
    %486 = vmatprep.subr.bf16.mxu0 0
    %487 = vmatpush1.bf16.msra.mxu0 0
    %488 = vmatprep.subr.bf16.mxu0 0
    %489 = vmatpush1.bf16.msra.mxu0 0
    %490 = vmatprep.subr.bf16.mxu0 0
    %491 = vmatpush1.bf16.msra.mxu0 0
    %492 = vmatprep.subr.bf16.mxu0 0
    %493 = vmatpush1.bf16.msra.mxu0 0
    %494 = vmatprep.subr.bf16.mxu0 %v157
    %495 = vmatpush1.bf16.msra.mxu0 %v154
    %496 = vmatprep.subr.bf16.mxu0 0
    %497 = vmatpush2.bf16.msra.mxu0 0
    %498 = vmatprep.subr.bf16.mxu0 0
    %499 = vmatpush2.bf16.msra.mxu0 0
    %500 = vmatprep.subr.bf16.mxu0 0
    %501 = vmatpush2.bf16.msra.mxu0 0
    %502 = vmatprep.subr.bf16.mxu0 0
    %503 = vmatpush2.bf16.msra.mxu0 0
    %504 = vmatprep.subr.bf16.mxu0 0
    %505 = vmatpush2.bf16.msra.mxu0 0
    %506 = vmatprep.subr.bf16.mxu0 0
    %507 = vmatpush2.bf16.msra.mxu0 0
    %508 = vmatprep.subr.bf16.mxu0 0
    %509 = vmatpush2.bf16.msra.mxu0 0
    %510 = vmatprep.subr.bf16.mxu0 0
    %511 = vmatpush2.bf16.msra.mxu0 0
    %512 = vmatprep.mubr.bf16.mxu0 0
    %513 = vmatmul.mubr.bf16.gmra.mxu0 %v111
    %v514 = vpop.f32.mrf.mxu0
    %v515 = vadd.f32 0.0, %v514
    %v516 = vpop.f32.mrf.mxu0
    %v517 = vadd.f32 0.0, %v516
    %v518 = vpop.f32.mrf.mxu0
    %v519 = vadd.f32 0.0, %v518
    %v520 = vpop.f32.mrf.mxu0
    %v521 = vadd.f32 0.0, %v520
    %522 = vmatprep.mubr.bf16.mxu0 0
    %523 = vmatmul.mubr.bf16.gmra.mxu0 %v114
    %v524 = vpop.f32.mrf.mxu0
    %v525 = vadd.f32 0.0, %v524
    %v526 = vpop.f32.mrf.mxu0
    %v527 = vadd.f32 0.0, %v526
    %v528 = vpop.f32.mrf.mxu0
    %v529 = vadd.f32 0.0, %v528
    %v530 = vpop.f32.mrf.mxu0
    %v531 = vadd.f32 0.0, %v530
    %532 = vdwg.mxu0
    %533 = vmatprep.subr.bf16.mxu0 0
    %534 = vmatpush1.bf16.msra.mxu0 0
    %535 = vmatprep.subr.bf16.mxu0 0
    %536 = vmatpush1.bf16.msra.mxu0 0
    %537 = vmatprep.subr.bf16.mxu0 0
    %538 = vmatpush1.bf16.msra.mxu0 0
    %539 = vmatprep.subr.bf16.mxu0 0
    %540 = vmatpush1.bf16.msra.mxu0 0
    %541 = vmatprep.subr.bf16.mxu0 0
    %542 = vmatpush1.bf16.msra.mxu0 0
    %543 = vmatprep.subr.bf16.mxu0 0
    %544 = vmatpush1.bf16.msra.mxu0 0
    %545 = vmatprep.subr.bf16.mxu0 0
    %546 = vmatpush1.bf16.msra.mxu0 0
    %547 = vmatprep.subr.bf16.mxu0 0
    %548 = vmatpush1.bf16.msra.mxu0 %v160
    %549 = vmatprep.subr.bf16.mxu0 0
    %550 = vmatpush2.bf16.msra.mxu0 0
    %551 = vmatprep.subr.bf16.mxu0 0
    %552 = vmatpush2.bf16.msra.mxu0 0
    %553 = vmatprep.subr.bf16.mxu0 0
    %554 = vmatpush2.bf16.msra.mxu0 0
    %555 = vmatprep.subr.bf16.mxu0 0
    %556 = vmatpush2.bf16.msra.mxu0 0
    %557 = vmatprep.subr.bf16.mxu0 0
    %558 = vmatpush2.bf16.msra.mxu0 0
    %559 = vmatprep.subr.bf16.mxu0 0
    %560 = vmatpush2.bf16.msra.mxu0 0
    %561 = vmatprep.subr.bf16.mxu0 0
    %562 = vmatpush2.bf16.msra.mxu0 0
    %563 = vmatprep.subr.bf16.mxu0 0
    %564 = vmatpush2.bf16.msra.mxu0 0
    %565 = vmatprep.mubr.bf16.mxu0 0
    %566 = vmatmul.mubr.bf16.gmra.mxu0 %v111
    %v567 = vpop.f32.mrf.mxu0
    %v568 = vadd.f32 0.0, %v567
    %v569 = vpop.f32.mrf.mxu0
    %v570 = vpop.f32.mrf.mxu0
    %v571 = vadd.f32 0.0, %v570
    %v572 = vpop.f32.mrf.mxu0
    %573 = vmatprep.mubr.bf16.mxu0 0
    %574 = vmatmul.mubr.bf16.gmra.mxu0 %v114
    %v575 = vpop.f32.mrf.mxu0
    %v576 = vadd.f32 0.0, %v575
    %v577 = vpop.f32.mrf.mxu0
    %v578 = vpop.f32.mrf.mxu0
    %v579 = vadd.f32 0.0, %v578
    %v580 = vpop.f32.mrf.mxu0
    %581 = vdwg.mxu0
    %v586 = vunpack.c.l.b16 %v52
    %v587 = vunpack.c.l.b16 %v53
    %v588 = vunpack.c.l.b16 %v54
    %v589 = vunpack.c.l.b16 %v55
    %v590 = vpack.c.b16 %v587, %v586
    %v591 = vpack.c.b16 %v589, %v588
    %v592 = vunpack.c.l.b16 %v39
    %v593 = vpack.c.b16 %v592, %v592
    %v595 = vsel %vm109, %v590, 0
    %v598 = vsel %vm109, %v591, 0
    %v601 = vsel %vm116, %v593, 0
    %603 = vmatprep.subr.bf16.mxu0 0
    %604 = vmatpush1.bf16.msra.mxu0 0
    %605 = vmatprep.subr.bf16.mxu0 0
    %606 = vmatpush1.bf16.msra.mxu0 0
    %607 = vmatprep.subr.bf16.mxu0 0
    %608 = vmatpush1.bf16.msra.mxu0 0
    %609 = vmatprep.subr.bf16.mxu0 0
    %610 = vmatpush1.bf16.msra.mxu0 0
    %611 = vmatprep.subr.bf16.mxu0 0
    %612 = vmatpush1.bf16.msra.mxu0 0
    %613 = vmatprep.subr.bf16.mxu0 0
    %614 = vmatpush1.bf16.msra.mxu0 0
    %615 = vmatprep.subr.bf16.mxu0 0
    %616 = vmatpush1.bf16.msra.mxu0 0
    %617 = vmatprep.subr.bf16.mxu0 %v118
    %618 = vmatpush1.bf16.msra.mxu0 %v601
    %619 = vmatprep.subr.bf16.mxu0 0
    %620 = vmatpush2.bf16.msra.mxu0 0
    %621 = vmatprep.subr.bf16.mxu0 0
    %622 = vmatpush2.bf16.msra.mxu0 0
    %623 = vmatprep.subr.bf16.mxu0 0
    %624 = vmatpush2.bf16.msra.mxu0 0
    %625 = vmatprep.subr.bf16.mxu0 0
    %626 = vmatpush2.bf16.msra.mxu0 0
    %627 = vmatprep.subr.bf16.mxu0 0
    %628 = vmatpush2.bf16.msra.mxu0 0
    %629 = vmatprep.subr.bf16.mxu0 0
    %630 = vmatpush2.bf16.msra.mxu0 0
    %631 = vmatprep.subr.bf16.mxu0 0
    %632 = vmatpush2.bf16.msra.mxu0 0
    %633 = vmatprep.subr.bf16.mxu0 0
    %634 = vmatpush2.bf16.msra.mxu0 0
    %635 = vmatprep.mubr.bf16.mxu0 0
    %636 = vmatmul.mubr.bf16.gmra.mxu0 %v595
    %v637 = vpop.f32.mrf.mxu0
    %v638 = vadd.f32 %v197, %v637
    %v639 = vpop.f32.mrf.mxu0
    %v640 = vadd.f32 %v199, %v639
    %v641 = vpop.f32.mrf.mxu0
    %v642 = vadd.f32 %v201, %v641
    %v643 = vpop.f32.mrf.mxu0
    %v644 = vadd.f32 %v203, %v643
    %645 = vmatprep.mubr.bf16.mxu0 0
    %646 = vmatmul.mubr.bf16.gmra.mxu0 %v598
    %v647 = vpop.f32.mrf.mxu0
    %v648 = vadd.f32 %v207, %v647
    %v649 = vpop.f32.mrf.mxu0
    %v650 = vadd.f32 %v209, %v649
    %v651 = vpop.f32.mrf.mxu0
    %v652 = vadd.f32 %v211, %v651
    %v653 = vpop.f32.mrf.mxu0
    %v654 = vadd.f32 %v213, %v653
    %655 = vdwg.mxu0
    %656 = vmatprep.subr.bf16.mxu0 0
    %657 = vmatpush1.bf16.msra.mxu0 0
    %658 = vmatprep.subr.bf16.mxu0 0
    %659 = vmatpush1.bf16.msra.mxu0 0
    %660 = vmatprep.subr.bf16.mxu0 0
    %661 = vmatpush1.bf16.msra.mxu0 0
    %662 = vmatprep.subr.bf16.mxu0 0
    %663 = vmatpush1.bf16.msra.mxu0 0
    %664 = vmatprep.subr.bf16.mxu0 0
    %665 = vmatpush1.bf16.msra.mxu0 0
    %666 = vmatprep.subr.bf16.mxu0 0
    %667 = vmatpush1.bf16.msra.mxu0 0
    %668 = vmatprep.subr.bf16.mxu0 0
    %669 = vmatpush1.bf16.msra.mxu0 0
    %670 = vmatprep.subr.bf16.mxu0 %v124
    %671 = vmatpush1.bf16.msra.mxu0 %v121
    %672 = vmatprep.subr.bf16.mxu0 0
    %673 = vmatpush2.bf16.msra.mxu0 0
    %674 = vmatprep.subr.bf16.mxu0 0
    %675 = vmatpush2.bf16.msra.mxu0 0
    %676 = vmatprep.subr.bf16.mxu0 0
    %677 = vmatpush2.bf16.msra.mxu0 0
    %678 = vmatprep.subr.bf16.mxu0 0
    %679 = vmatpush2.bf16.msra.mxu0 0
    %680 = vmatprep.subr.bf16.mxu0 0
    %681 = vmatpush2.bf16.msra.mxu0 0
    %682 = vmatprep.subr.bf16.mxu0 0
    %683 = vmatpush2.bf16.msra.mxu0 0
    %684 = vmatprep.subr.bf16.mxu0 0
    %685 = vmatpush2.bf16.msra.mxu0 0
    %686 = vmatprep.subr.bf16.mxu0 0
    %687 = vmatpush2.bf16.msra.mxu0 0
    %688 = vmatprep.mubr.bf16.mxu0 0
    %689 = vmatmul.mubr.bf16.gmra.mxu0 %v595
    %v690 = vpop.f32.mrf.mxu0
    %v691 = vadd.f32 %v250, %v690
    %v692 = vpop.f32.mrf.mxu0
    %v693 = vadd.f32 %v252, %v692
    %v694 = vpop.f32.mrf.mxu0
    %v695 = vadd.f32 %v254, %v694
    %v696 = vpop.f32.mrf.mxu0
    %v697 = vadd.f32 %v256, %v696
    %698 = vmatprep.mubr.bf16.mxu0 0
    %699 = vmatmul.mubr.bf16.gmra.mxu0 %v598
    %v700 = vpop.f32.mrf.mxu0
    %v701 = vadd.f32 %v260, %v700
    %v702 = vpop.f32.mrf.mxu0
    %v703 = vadd.f32 %v262, %v702
    %v704 = vpop.f32.mrf.mxu0
    %v705 = vadd.f32 %v264, %v704
    %v706 = vpop.f32.mrf.mxu0
    %v707 = vadd.f32 %v266, %v706
    %708 = vdwg.mxu0
    %709 = vmatprep.subr.bf16.mxu0 0
    %710 = vmatpush1.bf16.msra.mxu0 0
    %711 = vmatprep.subr.bf16.mxu0 0
    %712 = vmatpush1.bf16.msra.mxu0 0
    %713 = vmatprep.subr.bf16.mxu0 0
    %714 = vmatpush1.bf16.msra.mxu0 0
    %715 = vmatprep.subr.bf16.mxu0 0
    %716 = vmatpush1.bf16.msra.mxu0 0
    %717 = vmatprep.subr.bf16.mxu0 0
    %718 = vmatpush1.bf16.msra.mxu0 0
    %719 = vmatprep.subr.bf16.mxu0 0
    %720 = vmatpush1.bf16.msra.mxu0 0
    %721 = vmatprep.subr.bf16.mxu0 0
    %722 = vmatpush1.bf16.msra.mxu0 0
    %723 = vmatprep.subr.bf16.mxu0 %v130
    %724 = vmatpush1.bf16.msra.mxu0 %v127
    %725 = vmatprep.subr.bf16.mxu0 0
    %726 = vmatpush2.bf16.msra.mxu0 0
    %727 = vmatprep.subr.bf16.mxu0 0
    %728 = vmatpush2.bf16.msra.mxu0 0
    %729 = vmatprep.subr.bf16.mxu0 0
    %730 = vmatpush2.bf16.msra.mxu0 0
    %731 = vmatprep.subr.bf16.mxu0 0
    %732 = vmatpush2.bf16.msra.mxu0 0
    %733 = vmatprep.subr.bf16.mxu0 0
    %734 = vmatpush2.bf16.msra.mxu0 0
    %735 = vmatprep.subr.bf16.mxu0 0
    %736 = vmatpush2.bf16.msra.mxu0 0
    %737 = vmatprep.subr.bf16.mxu0 0
    %738 = vmatpush2.bf16.msra.mxu0 0
    %739 = vmatprep.subr.bf16.mxu0 0
    %740 = vmatpush2.bf16.msra.mxu0 0
    %741 = vmatprep.mubr.bf16.mxu0 0
    %742 = vmatmul.mubr.bf16.gmra.mxu0 %v595
    %v743 = vpop.f32.mrf.mxu0
    %v744 = vadd.f32 %v303, %v743
    %v745 = vpop.f32.mrf.mxu0
    %v746 = vadd.f32 %v305, %v745
    %v747 = vpop.f32.mrf.mxu0
    %v748 = vadd.f32 %v307, %v747
    %v749 = vpop.f32.mrf.mxu0
    %v750 = vadd.f32 %v309, %v749
    %751 = vmatprep.mubr.bf16.mxu0 0
    %752 = vmatmul.mubr.bf16.gmra.mxu0 %v598
    %v753 = vpop.f32.mrf.mxu0
    %v754 = vadd.f32 %v313, %v753
    %v755 = vpop.f32.mrf.mxu0
    %v756 = vadd.f32 %v315, %v755
    %v757 = vpop.f32.mrf.mxu0
    %v758 = vadd.f32 %v317, %v757
    %v759 = vpop.f32.mrf.mxu0
    %v760 = vadd.f32 %v319, %v759
    %761 = vdwg.mxu0
    %762 = vmatprep.subr.bf16.mxu0 0
    %763 = vmatpush1.bf16.msra.mxu0 0
    %764 = vmatprep.subr.bf16.mxu0 0
    %765 = vmatpush1.bf16.msra.mxu0 0
    %766 = vmatprep.subr.bf16.mxu0 0
    %767 = vmatpush1.bf16.msra.mxu0 0
    %768 = vmatprep.subr.bf16.mxu0 0
    %769 = vmatpush1.bf16.msra.mxu0 0
    %770 = vmatprep.subr.bf16.mxu0 0
    %771 = vmatpush1.bf16.msra.mxu0 0
    %772 = vmatprep.subr.bf16.mxu0 0
    %773 = vmatpush1.bf16.msra.mxu0 0
    %774 = vmatprep.subr.bf16.mxu0 0
    %775 = vmatpush1.bf16.msra.mxu0 0
    %776 = vmatprep.subr.bf16.mxu0 %v136
    %777 = vmatpush1.bf16.msra.mxu0 %v133
    %778 = vmatprep.subr.bf16.mxu0 0
    %779 = vmatpush2.bf16.msra.mxu0 0
    %780 = vmatprep.subr.bf16.mxu0 0
    %781 = vmatpush2.bf16.msra.mxu0 0
    %782 = vmatprep.subr.bf16.mxu0 0
    %783 = vmatpush2.bf16.msra.mxu0 0
    %784 = vmatprep.subr.bf16.mxu0 0
    %785 = vmatpush2.bf16.msra.mxu0 0
    %786 = vmatprep.subr.bf16.mxu0 0
    %787 = vmatpush2.bf16.msra.mxu0 0
    %788 = vmatprep.subr.bf16.mxu0 0
    %789 = vmatpush2.bf16.msra.mxu0 0
    %790 = vmatprep.subr.bf16.mxu0 0
    %791 = vmatpush2.bf16.msra.mxu0 0
    %792 = vmatprep.subr.bf16.mxu0 0
    %793 = vmatpush2.bf16.msra.mxu0 0
    %794 = vmatprep.mubr.bf16.mxu0 0
    %795 = vmatmul.mubr.bf16.gmra.mxu0 %v595
    %v796 = vpop.f32.mrf.mxu0
    %v797 = vadd.f32 %v356, %v796
    %v798 = vpop.f32.mrf.mxu0
    %v799 = vadd.f32 %v358, %v798
    %v800 = vpop.f32.mrf.mxu0
    %v801 = vadd.f32 %v360, %v800
    %v802 = vpop.f32.mrf.mxu0
    %v803 = vadd.f32 %v362, %v802
    %804 = vmatprep.mubr.bf16.mxu0 0
    %805 = vmatmul.mubr.bf16.gmra.mxu0 %v598
    %v806 = vpop.f32.mrf.mxu0
    %v807 = vadd.f32 %v366, %v806
    %v808 = vpop.f32.mrf.mxu0
    %v809 = vadd.f32 %v368, %v808
    %v810 = vpop.f32.mrf.mxu0
    %v811 = vadd.f32 %v370, %v810
    %v812 = vpop.f32.mrf.mxu0
    %v813 = vadd.f32 %v372, %v812
    %814 = vdwg.mxu0
    %815 = vmatprep.subr.bf16.mxu0 0
    %816 = vmatpush1.bf16.msra.mxu0 0
    %817 = vmatprep.subr.bf16.mxu0 0
    %818 = vmatpush1.bf16.msra.mxu0 0
    %819 = vmatprep.subr.bf16.mxu0 0
    %820 = vmatpush1.bf16.msra.mxu0 0
    %821 = vmatprep.subr.bf16.mxu0 0
    %822 = vmatpush1.bf16.msra.mxu0 0
    %823 = vmatprep.subr.bf16.mxu0 0
    %824 = vmatpush1.bf16.msra.mxu0 0
    %825 = vmatprep.subr.bf16.mxu0 0
    %826 = vmatpush1.bf16.msra.mxu0 0
    %827 = vmatprep.subr.bf16.mxu0 0
    %828 = vmatpush1.bf16.msra.mxu0 0
    %829 = vmatprep.subr.bf16.mxu0 %v142
    %830 = vmatpush1.bf16.msra.mxu0 %v139
    %831 = vmatprep.subr.bf16.mxu0 0
    %832 = vmatpush2.bf16.msra.mxu0 0
    %833 = vmatprep.subr.bf16.mxu0 0
    %834 = vmatpush2.bf16.msra.mxu0 0
    %835 = vmatprep.subr.bf16.mxu0 0
    %836 = vmatpush2.bf16.msra.mxu0 0
    %837 = vmatprep.subr.bf16.mxu0 0
    %838 = vmatpush2.bf16.msra.mxu0 0
    %839 = vmatprep.subr.bf16.mxu0 0
    %840 = vmatpush2.bf16.msra.mxu0 0
    %841 = vmatprep.subr.bf16.mxu0 0
    %842 = vmatpush2.bf16.msra.mxu0 0
    %843 = vmatprep.subr.bf16.mxu0 0
    %844 = vmatpush2.bf16.msra.mxu0 0
    %845 = vmatprep.subr.bf16.mxu0 0
    %846 = vmatpush2.bf16.msra.mxu0 0
    %847 = vmatprep.mubr.bf16.mxu0 0
    %848 = vmatmul.mubr.bf16.gmra.mxu0 %v595
    %v849 = vpop.f32.mrf.mxu0
    %v850 = vadd.f32 %v409, %v849
    %v851 = vpop.f32.mrf.mxu0
    %v852 = vadd.f32 %v411, %v851
    %v853 = vpop.f32.mrf.mxu0
    %v854 = vadd.f32 %v413, %v853
    %v855 = vpop.f32.mrf.mxu0
    %v856 = vadd.f32 %v415, %v855
    %857 = vmatprep.mubr.bf16.mxu0 0
    %858 = vmatmul.mubr.bf16.gmra.mxu0 %v598
    %v859 = vpop.f32.mrf.mxu0
    %v860 = vadd.f32 %v419, %v859
    %v861 = vpop.f32.mrf.mxu0
    %v862 = vadd.f32 %v421, %v861
    %v863 = vpop.f32.mrf.mxu0
    %v864 = vadd.f32 %v423, %v863
    %v865 = vpop.f32.mrf.mxu0
    %v866 = vadd.f32 %v425, %v865
    %867 = vdwg.mxu0
    %868 = vmatprep.subr.bf16.mxu0 0
    %869 = vmatpush1.bf16.msra.mxu0 0
    %870 = vmatprep.subr.bf16.mxu0 0
    %871 = vmatpush1.bf16.msra.mxu0 0
    %872 = vmatprep.subr.bf16.mxu0 0
    %873 = vmatpush1.bf16.msra.mxu0 0
    %874 = vmatprep.subr.bf16.mxu0 0
    %875 = vmatpush1.bf16.msra.mxu0 0
    %876 = vmatprep.subr.bf16.mxu0 0
    %877 = vmatpush1.bf16.msra.mxu0 0
    %878 = vmatprep.subr.bf16.mxu0 0
    %879 = vmatpush1.bf16.msra.mxu0 0
    %880 = vmatprep.subr.bf16.mxu0 0
    %881 = vmatpush1.bf16.msra.mxu0 0
    %882 = vmatprep.subr.bf16.mxu0 %v148
    %883 = vmatpush1.bf16.msra.mxu0 %v145
    %884 = vmatprep.subr.bf16.mxu0 0
    %885 = vmatpush2.bf16.msra.mxu0 0
    %886 = vmatprep.subr.bf16.mxu0 0
    %887 = vmatpush2.bf16.msra.mxu0 0
    %888 = vmatprep.subr.bf16.mxu0 0
    %889 = vmatpush2.bf16.msra.mxu0 0
    %890 = vmatprep.subr.bf16.mxu0 0
    %891 = vmatpush2.bf16.msra.mxu0 0
    %892 = vmatprep.subr.bf16.mxu0 0
    %893 = vmatpush2.bf16.msra.mxu0 0
    %894 = vmatprep.subr.bf16.mxu0 0
    %895 = vmatpush2.bf16.msra.mxu0 0
    %896 = vmatprep.subr.bf16.mxu0 0
    %897 = vmatpush2.bf16.msra.mxu0 0
    %898 = vmatprep.subr.bf16.mxu0 0
    %899 = vmatpush2.bf16.msra.mxu0 0
    %900 = vmatprep.mubr.bf16.mxu0 0
    %901 = vmatmul.mubr.bf16.gmra.mxu0 %v595
    %v902 = vpop.f32.mrf.mxu0
    %v903 = vadd.f32 %v462, %v902
    %v904 = vpop.f32.mrf.mxu0
    %v905 = vadd.f32 %v464, %v904
    %v906 = vpop.f32.mrf.mxu0
    %v907 = vadd.f32 %v466, %v906
    %v908 = vpop.f32.mrf.mxu0
    %v909 = vadd.f32 %v468, %v908
    %910 = vmatprep.mubr.bf16.mxu0 0
    %911 = vmatmul.mubr.bf16.gmra.mxu0 %v598
    %v912 = vpop.f32.mrf.mxu0
    %v913 = vadd.f32 %v472, %v912
    %v914 = vpop.f32.mrf.mxu0
    %v915 = vadd.f32 %v474, %v914
    %v916 = vpop.f32.mrf.mxu0
    %v917 = vadd.f32 %v476, %v916
    %v918 = vpop.f32.mrf.mxu0
    %v919 = vadd.f32 %v478, %v918
    %920 = vdwg.mxu0
    %921 = vmatprep.subr.bf16.mxu0 0
    %922 = vmatpush1.bf16.msra.mxu0 0
    %923 = vmatprep.subr.bf16.mxu0 0
    %924 = vmatpush1.bf16.msra.mxu0 0
    %925 = vmatprep.subr.bf16.mxu0 0
    %926 = vmatpush1.bf16.msra.mxu0 0
    %927 = vmatprep.subr.bf16.mxu0 0
    %928 = vmatpush1.bf16.msra.mxu0 0
    %929 = vmatprep.subr.bf16.mxu0 0
    %930 = vmatpush1.bf16.msra.mxu0 0
    %931 = vmatprep.subr.bf16.mxu0 0
    %932 = vmatpush1.bf16.msra.mxu0 0
    %933 = vmatprep.subr.bf16.mxu0 0
    %934 = vmatpush1.bf16.msra.mxu0 0
    %935 = vmatprep.subr.bf16.mxu0 %v154
    %936 = vmatpush1.bf16.msra.mxu0 %v151
    %937 = vmatprep.subr.bf16.mxu0 0
    %938 = vmatpush2.bf16.msra.mxu0 0
    %939 = vmatprep.subr.bf16.mxu0 0
    %940 = vmatpush2.bf16.msra.mxu0 0
    %941 = vmatprep.subr.bf16.mxu0 0
    %942 = vmatpush2.bf16.msra.mxu0 0
    %943 = vmatprep.subr.bf16.mxu0 0
    %944 = vmatpush2.bf16.msra.mxu0 0
    %945 = vmatprep.subr.bf16.mxu0 0
    %946 = vmatpush2.bf16.msra.mxu0 0
    %947 = vmatprep.subr.bf16.mxu0 0
    %948 = vmatpush2.bf16.msra.mxu0 0
    %949 = vmatprep.subr.bf16.mxu0 0
    %950 = vmatpush2.bf16.msra.mxu0 0
    %951 = vmatprep.subr.bf16.mxu0 0
    %952 = vmatpush2.bf16.msra.mxu0 0
    %953 = vmatprep.mubr.bf16.mxu0 0
    %954 = vmatmul.mubr.bf16.gmra.mxu0 %v595
    %v955 = vpop.f32.mrf.mxu0
    %v956 = vadd.f32 %v515, %v955
    %v957 = vpop.f32.mrf.mxu0
    %v958 = vadd.f32 %v517, %v957
    %v959 = vpop.f32.mrf.mxu0
    %v960 = vadd.f32 %v519, %v959
    %v961 = vpop.f32.mrf.mxu0
    %v962 = vadd.f32 %v521, %v961
    %963 = vmatprep.mubr.bf16.mxu0 0
    %964 = vmatmul.mubr.bf16.gmra.mxu0 %v598
    %v965 = vpop.f32.mrf.mxu0
    %v966 = vadd.f32 %v525, %v965
    %v967 = vpop.f32.mrf.mxu0
    %v968 = vadd.f32 %v527, %v967
    %v969 = vpop.f32.mrf.mxu0
    %v970 = vadd.f32 %v529, %v969
    %v971 = vpop.f32.mrf.mxu0
    %v972 = vadd.f32 %v531, %v971
    %973 = vdwg.mxu0
    %974 = vmatprep.subr.bf16.mxu0 0
    %975 = vmatpush1.bf16.msra.mxu0 0
    %976 = vmatprep.subr.bf16.mxu0 0
    %977 = vmatpush1.bf16.msra.mxu0 0
    %978 = vmatprep.subr.bf16.mxu0 0
    %979 = vmatpush1.bf16.msra.mxu0 0
    %980 = vmatprep.subr.bf16.mxu0 0
    %981 = vmatpush1.bf16.msra.mxu0 0
    %982 = vmatprep.subr.bf16.mxu0 0
    %983 = vmatpush1.bf16.msra.mxu0 0
    %984 = vmatprep.subr.bf16.mxu0 0
    %985 = vmatpush1.bf16.msra.mxu0 0
    %986 = vmatprep.subr.bf16.mxu0 0
    %987 = vmatpush1.bf16.msra.mxu0 0
    %988 = vmatprep.subr.bf16.mxu0 0
    %989 = vmatpush1.bf16.msra.mxu0 %v157
    %990 = vmatprep.subr.bf16.mxu0 0
    %991 = vmatpush2.bf16.msra.mxu0 0
    %992 = vmatprep.subr.bf16.mxu0 0
    %993 = vmatpush2.bf16.msra.mxu0 0
    %994 = vmatprep.subr.bf16.mxu0 0
    %995 = vmatpush2.bf16.msra.mxu0 0
    %996 = vmatprep.subr.bf16.mxu0 0
    %997 = vmatpush2.bf16.msra.mxu0 0
    %998 = vmatprep.subr.bf16.mxu0 0
    %999 = vmatpush2.bf16.msra.mxu0 0
    %1000 = vmatprep.subr.bf16.mxu0 0
    %1001 = vmatpush2.bf16.msra.mxu0 0
    %1002 = vmatprep.subr.bf16.mxu0 0
    %1003 = vmatpush2.bf16.msra.mxu0 0
    %1004 = vmatprep.subr.bf16.mxu0 0
    %1005 = vmatpush2.bf16.msra.mxu0 0
    %1006 = vmatprep.mubr.bf16.mxu0 0
    %1007 = vmatmul.mubr.bf16.gmra.mxu0 %v595
    %v1008 = vpop.f32.mrf.mxu0
    %v1009 = vadd.f32 %v568, %v1008
    %v1010 = vpop.f32.mrf.mxu0
    %v1011 = vpop.f32.mrf.mxu0
    %v1012 = vadd.f32 %v571, %v1011
    %v1013 = vpop.f32.mrf.mxu0
    %1014 = vmatprep.mubr.bf16.mxu0 0
    %1015 = vmatmul.mubr.bf16.gmra.mxu0 %v598
    %v1016 = vpop.f32.mrf.mxu0
    %v1017 = vadd.f32 %v576, %v1016
    %v1018 = vpop.f32.mrf.mxu0
    %v1019 = vpop.f32.mrf.mxu0
    %v1020 = vadd.f32 %v579, %v1019
    %v1021 = vpop.f32.mrf.mxu0
    %1022 = vdwg.mxu0
    %s1023 = scalar_lea.vmem %s1, 32
    %v1024 = vld [vmem:[%s1023] sm:$0xf]
    %v1025 = vld [vmem:[%s1023 + $0x4] sm:$0xf]
    %v1026 = vld [vmem:[%s1023 + $0x8] sm:$0xf]
    %v1027 = vld [vmem:[%s1023 + $0xc] sm:$0xf]
    %v1032 = vunpack.c.l.b16 %v1024
    %v1033 = vunpack.c.l.b16 %v1025
    %v1034 = vunpack.c.l.b16 %v1026
    %v1035 = vunpack.c.l.b16 %v1027
    %v1036 = vpack.c.b16 %v1033, %v1032
    %v1037 = vpack.c.b16 %v1035, %v1034
    %v1039 = vunpack.c.l.b16 %v47
    %v1040 = vpack.c.b16 %v1039, %v1039
    %v1042 = vsel %vm109, %v1036, 0
    %v1045 = vsel %vm109, %v1037, 0
    %v1048 = vsel %vm116, %v1040, 0
    %1050 = vmatprep.subr.bf16.mxu0 0
    %1051 = vmatpush1.bf16.msra.mxu0 0
    %1052 = vmatprep.subr.bf16.mxu0 0
    %1053 = vmatpush1.bf16.msra.mxu0 0
    %1054 = vmatprep.subr.bf16.mxu0 0
    %1055 = vmatpush1.bf16.msra.mxu0 0
    %1056 = vmatprep.subr.bf16.mxu0 0
    %1057 = vmatpush1.bf16.msra.mxu0 0
    %1058 = vmatprep.subr.bf16.mxu0 0
    %1059 = vmatpush1.bf16.msra.mxu0 0
    %1060 = vmatprep.subr.bf16.mxu0 0
    %1061 = vmatpush1.bf16.msra.mxu0 0
    %1062 = vmatprep.subr.bf16.mxu0 0
    %1063 = vmatpush1.bf16.msra.mxu0 0
    %1064 = vmatprep.subr.bf16.mxu0 %v124
    %1065 = vmatpush1.bf16.msra.mxu0 %v121
    %1066 = vmatprep.subr.bf16.mxu0 0
    %1067 = vmatpush2.bf16.msra.mxu0 0
    %1068 = vmatprep.subr.bf16.mxu0 0
    %1069 = vmatpush2.bf16.msra.mxu0 0
    %1070 = vmatprep.subr.bf16.mxu0 0
    %1071 = vmatpush2.bf16.msra.mxu0 0
    %1072 = vmatprep.subr.bf16.mxu0 0
    %1073 = vmatpush2.bf16.msra.mxu0 0
    %1074 = vmatprep.subr.bf16.mxu0 0
    %1075 = vmatpush2.bf16.msra.mxu0 0
    %1076 = vmatprep.subr.bf16.mxu0 0
    %1077 = vmatpush2.bf16.msra.mxu0 0
    %1078 = vmatprep.subr.bf16.mxu0 0
    %1079 = vmatpush2.bf16.msra.mxu0 0
    %1080 = vmatprep.subr.bf16.mxu0 0
    %1081 = vmatpush2.bf16.msra.mxu0 0
    %1082 = vmatprep.mubr.bf16.mxu0 0
    %1083 = vmatmul.mubr.bf16.gmra.mxu0 %v1042
    %v1084 = vpop.f32.mrf.mxu0
    %v1085 = vadd.f32 0.0, %v1084
    %v1086 = vpop.f32.mrf.mxu0
    %v1087 = vadd.f32 0.0, %v1086
    %v1088 = vpop.f32.mrf.mxu0
    %v1089 = vadd.f32 0.0, %v1088
    %v1090 = vpop.f32.mrf.mxu0
    %v1091 = vadd.f32 0.0, %v1090
    %1092 = vmatprep.mubr.bf16.mxu0 0
    %1093 = vmatmul.mubr.bf16.gmra.mxu0 %v1045
    %v1094 = vpop.f32.mrf.mxu0
    %v1095 = vadd.f32 0.0, %v1094
    %v1096 = vpop.f32.mrf.mxu0
    %v1097 = vadd.f32 0.0, %v1096
    %v1098 = vpop.f32.mrf.mxu0
    %v1099 = vadd.f32 0.0, %v1098
    %v1100 = vpop.f32.mrf.mxu0
    %v1101 = vadd.f32 0.0, %v1100
    %1102 = vdwg.mxu0
    %1103 = vmatprep.subr.bf16.mxu0 0
    %1104 = vmatpush1.bf16.msra.mxu0 0
    %1105 = vmatprep.subr.bf16.mxu0 0
    %1106 = vmatpush1.bf16.msra.mxu0 0
    %1107 = vmatprep.subr.bf16.mxu0 0
    %1108 = vmatpush1.bf16.msra.mxu0 0
    %1109 = vmatprep.subr.bf16.mxu0 0
    %1110 = vmatpush1.bf16.msra.mxu0 0
    %1111 = vmatprep.subr.bf16.mxu0 0
    %1112 = vmatpush1.bf16.msra.mxu0 0
    %1113 = vmatprep.subr.bf16.mxu0 0
    %1114 = vmatpush1.bf16.msra.mxu0 0
    %1115 = vmatprep.subr.bf16.mxu0 0
    %1116 = vmatpush1.bf16.msra.mxu0 0
    %1117 = vmatprep.subr.bf16.mxu0 %v130
    %1118 = vmatpush1.bf16.msra.mxu0 %v127
    %1119 = vmatprep.subr.bf16.mxu0 0
    %1120 = vmatpush2.bf16.msra.mxu0 0
    %1121 = vmatprep.subr.bf16.mxu0 0
    %1122 = vmatpush2.bf16.msra.mxu0 0
    %1123 = vmatprep.subr.bf16.mxu0 0
    %1124 = vmatpush2.bf16.msra.mxu0 0
    %1125 = vmatprep.subr.bf16.mxu0 0
    %1126 = vmatpush2.bf16.msra.mxu0 0
    %1127 = vmatprep.subr.bf16.mxu0 0
    %1128 = vmatpush2.bf16.msra.mxu0 0
    %1129 = vmatprep.subr.bf16.mxu0 0
    %1130 = vmatpush2.bf16.msra.mxu0 0
    %1131 = vmatprep.subr.bf16.mxu0 0
    %1132 = vmatpush2.bf16.msra.mxu0 0
    %1133 = vmatprep.subr.bf16.mxu0 0
    %1134 = vmatpush2.bf16.msra.mxu0 0
    %1135 = vmatprep.mubr.bf16.mxu0 0
    %1136 = vmatmul.mubr.bf16.gmra.mxu0 %v1042
    %v1137 = vpop.f32.mrf.mxu0
    %v1138 = vadd.f32 0.0, %v1137
    %v1139 = vpop.f32.mrf.mxu0
    %v1140 = vadd.f32 0.0, %v1139
    %v1141 = vpop.f32.mrf.mxu0
    %v1142 = vadd.f32 0.0, %v1141
    %v1143 = vpop.f32.mrf.mxu0
    %v1144 = vadd.f32 0.0, %v1143
    %1145 = vmatprep.mubr.bf16.mxu0 0
    %1146 = vmatmul.mubr.bf16.gmra.mxu0 %v1045
    %v1147 = vpop.f32.mrf.mxu0
    %v1148 = vadd.f32 0.0, %v1147
    %v1149 = vpop.f32.mrf.mxu0
    %v1150 = vadd.f32 0.0, %v1149
    %v1151 = vpop.f32.mrf.mxu0
    %v1152 = vadd.f32 0.0, %v1151
    %v1153 = vpop.f32.mrf.mxu0
    %v1154 = vadd.f32 0.0, %v1153
    %1155 = vdwg.mxu0
    %1156 = vmatprep.subr.bf16.mxu0 0
    %1157 = vmatpush1.bf16.msra.mxu0 0
    %1158 = vmatprep.subr.bf16.mxu0 0
    %1159 = vmatpush1.bf16.msra.mxu0 0
    %1160 = vmatprep.subr.bf16.mxu0 0
    %1161 = vmatpush1.bf16.msra.mxu0 0
    %1162 = vmatprep.subr.bf16.mxu0 0
    %1163 = vmatpush1.bf16.msra.mxu0 0
    %1164 = vmatprep.subr.bf16.mxu0 0
    %1165 = vmatpush1.bf16.msra.mxu0 0
    %1166 = vmatprep.subr.bf16.mxu0 0
    %1167 = vmatpush1.bf16.msra.mxu0 0
    %1168 = vmatprep.subr.bf16.mxu0 0
    %1169 = vmatpush1.bf16.msra.mxu0 0
    %1170 = vmatprep.subr.bf16.mxu0 %v136
    %1171 = vmatpush1.bf16.msra.mxu0 %v133
    %1172 = vmatprep.subr.bf16.mxu0 0
    %1173 = vmatpush2.bf16.msra.mxu0 0
    %1174 = vmatprep.subr.bf16.mxu0 0
    %1175 = vmatpush2.bf16.msra.mxu0 0
    %1176 = vmatprep.subr.bf16.mxu0 0
    %1177 = vmatpush2.bf16.msra.mxu0 0
    %1178 = vmatprep.subr.bf16.mxu0 0
    %1179 = vmatpush2.bf16.msra.mxu0 0
    %1180 = vmatprep.subr.bf16.mxu0 0
    %1181 = vmatpush2.bf16.msra.mxu0 0
    %1182 = vmatprep.subr.bf16.mxu0 0
    %1183 = vmatpush2.bf16.msra.mxu0 0
    %1184 = vmatprep.subr.bf16.mxu0 0
    %1185 = vmatpush2.bf16.msra.mxu0 0
    %1186 = vmatprep.subr.bf16.mxu0 0
    %1187 = vmatpush2.bf16.msra.mxu0 0
    %1188 = vmatprep.mubr.bf16.mxu0 0
    %1189 = vmatmul.mubr.bf16.gmra.mxu0 %v1042
    %v1190 = vpop.f32.mrf.mxu0
    %v1191 = vadd.f32 0.0, %v1190
    %v1192 = vpop.f32.mrf.mxu0
    %v1193 = vadd.f32 0.0, %v1192
    %v1194 = vpop.f32.mrf.mxu0
    %v1195 = vadd.f32 0.0, %v1194
    %v1196 = vpop.f32.mrf.mxu0
    %v1197 = vadd.f32 0.0, %v1196
    %1198 = vmatprep.mubr.bf16.mxu0 0
    %1199 = vmatmul.mubr.bf16.gmra.mxu0 %v1045
    %v1200 = vpop.f32.mrf.mxu0
    %v1201 = vadd.f32 0.0, %v1200
    %v1202 = vpop.f32.mrf.mxu0
    %v1203 = vadd.f32 0.0, %v1202
    %v1204 = vpop.f32.mrf.mxu0
    %v1205 = vadd.f32 0.0, %v1204
    %v1206 = vpop.f32.mrf.mxu0
    %v1207 = vadd.f32 0.0, %v1206
    %1208 = vdwg.mxu0
    %1209 = vmatprep.subr.bf16.mxu0 0
    %1210 = vmatpush1.bf16.msra.mxu0 0
    %1211 = vmatprep.subr.bf16.mxu0 0
    %1212 = vmatpush1.bf16.msra.mxu0 0
    %1213 = vmatprep.subr.bf16.mxu0 0
    %1214 = vmatpush1.bf16.msra.mxu0 0
    %1215 = vmatprep.subr.bf16.mxu0 0
    %1216 = vmatpush1.bf16.msra.mxu0 0
    %1217 = vmatprep.subr.bf16.mxu0 0
    %1218 = vmatpush1.bf16.msra.mxu0 0
    %1219 = vmatprep.subr.bf16.mxu0 0
    %1220 = vmatpush1.bf16.msra.mxu0 0
    %1221 = vmatprep.subr.bf16.mxu0 0
    %1222 = vmatpush1.bf16.msra.mxu0 0
    %1223 = vmatprep.subr.bf16.mxu0 %v142
    %1224 = vmatpush1.bf16.msra.mxu0 %v139
    %1225 = vmatprep.subr.bf16.mxu0 0
    %1226 = vmatpush2.bf16.msra.mxu0 0
    %1227 = vmatprep.subr.bf16.mxu0 0
    %1228 = vmatpush2.bf16.msra.mxu0 0
    %1229 = vmatprep.subr.bf16.mxu0 0
    %1230 = vmatpush2.bf16.msra.mxu0 0
    %1231 = vmatprep.subr.bf16.mxu0 0
    %1232 = vmatpush2.bf16.msra.mxu0 0
    %1233 = vmatprep.subr.bf16.mxu0 0
    %1234 = vmatpush2.bf16.msra.mxu0 0
    %1235 = vmatprep.subr.bf16.mxu0 0
    %1236 = vmatpush2.bf16.msra.mxu0 0
    %1237 = vmatprep.subr.bf16.mxu0 0
    %1238 = vmatpush2.bf16.msra.mxu0 0
    %1239 = vmatprep.subr.bf16.mxu0 0
    %1240 = vmatpush2.bf16.msra.mxu0 0
    %1241 = vmatprep.mubr.bf16.mxu0 0
    %1242 = vmatmul.mubr.bf16.gmra.mxu0 %v1042
    %v1243 = vpop.f32.mrf.mxu0
    %v1244 = vadd.f32 0.0, %v1243
    %v1245 = vpop.f32.mrf.mxu0
    %v1246 = vadd.f32 0.0, %v1245
    %v1247 = vpop.f32.mrf.mxu0
    %v1248 = vadd.f32 0.0, %v1247
    %v1249 = vpop.f32.mrf.mxu0
    %v1250 = vadd.f32 0.0, %v1249
    %1251 = vmatprep.mubr.bf16.mxu0 0
    %1252 = vmatmul.mubr.bf16.gmra.mxu0 %v1045
    %v1253 = vpop.f32.mrf.mxu0
    %v1254 = vadd.f32 0.0, %v1253
    %v1255 = vpop.f32.mrf.mxu0
    %v1256 = vadd.f32 0.0, %v1255
    %v1257 = vpop.f32.mrf.mxu0
    %v1258 = vadd.f32 0.0, %v1257
    %v1259 = vpop.f32.mrf.mxu0
    %v1260 = vadd.f32 0.0, %v1259
    %1261 = vdwg.mxu0
    %1262 = vmatprep.subr.bf16.mxu0 0
    %1263 = vmatpush1.bf16.msra.mxu0 0
    %1264 = vmatprep.subr.bf16.mxu0 0
    %1265 = vmatpush1.bf16.msra.mxu0 0
    %1266 = vmatprep.subr.bf16.mxu0 0
    %1267 = vmatpush1.bf16.msra.mxu0 0
    %1268 = vmatprep.subr.bf16.mxu0 0
    %1269 = vmatpush1.bf16.msra.mxu0 0
    %1270 = vmatprep.subr.bf16.mxu0 0
    %1271 = vmatpush1.bf16.msra.mxu0 0
    %1272 = vmatprep.subr.bf16.mxu0 0
    %1273 = vmatpush1.bf16.msra.mxu0 0
    %1274 = vmatprep.subr.bf16.mxu0 0
    %1275 = vmatpush1.bf16.msra.mxu0 0
    %1276 = vmatprep.subr.bf16.mxu0 %v148
    %1277 = vmatpush1.bf16.msra.mxu0 %v145
    %1278 = vmatprep.subr.bf16.mxu0 0
    %1279 = vmatpush2.bf16.msra.mxu0 0
    %1280 = vmatprep.subr.bf16.mxu0 0
    %1281 = vmatpush2.bf16.msra.mxu0 0
    %1282 = vmatprep.subr.bf16.mxu0 0
    %1283 = vmatpush2.bf16.msra.mxu0 0
    %1284 = vmatprep.subr.bf16.mxu0 0
    %1285 = vmatpush2.bf16.msra.mxu0 0
    %1286 = vmatprep.subr.bf16.mxu0 0
    %1287 = vmatpush2.bf16.msra.mxu0 0
    %1288 = vmatprep.subr.bf16.mxu0 0
    %1289 = vmatpush2.bf16.msra.mxu0 0
    %1290 = vmatprep.subr.bf16.mxu0 0
    %1291 = vmatpush2.bf16.msra.mxu0 0
    %1292 = vmatprep.subr.bf16.mxu0 0
    %1293 = vmatpush2.bf16.msra.mxu0 0
    %1294 = vmatprep.mubr.bf16.mxu0 0
    %1295 = vmatmul.mubr.bf16.gmra.mxu0 %v1042
    %v1296 = vpop.f32.mrf.mxu0
    %v1297 = vadd.f32 0.0, %v1296
    %v1298 = vpop.f32.mrf.mxu0
    %v1299 = vadd.f32 0.0, %v1298
    %v1300 = vpop.f32.mrf.mxu0
    %v1301 = vadd.f32 0.0, %v1300
    %v1302 = vpop.f32.mrf.mxu0
    %v1303 = vadd.f32 0.0, %v1302
    %1304 = vmatprep.mubr.bf16.mxu0 0
    %1305 = vmatmul.mubr.bf16.gmra.mxu0 %v1045
    %v1306 = vpop.f32.mrf.mxu0
    %v1307 = vadd.f32 0.0, %v1306
    %v1308 = vpop.f32.mrf.mxu0
    %v1309 = vadd.f32 0.0, %v1308
    %v1310 = vpop.f32.mrf.mxu0
    %v1311 = vadd.f32 0.0, %v1310
    %v1312 = vpop.f32.mrf.mxu0
    %v1313 = vadd.f32 0.0, %v1312
    %1314 = vdwg.mxu0
    %1315 = vmatprep.subr.bf16.mxu0 0
    %1316 = vmatpush1.bf16.msra.mxu0 0
    %1317 = vmatprep.subr.bf16.mxu0 0
    %1318 = vmatpush1.bf16.msra.mxu0 0
    %1319 = vmatprep.subr.bf16.mxu0 0
    %1320 = vmatpush1.bf16.msra.mxu0 0
    %1321 = vmatprep.subr.bf16.mxu0 0
    %1322 = vmatpush1.bf16.msra.mxu0 0
    %1323 = vmatprep.subr.bf16.mxu0 0
    %1324 = vmatpush1.bf16.msra.mxu0 0
    %1325 = vmatprep.subr.bf16.mxu0 0
    %1326 = vmatpush1.bf16.msra.mxu0 0
    %1327 = vmatprep.subr.bf16.mxu0 0
    %1328 = vmatpush1.bf16.msra.mxu0 0
    %1329 = vmatprep.subr.bf16.mxu0 %v154
    %1330 = vmatpush1.bf16.msra.mxu0 %v151
    %1331 = vmatprep.subr.bf16.mxu0 0
    %1332 = vmatpush2.bf16.msra.mxu0 0
    %1333 = vmatprep.subr.bf16.mxu0 0
    %1334 = vmatpush2.bf16.msra.mxu0 0
    %1335 = vmatprep.subr.bf16.mxu0 0
    %1336 = vmatpush2.bf16.msra.mxu0 0
    %1337 = vmatprep.subr.bf16.mxu0 0
    %1338 = vmatpush2.bf16.msra.mxu0 0
    %1339 = vmatprep.subr.bf16.mxu0 0
    %1340 = vmatpush2.bf16.msra.mxu0 0
    %1341 = vmatprep.subr.bf16.mxu0 0
    %1342 = vmatpush2.bf16.msra.mxu0 0
    %1343 = vmatprep.subr.bf16.mxu0 0
    %1344 = vmatpush2.bf16.msra.mxu0 0
    %1345 = vmatprep.subr.bf16.mxu0 0
    %1346 = vmatpush2.bf16.msra.mxu0 0
    %1347 = vmatprep.mubr.bf16.mxu0 0
    %1348 = vmatmul.mubr.bf16.gmra.mxu0 %v1042
    %v1349 = vpop.f32.mrf.mxu0
    %v1350 = vadd.f32 0.0, %v1349
    %v1351 = vpop.f32.mrf.mxu0
    %v1352 = vadd.f32 0.0, %v1351
    %v1353 = vpop.f32.mrf.mxu0
    %v1354 = vadd.f32 0.0, %v1353
    %v1355 = vpop.f32.mrf.mxu0
    %v1356 = vadd.f32 0.0, %v1355
    %1357 = vmatprep.mubr.bf16.mxu0 0
    %1358 = vmatmul.mubr.bf16.gmra.mxu0 %v1045
    %v1359 = vpop.f32.mrf.mxu0
    %v1360 = vadd.f32 0.0, %v1359
    %v1361 = vpop.f32.mrf.mxu0
    %v1362 = vadd.f32 0.0, %v1361
    %v1363 = vpop.f32.mrf.mxu0
    %v1364 = vadd.f32 0.0, %v1363
    %v1365 = vpop.f32.mrf.mxu0
    %v1366 = vadd.f32 0.0, %v1365
    %1367 = vdwg.mxu0
    %1368 = vmatprep.subr.bf16.mxu0 0
    %1369 = vmatpush1.bf16.msra.mxu0 0
    %1370 = vmatprep.subr.bf16.mxu0 0
    %1371 = vmatpush1.bf16.msra.mxu0 0
    %1372 = vmatprep.subr.bf16.mxu0 0
    %1373 = vmatpush1.bf16.msra.mxu0 0
    %1374 = vmatprep.subr.bf16.mxu0 0
    %1375 = vmatpush1.bf16.msra.mxu0 0
    %1376 = vmatprep.subr.bf16.mxu0 0
    %1377 = vmatpush1.bf16.msra.mxu0 0
    %1378 = vmatprep.subr.bf16.mxu0 0
    %1379 = vmatpush1.bf16.msra.mxu0 0
    %1380 = vmatprep.subr.bf16.mxu0 0
    %1381 = vmatpush1.bf16.msra.mxu0 0
    %1382 = vmatprep.subr.bf16.mxu0 %v160
    %1383 = vmatpush1.bf16.msra.mxu0 %v157
    %1384 = vmatprep.subr.bf16.mxu0 0
    %1385 = vmatpush2.bf16.msra.mxu0 0
    %1386 = vmatprep.subr.bf16.mxu0 0
    %1387 = vmatpush2.bf16.msra.mxu0 0
    %1388 = vmatprep.subr.bf16.mxu0 0
    %1389 = vmatpush2.bf16.msra.mxu0 0
    %1390 = vmatprep.subr.bf16.mxu0 0
    %1391 = vmatpush2.bf16.msra.mxu0 0
    %1392 = vmatprep.subr.bf16.mxu0 0
    %1393 = vmatpush2.bf16.msra.mxu0 0
    %1394 = vmatprep.subr.bf16.mxu0 0
    %1395 = vmatpush2.bf16.msra.mxu0 0
    %1396 = vmatprep.subr.bf16.mxu0 0
    %1397 = vmatpush2.bf16.msra.mxu0 0
    %1398 = vmatprep.subr.bf16.mxu0 0
    %1399 = vmatpush2.bf16.msra.mxu0 0
    %1400 = vmatprep.mubr.bf16.mxu0 0
    %1401 = vmatmul.mubr.bf16.gmra.mxu0 %v1042
    %v1402 = vpop.f32.mrf.mxu0
    %v1403 = vadd.f32 0.0, %v1402
    %v1404 = vpop.f32.mrf.mxu0
    %v1405 = vadd.f32 0.0, %v1404
    %v1406 = vpop.f32.mrf.mxu0
    %v1407 = vadd.f32 0.0, %v1406
    %v1408 = vpop.f32.mrf.mxu0
    %v1409 = vadd.f32 0.0, %v1408
    %1410 = vmatprep.mubr.bf16.mxu0 0
    %1411 = vmatmul.mubr.bf16.gmra.mxu0 %v1045
    %v1412 = vpop.f32.mrf.mxu0
    %v1413 = vadd.f32 0.0, %v1412
    %v1414 = vpop.f32.mrf.mxu0
    %v1415 = vadd.f32 0.0, %v1414
    %v1416 = vpop.f32.mrf.mxu0
    %v1417 = vadd.f32 0.0, %v1416
    %v1418 = vpop.f32.mrf.mxu0
    %v1419 = vadd.f32 0.0, %v1418
    %1420 = vdwg.mxu0
    %1421 = vmatprep.subr.bf16.mxu0 0
    %1422 = vmatpush1.bf16.msra.mxu0 0
    %1423 = vmatprep.subr.bf16.mxu0 0
    %1424 = vmatpush1.bf16.msra.mxu0 0
    %1425 = vmatprep.subr.bf16.mxu0 0
    %1426 = vmatpush1.bf16.msra.mxu0 0
    %1427 = vmatprep.subr.bf16.mxu0 0
    %1428 = vmatpush1.bf16.msra.mxu0 0
    %1429 = vmatprep.subr.bf16.mxu0 0
    %1430 = vmatpush1.bf16.msra.mxu0 0
    %1431 = vmatprep.subr.bf16.mxu0 0
    %1432 = vmatpush1.bf16.msra.mxu0 0
    %1433 = vmatprep.subr.bf16.mxu0 0
    %1434 = vmatpush1.bf16.msra.mxu0 0
    %1435 = vmatprep.subr.bf16.mxu0 0
    %1436 = vmatpush1.bf16.msra.mxu0 %v1048
    %1437 = vmatprep.subr.bf16.mxu0 0
    %1438 = vmatpush2.bf16.msra.mxu0 0
    %1439 = vmatprep.subr.bf16.mxu0 0
    %1440 = vmatpush2.bf16.msra.mxu0 0
    %1441 = vmatprep.subr.bf16.mxu0 0
    %1442 = vmatpush2.bf16.msra.mxu0 0
    %1443 = vmatprep.subr.bf16.mxu0 0
    %1444 = vmatpush2.bf16.msra.mxu0 0
    %1445 = vmatprep.subr.bf16.mxu0 0
    %1446 = vmatpush2.bf16.msra.mxu0 0
    %1447 = vmatprep.subr.bf16.mxu0 0
    %1448 = vmatpush2.bf16.msra.mxu0 0
    %1449 = vmatprep.subr.bf16.mxu0 0
    %1450 = vmatpush2.bf16.msra.mxu0 0
    %1451 = vmatprep.subr.bf16.mxu0 0
    %1452 = vmatpush2.bf16.msra.mxu0 0
    %1453 = vmatprep.mubr.bf16.mxu0 0
    %1454 = vmatmul.mubr.bf16.gmra.mxu0 %v1042
    %v1455 = vpop.f32.mrf.mxu0
    %v1456 = vadd.f32 0.0, %v1455
    %v1457 = vpop.f32.mrf.mxu0
    %v1458 = vpop.f32.mrf.mxu0
    %v1459 = vadd.f32 0.0, %v1458
    %v1460 = vpop.f32.mrf.mxu0
    %1461 = vmatprep.mubr.bf16.mxu0 0
    %1462 = vmatmul.mubr.bf16.gmra.mxu0 %v1045
    %v1463 = vpop.f32.mrf.mxu0
    %v1464 = vadd.f32 0.0, %v1463
    %v1465 = vpop.f32.mrf.mxu0
    %v1466 = vpop.f32.mrf.mxu0
    %v1467 = vadd.f32 0.0, %v1466
    %v1468 = vpop.f32.mrf.mxu0
    %1469 = vdwg.mxu0
    %v1470 = vadd.f32 %v638, %v1085
    %v1471 = vadd.f32 %v640, %v1087
    %v1472 = vadd.f32 %v691, %v1138
    %v1473 = vadd.f32 %v693, %v1140
    %v1474 = vadd.f32 %v744, %v1191
    %v1475 = vadd.f32 %v746, %v1193
    %v1476 = vadd.f32 %v797, %v1244
    %v1477 = vadd.f32 %v799, %v1246
    %v1478 = vadd.f32 %v850, %v1297
    %v1479 = vadd.f32 %v852, %v1299
    %v1480 = vadd.f32 %v903, %v1350
    %v1481 = vadd.f32 %v905, %v1352
    %v1482 = vadd.f32 %v956, %v1403
    %v1483 = vadd.f32 %v958, %v1405
    %v1484 = vadd.f32 %v1009, %v1456
    %v1485 = vadd.f32 %v642, %v1089
    %v1486 = vadd.f32 %v644, %v1091
    %v1487 = vadd.f32 %v695, %v1142
    %v1488 = vadd.f32 %v697, %v1144
    %v1489 = vadd.f32 %v748, %v1195
    %v1490 = vadd.f32 %v750, %v1197
    %v1491 = vadd.f32 %v801, %v1248
    %v1492 = vadd.f32 %v803, %v1250
    %v1493 = vadd.f32 %v854, %v1301
    %v1494 = vadd.f32 %v856, %v1303
    %v1495 = vadd.f32 %v907, %v1354
    %v1496 = vadd.f32 %v909, %v1356
    %v1497 = vadd.f32 %v960, %v1407
    %v1498 = vadd.f32 %v962, %v1409
    %v1499 = vadd.f32 %v1012, %v1459
    %v1500 = vadd.f32 %v648, %v1095
    %v1501 = vadd.f32 %v650, %v1097
    %v1502 = vadd.f32 %v701, %v1148
    %v1503 = vadd.f32 %v703, %v1150
    %v1504 = vadd.f32 %v754, %v1201
    %v1505 = vadd.f32 %v756, %v1203
    %v1506 = vadd.f32 %v807, %v1254
    %v1507 = vadd.f32 %v809, %v1256
    %v1508 = vadd.f32 %v860, %v1307
    %v1509 = vadd.f32 %v862, %v1309
    %v1510 = vadd.f32 %v913, %v1360
    %v1511 = vadd.f32 %v915, %v1362
    %v1512 = vadd.f32 %v966, %v1413
    %v1513 = vadd.f32 %v968, %v1415
    %v1514 = vadd.f32 %v1017, %v1464
    %v1515 = vadd.f32 %v652, %v1099
    %v1516 = vadd.f32 %v654, %v1101
    %v1517 = vadd.f32 %v705, %v1152
    %v1518 = vadd.f32 %v707, %v1154
    %v1519 = vadd.f32 %v758, %v1205
    %v1520 = vadd.f32 %v760, %v1207
    %v1521 = vadd.f32 %v811, %v1258
    %v1522 = vadd.f32 %v813, %v1260
    %v1523 = vadd.f32 %v864, %v1311
    %v1524 = vadd.f32 %v866, %v1313
    %v1525 = vadd.f32 %v917, %v1364
    %v1526 = vadd.f32 %v919, %v1366
    %v1527 = vadd.f32 %v970, %v1417
    %v1528 = vadd.f32 %v972, %v1419
    %v1529 = vadd.f32 %v1020, %v1467
    %1531 = vset.pattern.permute.xlu0 0
    %1532 = vperm.xlu0 %1531, %v48
    %v1533 = vpop.permute.xlu0 %1532
    %1536 = vset.pattern.permute.xlu0 0
    %1537 = vperm.xlu0 %1536, %v49
    %v1538 = vpop.permute.xlu0 %1537
    %1541 = vset.pattern.permute.xlu0 0
    %1542 = vperm.xlu0 %1541, %v50
    %v1543 = vpop.permute.xlu0 %1542
    %1546 = vset.pattern.permute.xlu0 0
    %1547 = vperm.xlu0 %1546, %v51
    %v1548 = vpop.permute.xlu0 %1547
    %v1550 = vadd.f32 %v1470, %v1533
    %v1551 = vadd.f32 %v1471, %v1533
    %v1552 = vadd.f32 %v1472, %v1533
    %v1553 = vadd.f32 %v1473, %v1533
    %v1554 = vadd.f32 %v1474, %v1533
    %v1555 = vadd.f32 %v1475, %v1533
    %v1556 = vadd.f32 %v1476, %v1533
    %v1557 = vadd.f32 %v1477, %v1533
    %v1558 = vadd.f32 %v1478, %v1533
    %v1559 = vadd.f32 %v1479, %v1533
    %v1560 = vadd.f32 %v1480, %v1533
    %v1561 = vadd.f32 %v1481, %v1533
    %v1562 = vadd.f32 %v1482, %v1533
    %v1563 = vadd.f32 %v1483, %v1533
    %v1564 = vadd.f32 %v1484, %v1533
    %v1565 = vadd.f32 %v1485, %v1538
    %v1566 = vadd.f32 %v1486, %v1538
    %v1567 = vadd.f32 %v1487, %v1538
    %v1568 = vadd.f32 %v1488, %v1538
    %v1569 = vadd.f32 %v1489, %v1538
    %v1570 = vadd.f32 %v1490, %v1538
    %v1571 = vadd.f32 %v1491, %v1538
    %v1572 = vadd.f32 %v1492, %v1538
    %v1573 = vadd.f32 %v1493, %v1538
    %v1574 = vadd.f32 %v1494, %v1538
    %v1575 = vadd.f32 %v1495, %v1538
    %v1576 = vadd.f32 %v1496, %v1538
    %v1577 = vadd.f32 %v1497, %v1538
    %v1578 = vadd.f32 %v1498, %v1538
    %v1579 = vadd.f32 %v1499, %v1538
    %v1580 = vadd.f32 %v1500, %v1543
    %v1581 = vadd.f32 %v1501, %v1543
    %v1582 = vadd.f32 %v1502, %v1543
    %v1583 = vadd.f32 %v1503, %v1543
    %v1584 = vadd.f32 %v1504, %v1543
    %v1585 = vadd.f32 %v1505, %v1543
    %v1586 = vadd.f32 %v1506, %v1543
    %v1587 = vadd.f32 %v1507, %v1543
    %v1588 = vadd.f32 %v1508, %v1543
    %v1589 = vadd.f32 %v1509, %v1543
    %v1590 = vadd.f32 %v1510, %v1543
    %v1591 = vadd.f32 %v1511, %v1543
    %v1592 = vadd.f32 %v1512, %v1543
    %v1593 = vadd.f32 %v1513, %v1543
    %v1594 = vadd.f32 %v1514, %v1543
    %v1595 = vadd.f32 %v1515, %v1548
    %v1596 = vadd.f32 %v1516, %v1548
    %v1597 = vadd.f32 %v1517, %v1548
    %v1598 = vadd.f32 %v1518, %v1548
    %v1599 = vadd.f32 %v1519, %v1548
    %v1600 = vadd.f32 %v1520, %v1548
    %v1601 = vadd.f32 %v1521, %v1548
    %v1602 = vadd.f32 %v1522, %v1548
    %v1603 = vadd.f32 %v1523, %v1548
    %v1604 = vadd.f32 %v1524, %v1548
    %v1605 = vadd.f32 %v1525, %v1548
    %v1606 = vadd.f32 %v1526, %v1548
    %v1607 = vadd.f32 %v1527, %v1548
    %v1608 = vadd.f32 %v1528, %v1548
    %v1609 = vadd.f32 %v1529, %v1548
    %vm1610 = vcmp.gt.f32.partialorder %v1550, 0.0
    %vm1611 = vcmp.gt.f32.partialorder %v1551, 0.0
    %vm1612 = vcmp.gt.f32.partialorder %v1552, 0.0
    %vm1613 = vcmp.gt.f32.partialorder %v1553, 0.0
    %vm1614 = vcmp.gt.f32.partialorder %v1554, 0.0
    %vm1615 = vcmp.gt.f32.partialorder %v1555, 0.0
    %vm1616 = vcmp.gt.f32.partialorder %v1556, 0.0
    %vm1617 = vcmp.gt.f32.partialorder %v1557, 0.0
    %vm1618 = vcmp.gt.f32.partialorder %v1558, 0.0
    %vm1619 = vcmp.gt.f32.partialorder %v1559, 0.0
    %vm1620 = vcmp.gt.f32.partialorder %v1560, 0.0
    %vm1621 = vcmp.gt.f32.partialorder %v1561, 0.0
    %vm1622 = vcmp.gt.f32.partialorder %v1562, 0.0
    %vm1623 = vcmp.gt.f32.partialorder %v1563, 0.0
    %vm1624 = vcmp.gt.f32.partialorder %v1564, 0.0
    %vm1625 = vcmp.gt.f32.partialorder %v1565, 0.0
    %vm1626 = vcmp.gt.f32.partialorder %v1566, 0.0
    %vm1627 = vcmp.gt.f32.partialorder %v1567, 0.0
    %vm1628 = vcmp.gt.f32.partialorder %v1568, 0.0
    %vm1629 = vcmp.gt.f32.partialorder %v1569, 0.0
    %vm1630 = vcmp.gt.f32.partialorder %v1570, 0.0
    %vm1631 = vcmp.gt.f32.partialorder %v1571, 0.0
    %vm1632 = vcmp.gt.f32.partialorder %v1572, 0.0
    %vm1633 = vcmp.gt.f32.partialorder %v1573, 0.0
    %vm1634 = vcmp.gt.f32.partialorder %v1574, 0.0
    %vm1635 = vcmp.gt.f32.partialorder %v1575, 0.0
    %vm1636 = vcmp.gt.f32.partialorder %v1576, 0.0
    %vm1637 = vcmp.gt.f32.partialorder %v1577, 0.0
    %vm1638 = vcmp.gt.f32.partialorder %v1578, 0.0
    %vm1639 = vcmp.gt.f32.partialorder %v1579, 0.0
    %vm1640 = vcmp.gt.f32.partialorder %v1580, 0.0
    %vm1641 = vcmp.gt.f32.partialorder %v1581, 0.0
    %vm1642 = vcmp.gt.f32.partialorder %v1582, 0.0
    %vm1643 = vcmp.gt.f32.partialorder %v1583, 0.0
    %vm1644 = vcmp.gt.f32.partialorder %v1584, 0.0
    %vm1645 = vcmp.gt.f32.partialorder %v1585, 0.0
    %vm1646 = vcmp.gt.f32.partialorder %v1586, 0.0
    %vm1647 = vcmp.gt.f32.partialorder %v1587, 0.0
    %vm1648 = vcmp.gt.f32.partialorder %v1588, 0.0
    %vm1649 = vcmp.gt.f32.partialorder %v1589, 0.0
    %vm1650 = vcmp.gt.f32.partialorder %v1590, 0.0
    %vm1651 = vcmp.gt.f32.partialorder %v1591, 0.0
    %vm1652 = vcmp.gt.f32.partialorder %v1592, 0.0
    %vm1653 = vcmp.gt.f32.partialorder %v1593, 0.0
    %vm1654 = vcmp.gt.f32.partialorder %v1594, 0.0
    %vm1655 = vcmp.gt.f32.partialorder %v1595, 0.0
    %vm1656 = vcmp.gt.f32.partialorder %v1596, 0.0
    %vm1657 = vcmp.gt.f32.partialorder %v1597, 0.0
    %vm1658 = vcmp.gt.f32.partialorder %v1598, 0.0
    %vm1659 = vcmp.gt.f32.partialorder %v1599, 0.0
    %vm1660 = vcmp.gt.f32.partialorder %v1600, 0.0
    %vm1661 = vcmp.gt.f32.partialorder %v1601, 0.0
    %vm1662 = vcmp.gt.f32.partialorder %v1602, 0.0
    %vm1663 = vcmp.gt.f32.partialorder %v1603, 0.0
    %vm1664 = vcmp.gt.f32.partialorder %v1604, 0.0
    %vm1665 = vcmp.gt.f32.partialorder %v1605, 0.0
    %vm1666 = vcmp.gt.f32.partialorder %v1606, 0.0
    %vm1667 = vcmp.gt.f32.partialorder %v1607, 0.0
    %vm1668 = vcmp.gt.f32.partialorder %v1608, 0.0
    %vm1669 = vcmp.gt.f32.partialorder %v1609, 0.0
    %v1670 = vmin.f32 %v1550, 0.0
    %v1671 = vmin.f32 %v1551, 0.0
    %v1672 = vmin.f32 %v1552, 0.0
    %v1673 = vmin.f32 %v1553, 0.0
    %v1674 = vmin.f32 %v1554, 0.0
    %v1675 = vmin.f32 %v1555, 0.0
    %v1676 = vmin.f32 %v1556, 0.0
    %v1677 = vmin.f32 %v1557, 0.0
    %v1678 = vmin.f32 %v1558, 0.0
    %v1679 = vmin.f32 %v1559, 0.0
    %v1680 = vmin.f32 %v1560, 0.0
    %v1681 = vmin.f32 %v1561, 0.0
    %v1682 = vmin.f32 %v1562, 0.0
    %v1683 = vmin.f32 %v1563, 0.0
    %v1684 = vmin.f32 %v1564, 0.0
    %v1685 = vmin.f32 %v1565, 0.0
    %v1686 = vmin.f32 %v1566, 0.0
    %v1687 = vmin.f32 %v1567, 0.0
    %v1688 = vmin.f32 %v1568, 0.0
    %v1689 = vmin.f32 %v1569, 0.0
    %v1690 = vmin.f32 %v1570, 0.0
    %v1691 = vmin.f32 %v1571, 0.0
    %v1692 = vmin.f32 %v1572, 0.0
    %v1693 = vmin.f32 %v1573, 0.0
    %v1694 = vmin.f32 %v1574, 0.0
    %v1695 = vmin.f32 %v1575, 0.0
    %v1696 = vmin.f32 %v1576, 0.0
    %v1697 = vmin.f32 %v1577, 0.0
    %v1698 = vmin.f32 %v1578, 0.0
    %v1699 = vmin.f32 %v1579, 0.0
    %v1700 = vmin.f32 %v1580, 0.0
    %v1701 = vmin.f32 %v1581, 0.0
    %v1702 = vmin.f32 %v1582, 0.0
    %v1703 = vmin.f32 %v1583, 0.0
    %v1704 = vmin.f32 %v1584, 0.0
    %v1705 = vmin.f32 %v1585, 0.0
    %v1706 = vmin.f32 %v1586, 0.0
    %v1707 = vmin.f32 %v1587, 0.0
    %v1708 = vmin.f32 %v1588, 0.0
    %v1709 = vmin.f32 %v1589, 0.0
    %v1710 = vmin.f32 %v1590, 0.0
    %v1711 = vmin.f32 %v1591, 0.0
    %v1712 = vmin.f32 %v1592, 0.0
    %v1713 = vmin.f32 %v1593, 0.0
    %v1714 = vmin.f32 %v1594, 0.0
    %v1715 = vmin.f32 %v1595, 0.0
    %v1716 = vmin.f32 %v1596, 0.0
    %v1717 = vmin.f32 %v1597, 0.0
    %v1718 = vmin.f32 %v1598, 0.0
    %v1719 = vmin.f32 %v1599, 0.0
    %v1720 = vmin.f32 %v1600, 0.0
    %v1721 = vmin.f32 %v1601, 0.0
    %v1722 = vmin.f32 %v1602, 0.0
    %v1723 = vmin.f32 %v1603, 0.0
    %v1724 = vmin.f32 %v1604, 0.0
    %v1725 = vmin.f32 %v1605, 0.0
    %v1726 = vmin.f32 %v1606, 0.0
    %v1727 = vmin.f32 %v1607, 0.0
    %v1728 = vmin.f32 %v1608, 0.0
    %v1729 = vmin.f32 %v1609, 0.0
    %v1730 = vmul.f32 %v1670, 1.442695
    %v1731 = vpow.pop %v1730
    %v1732 = vmul.f32 %v1671, 1.442695
    %v1733 = vpow.pop %v1732
    %v1734 = vmul.f32 %v1672, 1.442695
    %v1735 = vpow.pop %v1734
    %v1736 = vmul.f32 %v1673, 1.442695
    %v1737 = vpow.pop %v1736
    %v1738 = vmul.f32 %v1674, 1.442695
    %v1739 = vpow.pop %v1738
    %v1740 = vmul.f32 %v1675, 1.442695
    %v1741 = vpow.pop %v1740
    %v1742 = vmul.f32 %v1676, 1.442695
    %v1743 = vpow.pop %v1742
    %v1744 = vmul.f32 %v1677, 1.442695
    %v1745 = vpow.pop %v1744
    %v1746 = vmul.f32 %v1678, 1.442695
    %v1747 = vpow.pop %v1746
    %v1748 = vmul.f32 %v1679, 1.442695
    %v1749 = vpow.pop %v1748
    %v1750 = vmul.f32 %v1680, 1.442695
    %v1751 = vpow.pop %v1750
    %v1752 = vmul.f32 %v1681, 1.442695
    %v1753 = vpow.pop %v1752
    %v1754 = vmul.f32 %v1682, 1.442695
    %v1755 = vpow.pop %v1754
    %v1756 = vmul.f32 %v1683, 1.442695
    %v1757 = vpow.pop %v1756
    %v1758 = vmul.f32 %v1684, 1.442695
    %v1759 = vpow.pop %v1758
    %v1760 = vmul.f32 %v1685, 1.442695
    %v1761 = vpow.pop %v1760
    %v1762 = vmul.f32 %v1686, 1.442695
    %v1763 = vpow.pop %v1762
    %v1764 = vmul.f32 %v1687, 1.442695
    %v1765 = vpow.pop %v1764
    %v1766 = vmul.f32 %v1688, 1.442695
    %v1767 = vpow.pop %v1766
    %v1768 = vmul.f32 %v1689, 1.442695
    %v1769 = vpow.pop %v1768
    %v1770 = vmul.f32 %v1690, 1.442695
    %v1771 = vpow.pop %v1770
    %v1772 = vmul.f32 %v1691, 1.442695
    %v1773 = vpow.pop %v1772
    %v1774 = vmul.f32 %v1692, 1.442695
    %v1775 = vpow.pop %v1774
    %v1776 = vmul.f32 %v1693, 1.442695
    %v1777 = vpow.pop %v1776
    %v1778 = vmul.f32 %v1694, 1.442695
    %v1779 = vpow.pop %v1778
    %v1780 = vmul.f32 %v1695, 1.442695
    %v1781 = vpow.pop %v1780
    %v1782 = vmul.f32 %v1696, 1.442695
    %v1783 = vpow.pop %v1782
    %v1784 = vmul.f32 %v1697, 1.442695
    %v1785 = vpow.pop %v1784
    %v1786 = vmul.f32 %v1698, 1.442695
    %v1787 = vpow.pop %v1786
    %v1788 = vmul.f32 %v1699, 1.442695
    %v1789 = vpow.pop %v1788
    %v1790 = vmul.f32 %v1700, 1.442695
    %v1791 = vpow.pop %v1790
    %v1792 = vmul.f32 %v1701, 1.442695
    %v1793 = vpow.pop %v1792
    %v1794 = vmul.f32 %v1702, 1.442695
    %v1795 = vpow.pop %v1794
    %v1796 = vmul.f32 %v1703, 1.442695
    %v1797 = vpow.pop %v1796
    %v1798 = vmul.f32 %v1704, 1.442695
    %v1799 = vpow.pop %v1798
    %v1800 = vmul.f32 %v1705, 1.442695
    %v1801 = vpow.pop %v1800
    %v1802 = vmul.f32 %v1706, 1.442695
    %v1803 = vpow.pop %v1802
    %v1804 = vmul.f32 %v1707, 1.442695
    %v1805 = vpow.pop %v1804
    %v1806 = vmul.f32 %v1708, 1.442695
    %v1807 = vpow.pop %v1806
    %v1808 = vmul.f32 %v1709, 1.442695
    %v1809 = vpow.pop %v1808
    %v1810 = vmul.f32 %v1710, 1.442695
    %v1811 = vpow.pop %v1810
    %v1812 = vmul.f32 %v1711, 1.442695
    %v1813 = vpow.pop %v1812
    %v1814 = vmul.f32 %v1712, 1.442695
    %v1815 = vpow.pop %v1814
    %v1816 = vmul.f32 %v1713, 1.442695
    %v1817 = vpow.pop %v1816
    %v1818 = vmul.f32 %v1714, 1.442695
    %v1819 = vpow.pop %v1818
    %v1820 = vmul.f32 %v1715, 1.442695
    %v1821 = vpow.pop %v1820
    %v1822 = vmul.f32 %v1716, 1.442695
    %v1823 = vpow.pop %v1822
    %v1824 = vmul.f32 %v1717, 1.442695
    %v1825 = vpow.pop %v1824
    %v1826 = vmul.f32 %v1718, 1.442695
    %v1827 = vpow.pop %v1826
    %v1828 = vmul.f32 %v1719, 1.442695
    %v1829 = vpow.pop %v1828
    %v1830 = vmul.f32 %v1720, 1.442695
    %v1831 = vpow.pop %v1830
    %v1832 = vmul.f32 %v1721, 1.442695
    %v1833 = vpow.pop %v1832
    %v1834 = vmul.f32 %v1722, 1.442695
    %v1835 = vpow.pop %v1834
    %v1836 = vmul.f32 %v1723, 1.442695
    %v1837 = vpow.pop %v1836
    %v1838 = vmul.f32 %v1724, 1.442695
    %v1839 = vpow.pop %v1838
    %v1840 = vmul.f32 %v1725, 1.442695
    %v1841 = vpow.pop %v1840
    %v1842 = vmul.f32 %v1726, 1.442695
    %v1843 = vpow.pop %v1842
    %v1844 = vmul.f32 %v1727, 1.442695
    %v1845 = vpow.pop %v1844
    %v1846 = vmul.f32 %v1728, 1.442695
    %v1847 = vpow.pop %v1846
    %v1848 = vmul.f32 %v1729, 1.442695
    %v1849 = vpow.pop %v1848
    %v1850 = vsub.f32 %v1731, 1.0
    %v1851 = vsub.f32 %v1733, 1.0
    %v1852 = vsub.f32 %v1735, 1.0
    %v1853 = vsub.f32 %v1737, 1.0
    %v1854 = vsub.f32 %v1739, 1.0
    %v1855 = vsub.f32 %v1741, 1.0
    %v1856 = vsub.f32 %v1743, 1.0
    %v1857 = vsub.f32 %v1745, 1.0
    %v1858 = vsub.f32 %v1747, 1.0
    %v1859 = vsub.f32 %v1749, 1.0
    %v1860 = vsub.f32 %v1751, 1.0
    %v1861 = vsub.f32 %v1753, 1.0
    %v1862 = vsub.f32 %v1755, 1.0
    %v1863 = vsub.f32 %v1757, 1.0
    %v1864 = vsub.f32 %v1759, 1.0
    %v1865 = vsub.f32 %v1761, 1.0
    %v1866 = vsub.f32 %v1763, 1.0
    %v1867 = vsub.f32 %v1765, 1.0
    %v1868 = vsub.f32 %v1767, 1.0
    %v1869 = vsub.f32 %v1769, 1.0
    %v1870 = vsub.f32 %v1771, 1.0
    %v1871 = vsub.f32 %v1773, 1.0
    %v1872 = vsub.f32 %v1775, 1.0
    %v1873 = vsub.f32 %v1777, 1.0
    %v1874 = vsub.f32 %v1779, 1.0
    %v1875 = vsub.f32 %v1781, 1.0
    %v1876 = vsub.f32 %v1783, 1.0
    %v1877 = vsub.f32 %v1785, 1.0
    %v1878 = vsub.f32 %v1787, 1.0
    %v1879 = vsub.f32 %v1789, 1.0
    %v1880 = vsub.f32 %v1791, 1.0
    %v1881 = vsub.f32 %v1793, 1.0
    %v1882 = vsub.f32 %v1795, 1.0
    %v1883 = vsub.f32 %v1797, 1.0
    %v1884 = vsub.f32 %v1799, 1.0
    %v1885 = vsub.f32 %v1801, 1.0
    %v1886 = vsub.f32 %v1803, 1.0
    %v1887 = vsub.f32 %v1805, 1.0
    %v1888 = vsub.f32 %v1807, 1.0
    %v1889 = vsub.f32 %v1809, 1.0
    %v1890 = vsub.f32 %v1811, 1.0
    %v1891 = vsub.f32 %v1813, 1.0
    %v1892 = vsub.f32 %v1815, 1.0
    %v1893 = vsub.f32 %v1817, 1.0
    %v1894 = vsub.f32 %v1819, 1.0
    %v1895 = vsub.f32 %v1821, 1.0
    %v1896 = vsub.f32 %v1823, 1.0
    %v1897 = vsub.f32 %v1825, 1.0
    %v1898 = vsub.f32 %v1827, 1.0
    %v1899 = vsub.f32 %v1829, 1.0
    %v1900 = vsub.f32 %v1831, 1.0
    %v1901 = vsub.f32 %v1833, 1.0
    %v1902 = vsub.f32 %v1835, 1.0
    %v1903 = vsub.f32 %v1837, 1.0
    %v1904 = vsub.f32 %v1839, 1.0
    %v1905 = vsub.f32 %v1841, 1.0
    %v1906 = vsub.f32 %v1843, 1.0
    %v1907 = vsub.f32 %v1845, 1.0
    %v1908 = vsub.f32 %v1847, 1.0
    %v1909 = vsub.f32 %v1849, 1.0
    %v1910 = vsel %vm1610, %v1550, %v1850
    %v1911 = vsel %vm1611, %v1551, %v1851
    %v1912 = vsel %vm1612, %v1552, %v1852
    %v1913 = vsel %vm1613, %v1553, %v1853
    %v1914 = vsel %vm1614, %v1554, %v1854
    %v1915 = vsel %vm1615, %v1555, %v1855
    %v1916 = vsel %vm1616, %v1556, %v1856
    %v1917 = vsel %vm1617, %v1557, %v1857
    %v1918 = vsel %vm1618, %v1558, %v1858
    %v1919 = vsel %vm1619, %v1559, %v1859
    %v1920 = vsel %vm1620, %v1560, %v1860
    %v1921 = vsel %vm1621, %v1561, %v1861
    %v1922 = vsel %vm1622, %v1562, %v1862
    %v1923 = vsel %vm1623, %v1563, %v1863
    %v1924 = vsel %vm1624, %v1564, %v1864
    %v1925 = vsel %vm1625, %v1565, %v1865
    %v1926 = vsel %vm1626, %v1566, %v1866
    %v1927 = vsel %vm1627, %v1567, %v1867
    %v1928 = vsel %vm1628, %v1568, %v1868
    %v1929 = vsel %vm1629, %v1569, %v1869
    %v1930 = vsel %vm1630, %v1570, %v1870
    %v1931 = vsel %vm1631, %v1571, %v1871
    %v1932 = vsel %vm1632, %v1572, %v1872
    %v1933 = vsel %vm1633, %v1573, %v1873
    %v1934 = vsel %vm1634, %v1574, %v1874
    %v1935 = vsel %vm1635, %v1575, %v1875
    %v1936 = vsel %vm1636, %v1576, %v1876
    %v1937 = vsel %vm1637, %v1577, %v1877
    %v1938 = vsel %vm1638, %v1578, %v1878
    %v1939 = vsel %vm1639, %v1579, %v1879
    %v1940 = vsel %vm1640, %v1580, %v1880
    %v1941 = vsel %vm1641, %v1581, %v1881
    %v1942 = vsel %vm1642, %v1582, %v1882
    %v1943 = vsel %vm1643, %v1583, %v1883
    %v1944 = vsel %vm1644, %v1584, %v1884
    %v1945 = vsel %vm1645, %v1585, %v1885
    %v1946 = vsel %vm1646, %v1586, %v1886
    %v1947 = vsel %vm1647, %v1587, %v1887
    %v1948 = vsel %vm1648, %v1588, %v1888
    %v1949 = vsel %vm1649, %v1589, %v1889
    %v1950 = vsel %vm1650, %v1590, %v1890
    %v1951 = vsel %vm1651, %v1591, %v1891
    %v1952 = vsel %vm1652, %v1592, %v1892
    %v1953 = vsel %vm1653, %v1593, %v1893
    %v1954 = vsel %vm1654, %v1594, %v1894
    %v1955 = vsel %vm1655, %v1595, %v1895
    %v1956 = vsel %vm1656, %v1596, %v1896
    %v1957 = vsel %vm1657, %v1597, %v1897
    %v1958 = vsel %vm1658, %v1598, %v1898
    %v1959 = vsel %vm1659, %v1599, %v1899
    %v1960 = vsel %vm1660, %v1600, %v1900
    %v1961 = vsel %vm1661, %v1601, %v1901
    %v1962 = vsel %vm1662, %v1602, %v1902
    %v1963 = vsel %vm1663, %v1603, %v1903
    %v1964 = vsel %vm1664, %v1604, %v1904
    %v1965 = vsel %vm1665, %v1605, %v1905
    %v1966 = vsel %vm1666, %v1606, %v1906
    %v1967 = vsel %vm1667, %v1607, %v1907
    %v1968 = vsel %vm1668, %v1608, %v1908
    %v1969 = vsel %vm1669, %v1609, %v1909
    %v1970 = vpack.c.bf16 %v1925, %v1910
    %v1971 = vpack.c.bf16 %v1926, %v1911
    %v1972 = vpack.c.bf16 %v1927, %v1912
    %v1973 = vpack.c.bf16 %v1928, %v1913
    %v1974 = vpack.c.bf16 %v1929, %v1914
    %v1975 = vpack.c.bf16 %v1930, %v1915
    %v1976 = vpack.c.bf16 %v1931, %v1916
    %v1977 = vpack.c.bf16 %v1932, %v1917
    %v1978 = vpack.c.bf16 %v1933, %v1918
    %v1979 = vpack.c.bf16 %v1934, %v1919
    %v1980 = vpack.c.bf16 %v1935, %v1920
    %v1981 = vpack.c.bf16 %v1936, %v1921
    %v1982 = vpack.c.bf16 %v1937, %v1922
    %v1983 = vpack.c.bf16 %v1938, %v1923
    %v1984 = vpack.c.bf16 %v1939, %v1924
    %v1985 = vpack.c.bf16 %v1955, %v1940
    %v1986 = vpack.c.bf16 %v1956, %v1941
    %v1987 = vpack.c.bf16 %v1957, %v1942
    %v1988 = vpack.c.bf16 %v1958, %v1943
    %v1989 = vpack.c.bf16 %v1959, %v1944
    %v1990 = vpack.c.bf16 %v1960, %v1945
    %v1991 = vpack.c.bf16 %v1961, %v1946
    %v1992 = vpack.c.bf16 %v1962, %v1947
    %v1993 = vpack.c.bf16 %v1963, %v1948
    %v1994 = vpack.c.bf16 %v1964, %v1949
    %v1995 = vpack.c.bf16 %v1965, %v1950
    %v1996 = vpack.c.bf16 %v1966, %v1951
    %v1997 = vpack.c.bf16 %v1967, %v1952
    %v1998 = vpack.c.bf16 %v1968, %v1953
    %v1999 = vpack.c.bf16 %v1969, %v1954
    %s2000 = scalar_lea.vmem %s3, 32
    %v2001 = vld [vmem:[%s2000] sm:$0xff]
    %v2002 = vld [vmem:[%s2000 + $0x8] sm:$0xff]
    %v2003 = vld [vmem:[%s2000 + $0x10] sm:$0xff]
    %v2004 = vld [vmem:[%s2000 + $0x18] sm:$0xff]
    %v2005 = vld [vmem:[%s2] sm:$0xf]
    %v2006 = vld [vmem:[%s2 + $0x4] sm:$0xf]
    %v2007 = vld [vmem:[%s2 + $0x8] sm:$0xf]
    %v2008 = vld [vmem:[%s2 + $0xc] sm:$0xf]
    %s2009 = scalar_lea.vmem %s2, 16
    %v2010 = vld [vmem:[%s2009] sm:$0xf]
    %v2011 = vld [vmem:[%s2009 + $0x4] sm:$0xf]
    %v2012 = vld [vmem:[%s2009 + $0x8] sm:$0xf]
    %v2013 = vld [vmem:[%s2009 + $0xc] sm:$0xf]
    %v2018 = vunpack.c.l.b16 %v2010
    %v2019 = vunpack.c.l.b16 %v2011
    %v2020 = vunpack.c.l.b16 %v2012
    %v2021 = vunpack.c.l.b16 %v2013
    %v2022 = vpack.c.b16 %v2019, %v2018
    %v2023 = vpack.c.b16 %v2021, %v2020
    %vm2024 = vcmask 261120
    %v2026 = vsel %vm2024, %v2022, 0
    %v2029 = vsel %vm2024, %v2023, 0
    %2031 = vmatprep.subr.bf16.mxu0 0
    %2032 = vmatpush1.bf16.msra.mxu0 0
    %2033 = vmatprep.subr.bf16.mxu0 0
    %2034 = vmatpush1.bf16.msra.mxu0 0
    %2035 = vmatprep.subr.bf16.mxu0 0
    %2036 = vmatpush1.bf16.msra.mxu0 0
    %2037 = vmatprep.subr.bf16.mxu0 0
    %2038 = vmatpush1.bf16.msra.mxu0 0
    %2039 = vmatprep.subr.bf16.mxu0 0
    %2040 = vmatpush1.bf16.msra.mxu0 0
    %2041 = vmatprep.subr.bf16.mxu0 0
    %2042 = vmatpush1.bf16.msra.mxu0 0
    %2043 = vmatprep.subr.bf16.mxu0 %v1987
    %2044 = vmatpush1.bf16.msra.mxu0 %v1986
    %2045 = vmatprep.subr.bf16.mxu0 %v1972
    %2046 = vmatpush1.bf16.msra.mxu0 %v1971
    %2047 = vmatprep.subr.bf16.mxu0 0
    %2048 = vmatpush2.bf16.msra.mxu0 0
    %2049 = vmatprep.subr.bf16.mxu0 0
    %2050 = vmatpush2.bf16.msra.mxu0 0
    %2051 = vmatprep.subr.bf16.mxu0 0
    %2052 = vmatpush2.bf16.msra.mxu0 0
    %2053 = vmatprep.subr.bf16.mxu0 0
    %2054 = vmatpush2.bf16.msra.mxu0 0
    %2055 = vmatprep.subr.bf16.mxu0 0
    %2056 = vmatpush2.bf16.msra.mxu0 0
    %2057 = vmatprep.subr.bf16.mxu0 0
    %2058 = vmatpush2.bf16.msra.mxu0 0
    %2059 = vmatprep.subr.bf16.mxu0 0
    %2060 = vmatpush2.bf16.msra.mxu0 0
    %2061 = vmatprep.subr.bf16.mxu0 0
    %2062 = vmatpush2.bf16.msra.mxu0 0
    %2063 = vmatprep.mubr.bf16.mxu0 0
    %2064 = vmatmul.mubr.bf16.gmra.mxu0 %v2026
    %v2065 = vpop.f32.mrf.mxu0
    %v2066 = vadd.f32 0.0, %v2065
    %v2067 = vpop.f32.mrf.mxu0
    %v2068 = vadd.f32 0.0, %v2067
    %v2069 = vpop.f32.mrf.mxu0
    %v2070 = vadd.f32 0.0, %v2069
    %v2071 = vpop.f32.mrf.mxu0
    %v2072 = vadd.f32 0.0, %v2071
    %2073 = vmatprep.mubr.bf16.mxu0 0
    %2074 = vmatmul.mubr.bf16.gmra.mxu0 %v2029
    %v2075 = vpop.f32.mrf.mxu0
    %v2076 = vadd.f32 0.0, %v2075
    %v2077 = vpop.f32.mrf.mxu0
    %v2078 = vadd.f32 0.0, %v2077
    %v2079 = vpop.f32.mrf.mxu0
    %v2080 = vadd.f32 0.0, %v2079
    %v2081 = vpop.f32.mrf.mxu0
    %v2082 = vadd.f32 0.0, %v2081
    %2083 = vdwg.mxu0
    %2084 = vmatprep.subr.bf16.mxu0 0
    %2085 = vmatpush1.bf16.msra.mxu0 0
    %2086 = vmatprep.subr.bf16.mxu0 0
    %2087 = vmatpush1.bf16.msra.mxu0 0
    %2088 = vmatprep.subr.bf16.mxu0 0
    %2089 = vmatpush1.bf16.msra.mxu0 0
    %2090 = vmatprep.subr.bf16.mxu0 0
    %2091 = vmatpush1.bf16.msra.mxu0 0
    %2092 = vmatprep.subr.bf16.mxu0 0
    %2093 = vmatpush1.bf16.msra.mxu0 0
    %2094 = vmatprep.subr.bf16.mxu0 0
    %2095 = vmatpush1.bf16.msra.mxu0 0
    %2096 = vmatprep.subr.bf16.mxu0 %v1989
    %2097 = vmatpush1.bf16.msra.mxu0 %v1988
    %2098 = vmatprep.subr.bf16.mxu0 %v1974
    %2099 = vmatpush1.bf16.msra.mxu0 %v1973
    %2100 = vmatprep.subr.bf16.mxu0 0
    %2101 = vmatpush2.bf16.msra.mxu0 0
    %2102 = vmatprep.subr.bf16.mxu0 0
    %2103 = vmatpush2.bf16.msra.mxu0 0
    %2104 = vmatprep.subr.bf16.mxu0 0
    %2105 = vmatpush2.bf16.msra.mxu0 0
    %2106 = vmatprep.subr.bf16.mxu0 0
    %2107 = vmatpush2.bf16.msra.mxu0 0
    %2108 = vmatprep.subr.bf16.mxu0 0
    %2109 = vmatpush2.bf16.msra.mxu0 0
    %2110 = vmatprep.subr.bf16.mxu0 0
    %2111 = vmatpush2.bf16.msra.mxu0 0
    %2112 = vmatprep.subr.bf16.mxu0 0
    %2113 = vmatpush2.bf16.msra.mxu0 0
    %2114 = vmatprep.subr.bf16.mxu0 0
    %2115 = vmatpush2.bf16.msra.mxu0 0
    %2116 = vmatprep.mubr.bf16.mxu0 0
    %2117 = vmatmul.mubr.bf16.gmra.mxu0 %v2026
    %v2118 = vpop.f32.mrf.mxu0
    %v2119 = vadd.f32 0.0, %v2118
    %v2120 = vpop.f32.mrf.mxu0
    %v2121 = vadd.f32 0.0, %v2120
    %v2122 = vpop.f32.mrf.mxu0
    %v2123 = vadd.f32 0.0, %v2122
    %v2124 = vpop.f32.mrf.mxu0
    %v2125 = vadd.f32 0.0, %v2124
    %2126 = vmatprep.mubr.bf16.mxu0 0
    %2127 = vmatmul.mubr.bf16.gmra.mxu0 %v2029
    %v2128 = vpop.f32.mrf.mxu0
    %v2129 = vadd.f32 0.0, %v2128
    %v2130 = vpop.f32.mrf.mxu0
    %v2131 = vadd.f32 0.0, %v2130
    %v2132 = vpop.f32.mrf.mxu0
    %v2133 = vadd.f32 0.0, %v2132
    %v2134 = vpop.f32.mrf.mxu0
    %v2135 = vadd.f32 0.0, %v2134
    %2136 = vdwg.mxu0
    %2137 = vmatprep.subr.bf16.mxu0 0
    %2138 = vmatpush1.bf16.msra.mxu0 0
    %2139 = vmatprep.subr.bf16.mxu0 0
    %2140 = vmatpush1.bf16.msra.mxu0 0
    %2141 = vmatprep.subr.bf16.mxu0 0
    %2142 = vmatpush1.bf16.msra.mxu0 0
    %2143 = vmatprep.subr.bf16.mxu0 0
    %2144 = vmatpush1.bf16.msra.mxu0 0
    %2145 = vmatprep.subr.bf16.mxu0 0
    %2146 = vmatpush1.bf16.msra.mxu0 0
    %2147 = vmatprep.subr.bf16.mxu0 0
    %2148 = vmatpush1.bf16.msra.mxu0 0
    %2149 = vmatprep.subr.bf16.mxu0 %v1991
    %2150 = vmatpush1.bf16.msra.mxu0 %v1990
    %2151 = vmatprep.subr.bf16.mxu0 %v1976
    %2152 = vmatpush1.bf16.msra.mxu0 %v1975
    %2153 = vmatprep.subr.bf16.mxu0 0
    %2154 = vmatpush2.bf16.msra.mxu0 0
    %2155 = vmatprep.subr.bf16.mxu0 0
    %2156 = vmatpush2.bf16.msra.mxu0 0
    %2157 = vmatprep.subr.bf16.mxu0 0
    %2158 = vmatpush2.bf16.msra.mxu0 0
    %2159 = vmatprep.subr.bf16.mxu0 0
    %2160 = vmatpush2.bf16.msra.mxu0 0
    %2161 = vmatprep.subr.bf16.mxu0 0
    %2162 = vmatpush2.bf16.msra.mxu0 0
    %2163 = vmatprep.subr.bf16.mxu0 0
    %2164 = vmatpush2.bf16.msra.mxu0 0
    %2165 = vmatprep.subr.bf16.mxu0 0
    %2166 = vmatpush2.bf16.msra.mxu0 0
    %2167 = vmatprep.subr.bf16.mxu0 0
    %2168 = vmatpush2.bf16.msra.mxu0 0
    %2169 = vmatprep.mubr.bf16.mxu0 0
    %2170 = vmatmul.mubr.bf16.gmra.mxu0 %v2026
    %v2171 = vpop.f32.mrf.mxu0
    %v2172 = vadd.f32 0.0, %v2171
    %v2173 = vpop.f32.mrf.mxu0
    %v2174 = vadd.f32 0.0, %v2173
    %v2175 = vpop.f32.mrf.mxu0
    %v2176 = vadd.f32 0.0, %v2175
    %v2177 = vpop.f32.mrf.mxu0
    %v2178 = vadd.f32 0.0, %v2177
    %2179 = vmatprep.mubr.bf16.mxu0 0
    %2180 = vmatmul.mubr.bf16.gmra.mxu0 %v2029
    %v2181 = vpop.f32.mrf.mxu0
    %v2182 = vadd.f32 0.0, %v2181
    %v2183 = vpop.f32.mrf.mxu0
    %v2184 = vadd.f32 0.0, %v2183
    %v2185 = vpop.f32.mrf.mxu0
    %v2186 = vadd.f32 0.0, %v2185
    %v2187 = vpop.f32.mrf.mxu0
    %v2188 = vadd.f32 0.0, %v2187
    %2189 = vdwg.mxu0
    %2190 = vmatprep.subr.bf16.mxu0 0
    %2191 = vmatpush1.bf16.msra.mxu0 0
    %2192 = vmatprep.subr.bf16.mxu0 0
    %2193 = vmatpush1.bf16.msra.mxu0 0
    %2194 = vmatprep.subr.bf16.mxu0 0
    %2195 = vmatpush1.bf16.msra.mxu0 0
    %2196 = vmatprep.subr.bf16.mxu0 0
    %2197 = vmatpush1.bf16.msra.mxu0 0
    %2198 = vmatprep.subr.bf16.mxu0 0
    %2199 = vmatpush1.bf16.msra.mxu0 0
    %2200 = vmatprep.subr.bf16.mxu0 0
    %2201 = vmatpush1.bf16.msra.mxu0 0
    %2202 = vmatprep.subr.bf16.mxu0 %v1993
    %2203 = vmatpush1.bf16.msra.mxu0 %v1992
    %2204 = vmatprep.subr.bf16.mxu0 %v1978
    %2205 = vmatpush1.bf16.msra.mxu0 %v1977
    %2206 = vmatprep.subr.bf16.mxu0 0
    %2207 = vmatpush2.bf16.msra.mxu0 0
    %2208 = vmatprep.subr.bf16.mxu0 0
    %2209 = vmatpush2.bf16.msra.mxu0 0
    %2210 = vmatprep.subr.bf16.mxu0 0
    %2211 = vmatpush2.bf16.msra.mxu0 0
    %2212 = vmatprep.subr.bf16.mxu0 0
    %2213 = vmatpush2.bf16.msra.mxu0 0
    %2214 = vmatprep.subr.bf16.mxu0 0
    %2215 = vmatpush2.bf16.msra.mxu0 0
    %2216 = vmatprep.subr.bf16.mxu0 0
    %2217 = vmatpush2.bf16.msra.mxu0 0
    %2218 = vmatprep.subr.bf16.mxu0 0
    %2219 = vmatpush2.bf16.msra.mxu0 0
    %2220 = vmatprep.subr.bf16.mxu0 0
    %2221 = vmatpush2.bf16.msra.mxu0 0
    %2222 = vmatprep.mubr.bf16.mxu0 0
    %2223 = vmatmul.mubr.bf16.gmra.mxu0 %v2026
    %v2224 = vpop.f32.mrf.mxu0
    %v2225 = vadd.f32 0.0, %v2224
    %v2226 = vpop.f32.mrf.mxu0
    %v2227 = vadd.f32 0.0, %v2226
    %v2228 = vpop.f32.mrf.mxu0
    %v2229 = vadd.f32 0.0, %v2228
    %v2230 = vpop.f32.mrf.mxu0
    %v2231 = vadd.f32 0.0, %v2230
    %2232 = vmatprep.mubr.bf16.mxu0 0
    %2233 = vmatmul.mubr.bf16.gmra.mxu0 %v2029
    %v2234 = vpop.f32.mrf.mxu0
    %v2235 = vadd.f32 0.0, %v2234
    %v2236 = vpop.f32.mrf.mxu0
    %v2237 = vadd.f32 0.0, %v2236
    %v2238 = vpop.f32.mrf.mxu0
    %v2239 = vadd.f32 0.0, %v2238
    %v2240 = vpop.f32.mrf.mxu0
    %v2241 = vadd.f32 0.0, %v2240
    %2242 = vdwg.mxu0
    %2243 = vmatprep.subr.bf16.mxu0 0
    %2244 = vmatpush1.bf16.msra.mxu0 0
    %2245 = vmatprep.subr.bf16.mxu0 0
    %2246 = vmatpush1.bf16.msra.mxu0 0
    %2247 = vmatprep.subr.bf16.mxu0 0
    %2248 = vmatpush1.bf16.msra.mxu0 0
    %2249 = vmatprep.subr.bf16.mxu0 0
    %2250 = vmatpush1.bf16.msra.mxu0 0
    %2251 = vmatprep.subr.bf16.mxu0 0
    %2252 = vmatpush1.bf16.msra.mxu0 0
    %2253 = vmatprep.subr.bf16.mxu0 0
    %2254 = vmatpush1.bf16.msra.mxu0 0
    %2255 = vmatprep.subr.bf16.mxu0 %v1995
    %2256 = vmatpush1.bf16.msra.mxu0 %v1994
    %2257 = vmatprep.subr.bf16.mxu0 %v1980
    %2258 = vmatpush1.bf16.msra.mxu0 %v1979
    %2259 = vmatprep.subr.bf16.mxu0 0
    %2260 = vmatpush2.bf16.msra.mxu0 0
    %2261 = vmatprep.subr.bf16.mxu0 0
    %2262 = vmatpush2.bf16.msra.mxu0 0
    %2263 = vmatprep.subr.bf16.mxu0 0
    %2264 = vmatpush2.bf16.msra.mxu0 0
    %2265 = vmatprep.subr.bf16.mxu0 0
    %2266 = vmatpush2.bf16.msra.mxu0 0
    %2267 = vmatprep.subr.bf16.mxu0 0
    %2268 = vmatpush2.bf16.msra.mxu0 0
    %2269 = vmatprep.subr.bf16.mxu0 0
    %2270 = vmatpush2.bf16.msra.mxu0 0
    %2271 = vmatprep.subr.bf16.mxu0 0
    %2272 = vmatpush2.bf16.msra.mxu0 0
    %2273 = vmatprep.subr.bf16.mxu0 0
    %2274 = vmatpush2.bf16.msra.mxu0 0
    %2275 = vmatprep.mubr.bf16.mxu0 0
    %2276 = vmatmul.mubr.bf16.gmra.mxu0 %v2026
    %v2277 = vpop.f32.mrf.mxu0
    %v2278 = vadd.f32 0.0, %v2277
    %v2279 = vpop.f32.mrf.mxu0
    %v2280 = vadd.f32 0.0, %v2279
    %v2281 = vpop.f32.mrf.mxu0
    %v2282 = vadd.f32 0.0, %v2281
    %v2283 = vpop.f32.mrf.mxu0
    %v2284 = vadd.f32 0.0, %v2283
    %2285 = vmatprep.mubr.bf16.mxu0 0
    %2286 = vmatmul.mubr.bf16.gmra.mxu0 %v2029
    %v2287 = vpop.f32.mrf.mxu0
    %v2288 = vadd.f32 0.0, %v2287
    %v2289 = vpop.f32.mrf.mxu0
    %v2290 = vadd.f32 0.0, %v2289
    %v2291 = vpop.f32.mrf.mxu0
    %v2292 = vadd.f32 0.0, %v2291
    %v2293 = vpop.f32.mrf.mxu0
    %v2294 = vadd.f32 0.0, %v2293
    %2295 = vdwg.mxu0
    %2296 = vmatprep.subr.bf16.mxu0 0
    %2297 = vmatpush1.bf16.msra.mxu0 0
    %2298 = vmatprep.subr.bf16.mxu0 0
    %2299 = vmatpush1.bf16.msra.mxu0 0
    %2300 = vmatprep.subr.bf16.mxu0 0
    %2301 = vmatpush1.bf16.msra.mxu0 0
    %2302 = vmatprep.subr.bf16.mxu0 0
    %2303 = vmatpush1.bf16.msra.mxu0 0
    %2304 = vmatprep.subr.bf16.mxu0 0
    %2305 = vmatpush1.bf16.msra.mxu0 0
    %2306 = vmatprep.subr.bf16.mxu0 0
    %2307 = vmatpush1.bf16.msra.mxu0 0
    %2308 = vmatprep.subr.bf16.mxu0 %v1997
    %2309 = vmatpush1.bf16.msra.mxu0 %v1996
    %2310 = vmatprep.subr.bf16.mxu0 %v1982
    %2311 = vmatpush1.bf16.msra.mxu0 %v1981
    %2312 = vmatprep.subr.bf16.mxu0 0
    %2313 = vmatpush2.bf16.msra.mxu0 0
    %2314 = vmatprep.subr.bf16.mxu0 0
    %2315 = vmatpush2.bf16.msra.mxu0 0
    %2316 = vmatprep.subr.bf16.mxu0 0
    %2317 = vmatpush2.bf16.msra.mxu0 0
    %2318 = vmatprep.subr.bf16.mxu0 0
    %2319 = vmatpush2.bf16.msra.mxu0 0
    %2320 = vmatprep.subr.bf16.mxu0 0
    %2321 = vmatpush2.bf16.msra.mxu0 0
    %2322 = vmatprep.subr.bf16.mxu0 0
    %2323 = vmatpush2.bf16.msra.mxu0 0
    %2324 = vmatprep.subr.bf16.mxu0 0
    %2325 = vmatpush2.bf16.msra.mxu0 0
    %2326 = vmatprep.subr.bf16.mxu0 0
    %2327 = vmatpush2.bf16.msra.mxu0 0
    %2328 = vmatprep.mubr.bf16.mxu0 0
    %2329 = vmatmul.mubr.bf16.gmra.mxu0 %v2026
    %v2330 = vpop.f32.mrf.mxu0
    %v2331 = vadd.f32 0.0, %v2330
    %v2332 = vpop.f32.mrf.mxu0
    %v2333 = vpop.f32.mrf.mxu0
    %v2334 = vadd.f32 0.0, %v2333
    %v2335 = vpop.f32.mrf.mxu0
    %2336 = vmatprep.mubr.bf16.mxu0 0
    %2337 = vmatmul.mubr.bf16.gmra.mxu0 %v2029
    %v2338 = vpop.f32.mrf.mxu0
    %v2339 = vadd.f32 0.0, %v2338
    %v2340 = vpop.f32.mrf.mxu0
    %v2341 = vpop.f32.mrf.mxu0
    %v2342 = vadd.f32 0.0, %v2341
    %v2343 = vpop.f32.mrf.mxu0
    %2344 = vdwg.mxu0
    %2345 = vmatprep.subr.bf16.mxu0 0
    %2346 = vmatpush1.bf16.msra.mxu0 0
    %2347 = vmatprep.subr.bf16.mxu0 0
    %2348 = vmatpush1.bf16.msra.mxu0 0
    %2349 = vmatprep.subr.bf16.mxu0 0
    %2350 = vmatpush1.bf16.msra.mxu0 0
    %2351 = vmatprep.subr.bf16.mxu0 0
    %2352 = vmatpush1.bf16.msra.mxu0 0
    %2353 = vmatprep.subr.bf16.mxu0 0
    %2354 = vmatpush1.bf16.msra.mxu0 0
    %2355 = vmatprep.subr.bf16.mxu0 0
    %2356 = vmatpush1.bf16.msra.mxu0 0
    %2357 = vmatprep.subr.bf16.mxu0 0
    %2358 = vmatpush1.bf16.msra.mxu0 %v1998
    %2359 = vmatprep.subr.bf16.mxu0 0
    %2360 = vmatpush1.bf16.msra.mxu0 %v1983
    %2361 = vmatprep.subr.bf16.mxu0 0
    %2362 = vmatpush2.bf16.msra.mxu0 0
    %2363 = vmatprep.subr.bf16.mxu0 0
    %2364 = vmatpush2.bf16.msra.mxu0 0
    %2365 = vmatprep.subr.bf16.mxu0 0
    %2366 = vmatpush2.bf16.msra.mxu0 0
    %2367 = vmatprep.subr.bf16.mxu0 0
    %2368 = vmatpush2.bf16.msra.mxu0 0
    %2369 = vmatprep.subr.bf16.mxu0 0
    %2370 = vmatpush2.bf16.msra.mxu0 0
    %2371 = vmatprep.subr.bf16.mxu0 0
    %2372 = vmatpush2.bf16.msra.mxu0 0
    %2373 = vmatprep.subr.bf16.mxu0 0
    %2374 = vmatpush2.bf16.msra.mxu0 0
    %2375 = vmatprep.subr.bf16.mxu0 0
    %2376 = vmatpush2.bf16.msra.mxu0 0
    %2377 = vmatprep.mubr.bf16.mxu0 0
    %2378 = vmatmul.mubr.bf16.gmra.mxu0 %v2026
    %v2379 = vpop.f32.mrf.mxu0
    %v2380 = vadd.f32 0.0, %v2379
    %v2381 = vpop.f32.mrf.mxu0
    %v2382 = vpop.f32.mrf.mxu0
    %v2383 = vadd.f32 0.0, %v2382
    %v2384 = vpop.f32.mrf.mxu0
    %2385 = vmatprep.mubr.bf16.mxu0 0
    %2386 = vmatmul.mubr.bf16.gmra.mxu0 %v2029
    %v2387 = vpop.f32.mrf.mxu0
    %v2388 = vadd.f32 0.0, %v2387
    %v2389 = vpop.f32.mrf.mxu0
    %v2390 = vpop.f32.mrf.mxu0
    %v2391 = vadd.f32 0.0, %v2390
    %v2392 = vpop.f32.mrf.mxu0
    %2393 = vdwg.mxu0
    %v2398 = vunpack.c.l.b16 %v2005
    %v2399 = vunpack.c.l.b16 %v2006
    %v2400 = vunpack.c.l.b16 %v2007
    %v2401 = vunpack.c.l.b16 %v2008
    %v2402 = vpack.c.b16 %v2399, %v2398
    %v2403 = vpack.c.b16 %v2401, %v2400
    %v2405 = vsel %vm2024, %v2402, 0
    %v2408 = vsel %vm2024, %v2403, 0
    %2410 = vmatprep.subr.bf16.mxu0 0
    %2411 = vmatpush1.bf16.msra.mxu0 0
    %2412 = vmatprep.subr.bf16.mxu0 0
    %2413 = vmatpush1.bf16.msra.mxu0 0
    %2414 = vmatprep.subr.bf16.mxu0 0
    %2415 = vmatpush1.bf16.msra.mxu0 0
    %2416 = vmatprep.subr.bf16.mxu0 0
    %2417 = vmatpush1.bf16.msra.mxu0 0
    %2418 = vmatprep.subr.bf16.mxu0 0
    %2419 = vmatpush1.bf16.msra.mxu0 0
    %2420 = vmatprep.subr.bf16.mxu0 0
    %2421 = vmatpush1.bf16.msra.mxu0 0
    %2422 = vmatprep.subr.bf16.mxu0 %v1986
    %2423 = vmatpush1.bf16.msra.mxu0 %v1985
    %2424 = vmatprep.subr.bf16.mxu0 %v1971
    %2425 = vmatpush1.bf16.msra.mxu0 %v1970
    %2426 = vmatprep.subr.bf16.mxu0 0
    %2427 = vmatpush2.bf16.msra.mxu0 0
    %2428 = vmatprep.subr.bf16.mxu0 0
    %2429 = vmatpush2.bf16.msra.mxu0 0
    %2430 = vmatprep.subr.bf16.mxu0 0
    %2431 = vmatpush2.bf16.msra.mxu0 0
    %2432 = vmatprep.subr.bf16.mxu0 0
    %2433 = vmatpush2.bf16.msra.mxu0 0
    %2434 = vmatprep.subr.bf16.mxu0 0
    %2435 = vmatpush2.bf16.msra.mxu0 0
    %2436 = vmatprep.subr.bf16.mxu0 0
    %2437 = vmatpush2.bf16.msra.mxu0 0
    %2438 = vmatprep.subr.bf16.mxu0 0
    %2439 = vmatpush2.bf16.msra.mxu0 0
    %2440 = vmatprep.subr.bf16.mxu0 0
    %2441 = vmatpush2.bf16.msra.mxu0 0
    %2442 = vmatprep.mubr.bf16.mxu0 0
    %2443 = vmatmul.mubr.bf16.gmra.mxu0 %v2405
    %v2444 = vpop.f32.mrf.mxu0
    %v2445 = vadd.f32 %v2066, %v2444
    %v2446 = vpop.f32.mrf.mxu0
    %v2447 = vadd.f32 %v2068, %v2446
    %v2448 = vpop.f32.mrf.mxu0
    %v2449 = vadd.f32 %v2070, %v2448
    %v2450 = vpop.f32.mrf.mxu0
    %v2451 = vadd.f32 %v2072, %v2450
    %2452 = vmatprep.mubr.bf16.mxu0 0
    %2453 = vmatmul.mubr.bf16.gmra.mxu0 %v2408
    %v2454 = vpop.f32.mrf.mxu0
    %v2455 = vadd.f32 %v2076, %v2454
    %v2456 = vpop.f32.mrf.mxu0
    %v2457 = vadd.f32 %v2078, %v2456
    %v2458 = vpop.f32.mrf.mxu0
    %v2459 = vadd.f32 %v2080, %v2458
    %v2460 = vpop.f32.mrf.mxu0
    %v2461 = vadd.f32 %v2082, %v2460
    %2462 = vdwg.mxu0
    %2463 = vmatprep.subr.bf16.mxu0 0
    %2464 = vmatpush1.bf16.msra.mxu0 0
    %2465 = vmatprep.subr.bf16.mxu0 0
    %2466 = vmatpush1.bf16.msra.mxu0 0
    %2467 = vmatprep.subr.bf16.mxu0 0
    %2468 = vmatpush1.bf16.msra.mxu0 0
    %2469 = vmatprep.subr.bf16.mxu0 0
    %2470 = vmatpush1.bf16.msra.mxu0 0
    %2471 = vmatprep.subr.bf16.mxu0 0
    %2472 = vmatpush1.bf16.msra.mxu0 0
    %2473 = vmatprep.subr.bf16.mxu0 0
    %2474 = vmatpush1.bf16.msra.mxu0 0
    %2475 = vmatprep.subr.bf16.mxu0 %v1988
    %2476 = vmatpush1.bf16.msra.mxu0 %v1987
    %2477 = vmatprep.subr.bf16.mxu0 %v1973
    %2478 = vmatpush1.bf16.msra.mxu0 %v1972
    %2479 = vmatprep.subr.bf16.mxu0 0
    %2480 = vmatpush2.bf16.msra.mxu0 0
    %2481 = vmatprep.subr.bf16.mxu0 0
    %2482 = vmatpush2.bf16.msra.mxu0 0
    %2483 = vmatprep.subr.bf16.mxu0 0
    %2484 = vmatpush2.bf16.msra.mxu0 0
    %2485 = vmatprep.subr.bf16.mxu0 0
    %2486 = vmatpush2.bf16.msra.mxu0 0
    %2487 = vmatprep.subr.bf16.mxu0 0
    %2488 = vmatpush2.bf16.msra.mxu0 0
    %2489 = vmatprep.subr.bf16.mxu0 0
    %2490 = vmatpush2.bf16.msra.mxu0 0
    %2491 = vmatprep.subr.bf16.mxu0 0
    %2492 = vmatpush2.bf16.msra.mxu0 0
    %2493 = vmatprep.subr.bf16.mxu0 0
    %2494 = vmatpush2.bf16.msra.mxu0 0
    %2495 = vmatprep.mubr.bf16.mxu0 0
    %2496 = vmatmul.mubr.bf16.gmra.mxu0 %v2405
    %v2497 = vpop.f32.mrf.mxu0
    %v2498 = vadd.f32 %v2119, %v2497
    %v2499 = vpop.f32.mrf.mxu0
    %v2500 = vadd.f32 %v2121, %v2499
    %v2501 = vpop.f32.mrf.mxu0
    %v2502 = vadd.f32 %v2123, %v2501
    %v2503 = vpop.f32.mrf.mxu0
    %v2504 = vadd.f32 %v2125, %v2503
    %2505 = vmatprep.mubr.bf16.mxu0 0
    %2506 = vmatmul.mubr.bf16.gmra.mxu0 %v2408
    %v2507 = vpop.f32.mrf.mxu0
    %v2508 = vadd.f32 %v2129, %v2507
    %v2509 = vpop.f32.mrf.mxu0
    %v2510 = vadd.f32 %v2131, %v2509
    %v2511 = vpop.f32.mrf.mxu0
    %v2512 = vadd.f32 %v2133, %v2511
    %v2513 = vpop.f32.mrf.mxu0
    %v2514 = vadd.f32 %v2135, %v2513
    %2515 = vdwg.mxu0
    %2516 = vmatprep.subr.bf16.mxu0 0
    %2517 = vmatpush1.bf16.msra.mxu0 0
    %2518 = vmatprep.subr.bf16.mxu0 0
    %2519 = vmatpush1.bf16.msra.mxu0 0
    %2520 = vmatprep.subr.bf16.mxu0 0
    %2521 = vmatpush1.bf16.msra.mxu0 0
    %2522 = vmatprep.subr.bf16.mxu0 0
    %2523 = vmatpush1.bf16.msra.mxu0 0
    %2524 = vmatprep.subr.bf16.mxu0 0
    %2525 = vmatpush1.bf16.msra.mxu0 0
    %2526 = vmatprep.subr.bf16.mxu0 0
    %2527 = vmatpush1.bf16.msra.mxu0 0
    %2528 = vmatprep.subr.bf16.mxu0 %v1990
    %2529 = vmatpush1.bf16.msra.mxu0 %v1989
    %2530 = vmatprep.subr.bf16.mxu0 %v1975
    %2531 = vmatpush1.bf16.msra.mxu0 %v1974
    %2532 = vmatprep.subr.bf16.mxu0 0
    %2533 = vmatpush2.bf16.msra.mxu0 0
    %2534 = vmatprep.subr.bf16.mxu0 0
    %2535 = vmatpush2.bf16.msra.mxu0 0
    %2536 = vmatprep.subr.bf16.mxu0 0
    %2537 = vmatpush2.bf16.msra.mxu0 0
    %2538 = vmatprep.subr.bf16.mxu0 0
    %2539 = vmatpush2.bf16.msra.mxu0 0
    %2540 = vmatprep.subr.bf16.mxu0 0
    %2541 = vmatpush2.bf16.msra.mxu0 0
    %2542 = vmatprep.subr.bf16.mxu0 0
    %2543 = vmatpush2.bf16.msra.mxu0 0
    %2544 = vmatprep.subr.bf16.mxu0 0
    %2545 = vmatpush2.bf16.msra.mxu0 0
    %2546 = vmatprep.subr.bf16.mxu0 0
    %2547 = vmatpush2.bf16.msra.mxu0 0
    %2548 = vmatprep.mubr.bf16.mxu0 0
    %2549 = vmatmul.mubr.bf16.gmra.mxu0 %v2405
    %v2550 = vpop.f32.mrf.mxu0
    %v2551 = vadd.f32 %v2172, %v2550
    %v2552 = vpop.f32.mrf.mxu0
    %v2553 = vadd.f32 %v2174, %v2552
    %v2554 = vpop.f32.mrf.mxu0
    %v2555 = vadd.f32 %v2176, %v2554
    %v2556 = vpop.f32.mrf.mxu0
    %v2557 = vadd.f32 %v2178, %v2556
    %2558 = vmatprep.mubr.bf16.mxu0 0
    %2559 = vmatmul.mubr.bf16.gmra.mxu0 %v2408
    %v2560 = vpop.f32.mrf.mxu0
    %v2561 = vadd.f32 %v2182, %v2560
    %v2562 = vpop.f32.mrf.mxu0
    %v2563 = vadd.f32 %v2184, %v2562
    %v2564 = vpop.f32.mrf.mxu0
    %v2565 = vadd.f32 %v2186, %v2564
    %v2566 = vpop.f32.mrf.mxu0
    %v2567 = vadd.f32 %v2188, %v2566
    %2568 = vdwg.mxu0
    %2569 = vmatprep.subr.bf16.mxu0 0
    %2570 = vmatpush1.bf16.msra.mxu0 0
    %2571 = vmatprep.subr.bf16.mxu0 0
    %2572 = vmatpush1.bf16.msra.mxu0 0
    %2573 = vmatprep.subr.bf16.mxu0 0
    %2574 = vmatpush1.bf16.msra.mxu0 0
    %2575 = vmatprep.subr.bf16.mxu0 0
    %2576 = vmatpush1.bf16.msra.mxu0 0
    %2577 = vmatprep.subr.bf16.mxu0 0
    %2578 = vmatpush1.bf16.msra.mxu0 0
    %2579 = vmatprep.subr.bf16.mxu0 0
    %2580 = vmatpush1.bf16.msra.mxu0 0
    %2581 = vmatprep.subr.bf16.mxu0 %v1992
    %2582 = vmatpush1.bf16.msra.mxu0 %v1991
    %2583 = vmatprep.subr.bf16.mxu0 %v1977
    %2584 = vmatpush1.bf16.msra.mxu0 %v1976
    %2585 = vmatprep.subr.bf16.mxu0 0
    %2586 = vmatpush2.bf16.msra.mxu0 0
    %2587 = vmatprep.subr.bf16.mxu0 0
    %2588 = vmatpush2.bf16.msra.mxu0 0
    %2589 = vmatprep.subr.bf16.mxu0 0
    %2590 = vmatpush2.bf16.msra.mxu0 0
    %2591 = vmatprep.subr.bf16.mxu0 0
    %2592 = vmatpush2.bf16.msra.mxu0 0
    %2593 = vmatprep.subr.bf16.mxu0 0
    %2594 = vmatpush2.bf16.msra.mxu0 0
    %2595 = vmatprep.subr.bf16.mxu0 0
    %2596 = vmatpush2.bf16.msra.mxu0 0
    %2597 = vmatprep.subr.bf16.mxu0 0
    %2598 = vmatpush2.bf16.msra.mxu0 0
    %2599 = vmatprep.subr.bf16.mxu0 0
    %2600 = vmatpush2.bf16.msra.mxu0 0
    %2601 = vmatprep.mubr.bf16.mxu0 0
    %2602 = vmatmul.mubr.bf16.gmra.mxu0 %v2405
    %v2603 = vpop.f32.mrf.mxu0
    %v2604 = vadd.f32 %v2225, %v2603
    %v2605 = vpop.f32.mrf.mxu0
    %v2606 = vadd.f32 %v2227, %v2605
    %v2607 = vpop.f32.mrf.mxu0
    %v2608 = vadd.f32 %v2229, %v2607
    %v2609 = vpop.f32.mrf.mxu0
    %v2610 = vadd.f32 %v2231, %v2609
    %2611 = vmatprep.mubr.bf16.mxu0 0
    %2612 = vmatmul.mubr.bf16.gmra.mxu0 %v2408
    %v2613 = vpop.f32.mrf.mxu0
    %v2614 = vadd.f32 %v2235, %v2613
    %v2615 = vpop.f32.mrf.mxu0
    %v2616 = vadd.f32 %v2237, %v2615
    %v2617 = vpop.f32.mrf.mxu0
    %v2618 = vadd.f32 %v2239, %v2617
    %v2619 = vpop.f32.mrf.mxu0
    %v2620 = vadd.f32 %v2241, %v2619
    %2621 = vdwg.mxu0
    %2622 = vmatprep.subr.bf16.mxu0 0
    %2623 = vmatpush1.bf16.msra.mxu0 0
    %2624 = vmatprep.subr.bf16.mxu0 0
    %2625 = vmatpush1.bf16.msra.mxu0 0
    %2626 = vmatprep.subr.bf16.mxu0 0
    %2627 = vmatpush1.bf16.msra.mxu0 0
    %2628 = vmatprep.subr.bf16.mxu0 0
    %2629 = vmatpush1.bf16.msra.mxu0 0
    %2630 = vmatprep.subr.bf16.mxu0 0
    %2631 = vmatpush1.bf16.msra.mxu0 0
    %2632 = vmatprep.subr.bf16.mxu0 0
    %2633 = vmatpush1.bf16.msra.mxu0 0
    %2634 = vmatprep.subr.bf16.mxu0 %v1994
    %2635 = vmatpush1.bf16.msra.mxu0 %v1993
    %2636 = vmatprep.subr.bf16.mxu0 %v1979
    %2637 = vmatpush1.bf16.msra.mxu0 %v1978
    %2638 = vmatprep.subr.bf16.mxu0 0
    %2639 = vmatpush2.bf16.msra.mxu0 0
    %2640 = vmatprep.subr.bf16.mxu0 0
    %2641 = vmatpush2.bf16.msra.mxu0 0
    %2642 = vmatprep.subr.bf16.mxu0 0
    %2643 = vmatpush2.bf16.msra.mxu0 0
    %2644 = vmatprep.subr.bf16.mxu0 0
    %2645 = vmatpush2.bf16.msra.mxu0 0
    %2646 = vmatprep.subr.bf16.mxu0 0
    %2647 = vmatpush2.bf16.msra.mxu0 0
    %2648 = vmatprep.subr.bf16.mxu0 0
    %2649 = vmatpush2.bf16.msra.mxu0 0
    %2650 = vmatprep.subr.bf16.mxu0 0
    %2651 = vmatpush2.bf16.msra.mxu0 0
    %2652 = vmatprep.subr.bf16.mxu0 0
    %2653 = vmatpush2.bf16.msra.mxu0 0
    %2654 = vmatprep.mubr.bf16.mxu0 0
    %2655 = vmatmul.mubr.bf16.gmra.mxu0 %v2405
    %v2656 = vpop.f32.mrf.mxu0
    %v2657 = vadd.f32 %v2278, %v2656
    %v2658 = vpop.f32.mrf.mxu0
    %v2659 = vadd.f32 %v2280, %v2658
    %v2660 = vpop.f32.mrf.mxu0
    %v2661 = vadd.f32 %v2282, %v2660
    %v2662 = vpop.f32.mrf.mxu0
    %v2663 = vadd.f32 %v2284, %v2662
    %2664 = vmatprep.mubr.bf16.mxu0 0
    %2665 = vmatmul.mubr.bf16.gmra.mxu0 %v2408
    %v2666 = vpop.f32.mrf.mxu0
    %v2667 = vadd.f32 %v2288, %v2666
    %v2668 = vpop.f32.mrf.mxu0
    %v2669 = vadd.f32 %v2290, %v2668
    %v2670 = vpop.f32.mrf.mxu0
    %v2671 = vadd.f32 %v2292, %v2670
    %v2672 = vpop.f32.mrf.mxu0
    %v2673 = vadd.f32 %v2294, %v2672
    %2674 = vdwg.mxu0
    %2675 = vmatprep.subr.bf16.mxu0 0
    %2676 = vmatpush1.bf16.msra.mxu0 0
    %2677 = vmatprep.subr.bf16.mxu0 0
    %2678 = vmatpush1.bf16.msra.mxu0 0
    %2679 = vmatprep.subr.bf16.mxu0 0
    %2680 = vmatpush1.bf16.msra.mxu0 0
    %2681 = vmatprep.subr.bf16.mxu0 0
    %2682 = vmatpush1.bf16.msra.mxu0 0
    %2683 = vmatprep.subr.bf16.mxu0 0
    %2684 = vmatpush1.bf16.msra.mxu0 0
    %2685 = vmatprep.subr.bf16.mxu0 0
    %2686 = vmatpush1.bf16.msra.mxu0 0
    %2687 = vmatprep.subr.bf16.mxu0 %v1996
    %2688 = vmatpush1.bf16.msra.mxu0 %v1995
    %2689 = vmatprep.subr.bf16.mxu0 %v1981
    %2690 = vmatpush1.bf16.msra.mxu0 %v1980
    %2691 = vmatprep.subr.bf16.mxu0 0
    %2692 = vmatpush2.bf16.msra.mxu0 0
    %2693 = vmatprep.subr.bf16.mxu0 0
    %2694 = vmatpush2.bf16.msra.mxu0 0
    %2695 = vmatprep.subr.bf16.mxu0 0
    %2696 = vmatpush2.bf16.msra.mxu0 0
    %2697 = vmatprep.subr.bf16.mxu0 0
    %2698 = vmatpush2.bf16.msra.mxu0 0
    %2699 = vmatprep.subr.bf16.mxu0 0
    %2700 = vmatpush2.bf16.msra.mxu0 0
    %2701 = vmatprep.subr.bf16.mxu0 0
    %2702 = vmatpush2.bf16.msra.mxu0 0
    %2703 = vmatprep.subr.bf16.mxu0 0
    %2704 = vmatpush2.bf16.msra.mxu0 0
    %2705 = vmatprep.subr.bf16.mxu0 0
    %2706 = vmatpush2.bf16.msra.mxu0 0
    %2707 = vmatprep.mubr.bf16.mxu0 0
    %2708 = vmatmul.mubr.bf16.gmra.mxu0 %v2405
    %v2709 = vpop.f32.mrf.mxu0
    %v2710 = vadd.f32 %v2331, %v2709
    %v2711 = vpop.f32.mrf.mxu0
    %v2712 = vpop.f32.mrf.mxu0
    %v2713 = vadd.f32 %v2334, %v2712
    %v2714 = vpop.f32.mrf.mxu0
    %2715 = vmatprep.mubr.bf16.mxu0 0
    %2716 = vmatmul.mubr.bf16.gmra.mxu0 %v2408
    %v2717 = vpop.f32.mrf.mxu0
    %v2718 = vadd.f32 %v2339, %v2717
    %v2719 = vpop.f32.mrf.mxu0
    %v2720 = vpop.f32.mrf.mxu0
    %v2721 = vadd.f32 %v2342, %v2720
    %v2722 = vpop.f32.mrf.mxu0
    %2723 = vdwg.mxu0
    %2724 = vmatprep.subr.bf16.mxu0 0
    %2725 = vmatpush1.bf16.msra.mxu0 0
    %2726 = vmatprep.subr.bf16.mxu0 0
    %2727 = vmatpush1.bf16.msra.mxu0 0
    %2728 = vmatprep.subr.bf16.mxu0 0
    %2729 = vmatpush1.bf16.msra.mxu0 0
    %2730 = vmatprep.subr.bf16.mxu0 0
    %2731 = vmatpush1.bf16.msra.mxu0 0
    %2732 = vmatprep.subr.bf16.mxu0 0
    %2733 = vmatpush1.bf16.msra.mxu0 0
    %2734 = vmatprep.subr.bf16.mxu0 0
    %2735 = vmatpush1.bf16.msra.mxu0 0
    %2736 = vmatprep.subr.bf16.mxu0 0
    %2737 = vmatpush1.bf16.msra.mxu0 %v1997
    %2738 = vmatprep.subr.bf16.mxu0 0
    %2739 = vmatpush1.bf16.msra.mxu0 %v1982
    %2740 = vmatprep.subr.bf16.mxu0 0
    %2741 = vmatpush2.bf16.msra.mxu0 0
    %2742 = vmatprep.subr.bf16.mxu0 0
    %2743 = vmatpush2.bf16.msra.mxu0 0
    %2744 = vmatprep.subr.bf16.mxu0 0
    %2745 = vmatpush2.bf16.msra.mxu0 0
    %2746 = vmatprep.subr.bf16.mxu0 0
    %2747 = vmatpush2.bf16.msra.mxu0 0
    %2748 = vmatprep.subr.bf16.mxu0 0
    %2749 = vmatpush2.bf16.msra.mxu0 0
    %2750 = vmatprep.subr.bf16.mxu0 0
    %2751 = vmatpush2.bf16.msra.mxu0 0
    %2752 = vmatprep.subr.bf16.mxu0 0
    %2753 = vmatpush2.bf16.msra.mxu0 0
    %2754 = vmatprep.subr.bf16.mxu0 0
    %2755 = vmatpush2.bf16.msra.mxu0 0
    %2756 = vmatprep.mubr.bf16.mxu0 0
    %2757 = vmatmul.mubr.bf16.gmra.mxu0 %v2405
    %v2758 = vpop.f32.mrf.mxu0
    %v2759 = vadd.f32 %v2380, %v2758
    %v2760 = vpop.f32.mrf.mxu0
    %v2761 = vpop.f32.mrf.mxu0
    %v2762 = vadd.f32 %v2383, %v2761
    %v2763 = vpop.f32.mrf.mxu0
    %2764 = vmatprep.mubr.bf16.mxu0 0
    %2765 = vmatmul.mubr.bf16.gmra.mxu0 %v2408
    %v2766 = vpop.f32.mrf.mxu0
    %v2767 = vadd.f32 %v2388, %v2766
    %v2768 = vpop.f32.mrf.mxu0
    %v2769 = vpop.f32.mrf.mxu0
    %v2770 = vadd.f32 %v2391, %v2769
    %v2771 = vpop.f32.mrf.mxu0
    %2772 = vdwg.mxu0
    %s2773 = scalar_lea.vmem %s2, 32
    %v2774 = vld [vmem:[%s2773] sm:$0xf]
    %v2775 = vld [vmem:[%s2773 + $0x4] sm:$0xf]
    %v2776 = vld [vmem:[%s2773 + $0x8] sm:$0xf]
    %v2777 = vld [vmem:[%s2773 + $0xc] sm:$0xf]
    %v2782 = vunpack.c.l.b16 %v2774
    %v2783 = vunpack.c.l.b16 %v2775
    %v2784 = vunpack.c.l.b16 %v2776
    %v2785 = vunpack.c.l.b16 %v2777
    %v2786 = vpack.c.b16 %v2783, %v2782
    %v2787 = vpack.c.b16 %v2785, %v2784
    %v2789 = vsel %vm2024, %v2786, 0
    %v2792 = vsel %vm2024, %v2787, 0
    %2794 = vmatprep.subr.bf16.mxu0 0
    %2795 = vmatpush1.bf16.msra.mxu0 0
    %2796 = vmatprep.subr.bf16.mxu0 0
    %2797 = vmatpush1.bf16.msra.mxu0 0
    %2798 = vmatprep.subr.bf16.mxu0 0
    %2799 = vmatpush1.bf16.msra.mxu0 0
    %2800 = vmatprep.subr.bf16.mxu0 0
    %2801 = vmatpush1.bf16.msra.mxu0 0
    %2802 = vmatprep.subr.bf16.mxu0 0
    %2803 = vmatpush1.bf16.msra.mxu0 0
    %2804 = vmatprep.subr.bf16.mxu0 0
    %2805 = vmatpush1.bf16.msra.mxu0 0
    %2806 = vmatprep.subr.bf16.mxu0 %v1988
    %2807 = vmatpush1.bf16.msra.mxu0 %v1987
    %2808 = vmatprep.subr.bf16.mxu0 %v1973
    %2809 = vmatpush1.bf16.msra.mxu0 %v1972
    %2810 = vmatprep.subr.bf16.mxu0 0
    %2811 = vmatpush2.bf16.msra.mxu0 0
    %2812 = vmatprep.subr.bf16.mxu0 0
    %2813 = vmatpush2.bf16.msra.mxu0 0
    %2814 = vmatprep.subr.bf16.mxu0 0
    %2815 = vmatpush2.bf16.msra.mxu0 0
    %2816 = vmatprep.subr.bf16.mxu0 0
    %2817 = vmatpush2.bf16.msra.mxu0 0
    %2818 = vmatprep.subr.bf16.mxu0 0
    %2819 = vmatpush2.bf16.msra.mxu0 0
    %2820 = vmatprep.subr.bf16.mxu0 0
    %2821 = vmatpush2.bf16.msra.mxu0 0
    %2822 = vmatprep.subr.bf16.mxu0 0
    %2823 = vmatpush2.bf16.msra.mxu0 0
    %2824 = vmatprep.subr.bf16.mxu0 0
    %2825 = vmatpush2.bf16.msra.mxu0 0
    %2826 = vmatprep.mubr.bf16.mxu0 0
    %2827 = vmatmul.mubr.bf16.gmra.mxu0 %v2789
    %v2828 = vpop.f32.mrf.mxu0
    %v2829 = vadd.f32 0.0, %v2828
    %v2830 = vpop.f32.mrf.mxu0
    %v2831 = vadd.f32 0.0, %v2830
    %v2832 = vpop.f32.mrf.mxu0
    %v2833 = vadd.f32 0.0, %v2832
    %v2834 = vpop.f32.mrf.mxu0
    %v2835 = vadd.f32 0.0, %v2834
    %2836 = vmatprep.mubr.bf16.mxu0 0
    %2837 = vmatmul.mubr.bf16.gmra.mxu0 %v2792
    %v2838 = vpop.f32.mrf.mxu0
    %v2839 = vadd.f32 0.0, %v2838
    %v2840 = vpop.f32.mrf.mxu0
    %v2841 = vadd.f32 0.0, %v2840
    %v2842 = vpop.f32.mrf.mxu0
    %v2843 = vadd.f32 0.0, %v2842
    %v2844 = vpop.f32.mrf.mxu0
    %v2845 = vadd.f32 0.0, %v2844
    %2846 = vdwg.mxu0
    %2847 = vmatprep.subr.bf16.mxu0 0
    %2848 = vmatpush1.bf16.msra.mxu0 0
    %2849 = vmatprep.subr.bf16.mxu0 0
    %2850 = vmatpush1.bf16.msra.mxu0 0
    %2851 = vmatprep.subr.bf16.mxu0 0
    %2852 = vmatpush1.bf16.msra.mxu0 0
    %2853 = vmatprep.subr.bf16.mxu0 0
    %2854 = vmatpush1.bf16.msra.mxu0 0
    %2855 = vmatprep.subr.bf16.mxu0 0
    %2856 = vmatpush1.bf16.msra.mxu0 0
    %2857 = vmatprep.subr.bf16.mxu0 0
    %2858 = vmatpush1.bf16.msra.mxu0 0
    %2859 = vmatprep.subr.bf16.mxu0 %v1990
    %2860 = vmatpush1.bf16.msra.mxu0 %v1989
    %2861 = vmatprep.subr.bf16.mxu0 %v1975
    %2862 = vmatpush1.bf16.msra.mxu0 %v1974
    %2863 = vmatprep.subr.bf16.mxu0 0
    %2864 = vmatpush2.bf16.msra.mxu0 0
    %2865 = vmatprep.subr.bf16.mxu0 0
    %2866 = vmatpush2.bf16.msra.mxu0 0
    %2867 = vmatprep.subr.bf16.mxu0 0
    %2868 = vmatpush2.bf16.msra.mxu0 0
    %2869 = vmatprep.subr.bf16.mxu0 0
    %2870 = vmatpush2.bf16.msra.mxu0 0
    %2871 = vmatprep.subr.bf16.mxu0 0
    %2872 = vmatpush2.bf16.msra.mxu0 0
    %2873 = vmatprep.subr.bf16.mxu0 0
    %2874 = vmatpush2.bf16.msra.mxu0 0
    %2875 = vmatprep.subr.bf16.mxu0 0
    %2876 = vmatpush2.bf16.msra.mxu0 0
    %2877 = vmatprep.subr.bf16.mxu0 0
    %2878 = vmatpush2.bf16.msra.mxu0 0
    %2879 = vmatprep.mubr.bf16.mxu0 0
    %2880 = vmatmul.mubr.bf16.gmra.mxu0 %v2789
    %v2881 = vpop.f32.mrf.mxu0
    %v2882 = vadd.f32 0.0, %v2881
    %v2883 = vpop.f32.mrf.mxu0
    %v2884 = vadd.f32 0.0, %v2883
    %v2885 = vpop.f32.mrf.mxu0
    %v2886 = vadd.f32 0.0, %v2885
    %v2887 = vpop.f32.mrf.mxu0
    %v2888 = vadd.f32 0.0, %v2887
    %2889 = vmatprep.mubr.bf16.mxu0 0
    %2890 = vmatmul.mubr.bf16.gmra.mxu0 %v2792
    %v2891 = vpop.f32.mrf.mxu0
    %v2892 = vadd.f32 0.0, %v2891
    %v2893 = vpop.f32.mrf.mxu0
    %v2894 = vadd.f32 0.0, %v2893
    %v2895 = vpop.f32.mrf.mxu0
    %v2896 = vadd.f32 0.0, %v2895
    %v2897 = vpop.f32.mrf.mxu0
    %v2898 = vadd.f32 0.0, %v2897
    %2899 = vdwg.mxu0
    %2900 = vmatprep.subr.bf16.mxu0 0
    %2901 = vmatpush1.bf16.msra.mxu0 0
    %2902 = vmatprep.subr.bf16.mxu0 0
    %2903 = vmatpush1.bf16.msra.mxu0 0
    %2904 = vmatprep.subr.bf16.mxu0 0
    %2905 = vmatpush1.bf16.msra.mxu0 0
    %2906 = vmatprep.subr.bf16.mxu0 0
    %2907 = vmatpush1.bf16.msra.mxu0 0
    %2908 = vmatprep.subr.bf16.mxu0 0
    %2909 = vmatpush1.bf16.msra.mxu0 0
    %2910 = vmatprep.subr.bf16.mxu0 0
    %2911 = vmatpush1.bf16.msra.mxu0 0
    %2912 = vmatprep.subr.bf16.mxu0 %v1992
    %2913 = vmatpush1.bf16.msra.mxu0 %v1991
    %2914 = vmatprep.subr.bf16.mxu0 %v1977
    %2915 = vmatpush1.bf16.msra.mxu0 %v1976
    %2916 = vmatprep.subr.bf16.mxu0 0
    %2917 = vmatpush2.bf16.msra.mxu0 0
    %2918 = vmatprep.subr.bf16.mxu0 0
    %2919 = vmatpush2.bf16.msra.mxu0 0
    %2920 = vmatprep.subr.bf16.mxu0 0
    %2921 = vmatpush2.bf16.msra.mxu0 0
    %2922 = vmatprep.subr.bf16.mxu0 0
    %2923 = vmatpush2.bf16.msra.mxu0 0
    %2924 = vmatprep.subr.bf16.mxu0 0
    %2925 = vmatpush2.bf16.msra.mxu0 0
    %2926 = vmatprep.subr.bf16.mxu0 0
    %2927 = vmatpush2.bf16.msra.mxu0 0
    %2928 = vmatprep.subr.bf16.mxu0 0
    %2929 = vmatpush2.bf16.msra.mxu0 0
    %2930 = vmatprep.subr.bf16.mxu0 0
    %2931 = vmatpush2.bf16.msra.mxu0 0
    %2932 = vmatprep.mubr.bf16.mxu0 0
    %2933 = vmatmul.mubr.bf16.gmra.mxu0 %v2789
    %v2934 = vpop.f32.mrf.mxu0
    %v2935 = vadd.f32 0.0, %v2934
    %v2936 = vpop.f32.mrf.mxu0
    %v2937 = vadd.f32 0.0, %v2936
    %v2938 = vpop.f32.mrf.mxu0
    %v2939 = vadd.f32 0.0, %v2938
    %v2940 = vpop.f32.mrf.mxu0
    %v2941 = vadd.f32 0.0, %v2940
    %2942 = vmatprep.mubr.bf16.mxu0 0
    %2943 = vmatmul.mubr.bf16.gmra.mxu0 %v2792
    %v2944 = vpop.f32.mrf.mxu0
    %v2945 = vadd.f32 0.0, %v2944
    %v2946 = vpop.f32.mrf.mxu0
    %v2947 = vadd.f32 0.0, %v2946
    %v2948 = vpop.f32.mrf.mxu0
    %v2949 = vadd.f32 0.0, %v2948
    %v2950 = vpop.f32.mrf.mxu0
    %v2951 = vadd.f32 0.0, %v2950
    %2952 = vdwg.mxu0
    %2953 = vmatprep.subr.bf16.mxu0 0
    %2954 = vmatpush1.bf16.msra.mxu0 0
    %2955 = vmatprep.subr.bf16.mxu0 0
    %2956 = vmatpush1.bf16.msra.mxu0 0
    %2957 = vmatprep.subr.bf16.mxu0 0
    %2958 = vmatpush1.bf16.msra.mxu0 0
    %2959 = vmatprep.subr.bf16.mxu0 0
    %2960 = vmatpush1.bf16.msra.mxu0 0
    %2961 = vmatprep.subr.bf16.mxu0 0
    %2962 = vmatpush1.bf16.msra.mxu0 0
    %2963 = vmatprep.subr.bf16.mxu0 0
    %2964 = vmatpush1.bf16.msra.mxu0 0
    %2965 = vmatprep.subr.bf16.mxu0 %v1994
    %2966 = vmatpush1.bf16.msra.mxu0 %v1993
    %2967 = vmatprep.subr.bf16.mxu0 %v1979
    %2968 = vmatpush1.bf16.msra.mxu0 %v1978
    %2969 = vmatprep.subr.bf16.mxu0 0
    %2970 = vmatpush2.bf16.msra.mxu0 0
    %2971 = vmatprep.subr.bf16.mxu0 0
    %2972 = vmatpush2.bf16.msra.mxu0 0
    %2973 = vmatprep.subr.bf16.mxu0 0
    %2974 = vmatpush2.bf16.msra.mxu0 0
    %2975 = vmatprep.subr.bf16.mxu0 0
    %2976 = vmatpush2.bf16.msra.mxu0 0
    %2977 = vmatprep.subr.bf16.mxu0 0
    %2978 = vmatpush2.bf16.msra.mxu0 0
    %2979 = vmatprep.subr.bf16.mxu0 0
    %2980 = vmatpush2.bf16.msra.mxu0 0
    %2981 = vmatprep.subr.bf16.mxu0 0
    %2982 = vmatpush2.bf16.msra.mxu0 0
    %2983 = vmatprep.subr.bf16.mxu0 0
    %2984 = vmatpush2.bf16.msra.mxu0 0
    %2985 = vmatprep.mubr.bf16.mxu0 0
    %2986 = vmatmul.mubr.bf16.gmra.mxu0 %v2789
    %v2987 = vpop.f32.mrf.mxu0
    %v2988 = vadd.f32 0.0, %v2987
    %v2989 = vpop.f32.mrf.mxu0
    %v2990 = vadd.f32 0.0, %v2989
    %v2991 = vpop.f32.mrf.mxu0
    %v2992 = vadd.f32 0.0, %v2991
    %v2993 = vpop.f32.mrf.mxu0
    %v2994 = vadd.f32 0.0, %v2993
    %2995 = vmatprep.mubr.bf16.mxu0 0
    %2996 = vmatmul.mubr.bf16.gmra.mxu0 %v2792
    %v2997 = vpop.f32.mrf.mxu0
    %v2998 = vadd.f32 0.0, %v2997
    %v2999 = vpop.f32.mrf.mxu0
    %v3000 = vadd.f32 0.0, %v2999
    %v3001 = vpop.f32.mrf.mxu0
    %v3002 = vadd.f32 0.0, %v3001
    %v3003 = vpop.f32.mrf.mxu0
    %v3004 = vadd.f32 0.0, %v3003
    %3005 = vdwg.mxu0
    %3006 = vmatprep.subr.bf16.mxu0 0
    %3007 = vmatpush1.bf16.msra.mxu0 0
    %3008 = vmatprep.subr.bf16.mxu0 0
    %3009 = vmatpush1.bf16.msra.mxu0 0
    %3010 = vmatprep.subr.bf16.mxu0 0
    %3011 = vmatpush1.bf16.msra.mxu0 0
    %3012 = vmatprep.subr.bf16.mxu0 0
    %3013 = vmatpush1.bf16.msra.mxu0 0
    %3014 = vmatprep.subr.bf16.mxu0 0
    %3015 = vmatpush1.bf16.msra.mxu0 0
    %3016 = vmatprep.subr.bf16.mxu0 0
    %3017 = vmatpush1.bf16.msra.mxu0 0
    %3018 = vmatprep.subr.bf16.mxu0 %v1996
    %3019 = vmatpush1.bf16.msra.mxu0 %v1995
    %3020 = vmatprep.subr.bf16.mxu0 %v1981
    %3021 = vmatpush1.bf16.msra.mxu0 %v1980
    %3022 = vmatprep.subr.bf16.mxu0 0
    %3023 = vmatpush2.bf16.msra.mxu0 0
    %3024 = vmatprep.subr.bf16.mxu0 0
    %3025 = vmatpush2.bf16.msra.mxu0 0
    %3026 = vmatprep.subr.bf16.mxu0 0
    %3027 = vmatpush2.bf16.msra.mxu0 0
    %3028 = vmatprep.subr.bf16.mxu0 0
    %3029 = vmatpush2.bf16.msra.mxu0 0
    %3030 = vmatprep.subr.bf16.mxu0 0
    %3031 = vmatpush2.bf16.msra.mxu0 0
    %3032 = vmatprep.subr.bf16.mxu0 0
    %3033 = vmatpush2.bf16.msra.mxu0 0
    %3034 = vmatprep.subr.bf16.mxu0 0
    %3035 = vmatpush2.bf16.msra.mxu0 0
    %3036 = vmatprep.subr.bf16.mxu0 0
    %3037 = vmatpush2.bf16.msra.mxu0 0
    %3038 = vmatprep.mubr.bf16.mxu0 0
    %3039 = vmatmul.mubr.bf16.gmra.mxu0 %v2789
    %v3040 = vpop.f32.mrf.mxu0
    %v3041 = vadd.f32 0.0, %v3040
    %v3042 = vpop.f32.mrf.mxu0
    %v3043 = vadd.f32 0.0, %v3042
    %v3044 = vpop.f32.mrf.mxu0
    %v3045 = vadd.f32 0.0, %v3044
    %v3046 = vpop.f32.mrf.mxu0
    %v3047 = vadd.f32 0.0, %v3046
    %3048 = vmatprep.mubr.bf16.mxu0 0
    %3049 = vmatmul.mubr.bf16.gmra.mxu0 %v2792
    %v3050 = vpop.f32.mrf.mxu0
    %v3051 = vadd.f32 0.0, %v3050
    %v3052 = vpop.f32.mrf.mxu0
    %v3053 = vadd.f32 0.0, %v3052
    %v3054 = vpop.f32.mrf.mxu0
    %v3055 = vadd.f32 0.0, %v3054
    %v3056 = vpop.f32.mrf.mxu0
    %v3057 = vadd.f32 0.0, %v3056
    %3058 = vdwg.mxu0
    %3059 = vmatprep.subr.bf16.mxu0 0
    %3060 = vmatpush1.bf16.msra.mxu0 0
    %3061 = vmatprep.subr.bf16.mxu0 0
    %3062 = vmatpush1.bf16.msra.mxu0 0
    %3063 = vmatprep.subr.bf16.mxu0 0
    %3064 = vmatpush1.bf16.msra.mxu0 0
    %3065 = vmatprep.subr.bf16.mxu0 0
    %3066 = vmatpush1.bf16.msra.mxu0 0
    %3067 = vmatprep.subr.bf16.mxu0 0
    %3068 = vmatpush1.bf16.msra.mxu0 0
    %3069 = vmatprep.subr.bf16.mxu0 0
    %3070 = vmatpush1.bf16.msra.mxu0 0
    %3071 = vmatprep.subr.bf16.mxu0 %v1998
    %3072 = vmatpush1.bf16.msra.mxu0 %v1997
    %3073 = vmatprep.subr.bf16.mxu0 %v1983
    %3074 = vmatpush1.bf16.msra.mxu0 %v1982
    %3075 = vmatprep.subr.bf16.mxu0 0
    %3076 = vmatpush2.bf16.msra.mxu0 0
    %3077 = vmatprep.subr.bf16.mxu0 0
    %3078 = vmatpush2.bf16.msra.mxu0 0
    %3079 = vmatprep.subr.bf16.mxu0 0
    %3080 = vmatpush2.bf16.msra.mxu0 0
    %3081 = vmatprep.subr.bf16.mxu0 0
    %3082 = vmatpush2.bf16.msra.mxu0 0
    %3083 = vmatprep.subr.bf16.mxu0 0
    %3084 = vmatpush2.bf16.msra.mxu0 0
    %3085 = vmatprep.subr.bf16.mxu0 0
    %3086 = vmatpush2.bf16.msra.mxu0 0
    %3087 = vmatprep.subr.bf16.mxu0 0
    %3088 = vmatpush2.bf16.msra.mxu0 0
    %3089 = vmatprep.subr.bf16.mxu0 0
    %3090 = vmatpush2.bf16.msra.mxu0 0
    %3091 = vmatprep.mubr.bf16.mxu0 0
    %3092 = vmatmul.mubr.bf16.gmra.mxu0 %v2789
    %v3093 = vpop.f32.mrf.mxu0
    %v3094 = vadd.f32 0.0, %v3093
    %v3095 = vpop.f32.mrf.mxu0
    %v3096 = vpop.f32.mrf.mxu0
    %v3097 = vadd.f32 0.0, %v3096
    %v3098 = vpop.f32.mrf.mxu0
    %3099 = vmatprep.mubr.bf16.mxu0 0
    %3100 = vmatmul.mubr.bf16.gmra.mxu0 %v2792
    %v3101 = vpop.f32.mrf.mxu0
    %v3102 = vadd.f32 0.0, %v3101
    %v3103 = vpop.f32.mrf.mxu0
    %v3104 = vpop.f32.mrf.mxu0
    %v3105 = vadd.f32 0.0, %v3104
    %v3106 = vpop.f32.mrf.mxu0
    %3107 = vdwg.mxu0
    %3108 = vmatprep.subr.bf16.mxu0 0
    %3109 = vmatpush1.bf16.msra.mxu0 0
    %3110 = vmatprep.subr.bf16.mxu0 0
    %3111 = vmatpush1.bf16.msra.mxu0 0
    %3112 = vmatprep.subr.bf16.mxu0 0
    %3113 = vmatpush1.bf16.msra.mxu0 0
    %3114 = vmatprep.subr.bf16.mxu0 0
    %3115 = vmatpush1.bf16.msra.mxu0 0
    %3116 = vmatprep.subr.bf16.mxu0 0
    %3117 = vmatpush1.bf16.msra.mxu0 0
    %3118 = vmatprep.subr.bf16.mxu0 0
    %3119 = vmatpush1.bf16.msra.mxu0 0
    %3120 = vmatprep.subr.bf16.mxu0 0
    %3121 = vmatpush1.bf16.msra.mxu0 %v1999
    %3122 = vmatprep.subr.bf16.mxu0 0
    %3123 = vmatpush1.bf16.msra.mxu0 %v1984
    %3124 = vmatprep.subr.bf16.mxu0 0
    %3125 = vmatpush2.bf16.msra.mxu0 0
    %3126 = vmatprep.subr.bf16.mxu0 0
    %3127 = vmatpush2.bf16.msra.mxu0 0
    %3128 = vmatprep.subr.bf16.mxu0 0
    %3129 = vmatpush2.bf16.msra.mxu0 0
    %3130 = vmatprep.subr.bf16.mxu0 0
    %3131 = vmatpush2.bf16.msra.mxu0 0
    %3132 = vmatprep.subr.bf16.mxu0 0
    %3133 = vmatpush2.bf16.msra.mxu0 0
    %3134 = vmatprep.subr.bf16.mxu0 0
    %3135 = vmatpush2.bf16.msra.mxu0 0
    %3136 = vmatprep.subr.bf16.mxu0 0
    %3137 = vmatpush2.bf16.msra.mxu0 0
    %3138 = vmatprep.subr.bf16.mxu0 0
    %3139 = vmatpush2.bf16.msra.mxu0 0
    %3140 = vmatprep.mubr.bf16.mxu0 0
    %3141 = vmatmul.mubr.bf16.gmra.mxu0 %v2789
    %v3142 = vpop.f32.mrf.mxu0
    %v3143 = vadd.f32 0.0, %v3142
    %v3144 = vpop.f32.mrf.mxu0
    %v3145 = vpop.f32.mrf.mxu0
    %v3146 = vadd.f32 0.0, %v3145
    %v3147 = vpop.f32.mrf.mxu0
    %3148 = vmatprep.mubr.bf16.mxu0 0
    %3149 = vmatmul.mubr.bf16.gmra.mxu0 %v2792
    %v3150 = vpop.f32.mrf.mxu0
    %v3151 = vadd.f32 0.0, %v3150
    %v3152 = vpop.f32.mrf.mxu0
    %v3153 = vpop.f32.mrf.mxu0
    %v3154 = vadd.f32 0.0, %v3153
    %v3155 = vpop.f32.mrf.mxu0
    %3156 = vdwg.mxu0
    %v3157 = vadd.f32 %v2445, %v2829
    %v3158 = vadd.f32 %v2447, %v2831
    %v3159 = vadd.f32 %v2498, %v2882
    %v3160 = vadd.f32 %v2500, %v2884
    %v3161 = vadd.f32 %v2551, %v2935
    %v3162 = vadd.f32 %v2553, %v2937
    %v3163 = vadd.f32 %v2604, %v2988
    %v3164 = vadd.f32 %v2606, %v2990
    %v3165 = vadd.f32 %v2657, %v3041
    %v3166 = vadd.f32 %v2659, %v3043
    %v3167 = vadd.f32 %v2710, %v3094
    %v3168 = vadd.f32 %v2759, %v3143
    %v3169 = vadd.f32 %v2449, %v2833
    %v3170 = vadd.f32 %v2451, %v2835
    %v3171 = vadd.f32 %v2502, %v2886
    %v3172 = vadd.f32 %v2504, %v2888
    %v3173 = vadd.f32 %v2555, %v2939
    %v3174 = vadd.f32 %v2557, %v2941
    %v3175 = vadd.f32 %v2608, %v2992
    %v3176 = vadd.f32 %v2610, %v2994
    %v3177 = vadd.f32 %v2661, %v3045
    %v3178 = vadd.f32 %v2663, %v3047
    %v3179 = vadd.f32 %v2713, %v3097
    %v3180 = vadd.f32 %v2762, %v3146
    %v3181 = vadd.f32 %v2455, %v2839
    %v3182 = vadd.f32 %v2457, %v2841
    %v3183 = vadd.f32 %v2508, %v2892
    %v3184 = vadd.f32 %v2510, %v2894
    %v3185 = vadd.f32 %v2561, %v2945
    %v3186 = vadd.f32 %v2563, %v2947
    %v3187 = vadd.f32 %v2614, %v2998
    %v3188 = vadd.f32 %v2616, %v3000
    %v3189 = vadd.f32 %v2667, %v3051
    %v3190 = vadd.f32 %v2669, %v3053
    %v3191 = vadd.f32 %v2718, %v3102
    %v3192 = vadd.f32 %v2767, %v3151
    %v3193 = vadd.f32 %v2459, %v2843
    %v3194 = vadd.f32 %v2461, %v2845
    %v3195 = vadd.f32 %v2512, %v2896
    %v3196 = vadd.f32 %v2514, %v2898
    %v3197 = vadd.f32 %v2565, %v2949
    %v3198 = vadd.f32 %v2567, %v2951
    %v3199 = vadd.f32 %v2618, %v3002
    %v3200 = vadd.f32 %v2620, %v3004
    %v3201 = vadd.f32 %v2671, %v3055
    %v3202 = vadd.f32 %v2673, %v3057
    %v3203 = vadd.f32 %v2721, %v3105
    %v3204 = vadd.f32 %v2770, %v3154
    %3206 = vset.pattern.permute.xlu0 0
    %3207 = vperm.xlu0 %3206, %v2001
    %v3208 = vpop.permute.xlu0 %3207
    %3211 = vset.pattern.permute.xlu0 0
    %3212 = vperm.xlu0 %3211, %v2002
    %v3213 = vpop.permute.xlu0 %3212
    %3216 = vset.pattern.permute.xlu0 0
    %3217 = vperm.xlu0 %3216, %v2003
    %v3218 = vpop.permute.xlu0 %3217
    %3221 = vset.pattern.permute.xlu0 0
    %3222 = vperm.xlu0 %3221, %v2004
    %v3223 = vpop.permute.xlu0 %3222
    %v3225 = vadd.f32 %v3157, %v3208
    %v3226 = vadd.f32 %v3158, %v3208
    %v3227 = vadd.f32 %v3159, %v3208
    %v3228 = vadd.f32 %v3160, %v3208
    %v3229 = vadd.f32 %v3161, %v3208
    %v3230 = vadd.f32 %v3162, %v3208
    %v3231 = vadd.f32 %v3163, %v3208
    %v3232 = vadd.f32 %v3164, %v3208
    %v3233 = vadd.f32 %v3165, %v3208
    %v3234 = vadd.f32 %v3166, %v3208
    %v3235 = vadd.f32 %v3167, %v3208
    %v3236 = vadd.f32 %v3168, %v3208
    %v3237 = vadd.f32 %v3169, %v3213
    %v3238 = vadd.f32 %v3170, %v3213
    %v3239 = vadd.f32 %v3171, %v3213
    %v3240 = vadd.f32 %v3172, %v3213
    %v3241 = vadd.f32 %v3173, %v3213
    %v3242 = vadd.f32 %v3174, %v3213
    %v3243 = vadd.f32 %v3175, %v3213
    %v3244 = vadd.f32 %v3176, %v3213
    %v3245 = vadd.f32 %v3177, %v3213
    %v3246 = vadd.f32 %v3178, %v3213
    %v3247 = vadd.f32 %v3179, %v3213
    %v3248 = vadd.f32 %v3180, %v3213
    %v3249 = vadd.f32 %v3181, %v3218
    %v3250 = vadd.f32 %v3182, %v3218
    %v3251 = vadd.f32 %v3183, %v3218
    %v3252 = vadd.f32 %v3184, %v3218
    %v3253 = vadd.f32 %v3185, %v3218
    %v3254 = vadd.f32 %v3186, %v3218
    %v3255 = vadd.f32 %v3187, %v3218
    %v3256 = vadd.f32 %v3188, %v3218
    %v3257 = vadd.f32 %v3189, %v3218
    %v3258 = vadd.f32 %v3190, %v3218
    %v3259 = vadd.f32 %v3191, %v3218
    %v3260 = vadd.f32 %v3192, %v3218
    %v3261 = vadd.f32 %v3193, %v3223
    %v3262 = vadd.f32 %v3194, %v3223
    %v3263 = vadd.f32 %v3195, %v3223
    %v3264 = vadd.f32 %v3196, %v3223
    %v3265 = vadd.f32 %v3197, %v3223
    %v3266 = vadd.f32 %v3198, %v3223
    %v3267 = vadd.f32 %v3199, %v3223
    %v3268 = vadd.f32 %v3200, %v3223
    %v3269 = vadd.f32 %v3201, %v3223
    %v3270 = vadd.f32 %v3202, %v3223
    %v3271 = vadd.f32 %v3203, %v3223
    %v3272 = vadd.f32 %v3204, %v3223
    %vm3273 = vcmp.gt.f32.partialorder %v3225, 0.0
    %vm3274 = vcmp.gt.f32.partialorder %v3226, 0.0
    %vm3275 = vcmp.gt.f32.partialorder %v3227, 0.0
    %vm3276 = vcmp.gt.f32.partialorder %v3228, 0.0
    %vm3277 = vcmp.gt.f32.partialorder %v3229, 0.0
    %vm3278 = vcmp.gt.f32.partialorder %v3230, 0.0
    %vm3279 = vcmp.gt.f32.partialorder %v3231, 0.0
    %vm3280 = vcmp.gt.f32.partialorder %v3232, 0.0
    %vm3281 = vcmp.gt.f32.partialorder %v3233, 0.0
    %vm3282 = vcmp.gt.f32.partialorder %v3234, 0.0
    %vm3283 = vcmp.gt.f32.partialorder %v3235, 0.0
    %vm3284 = vcmp.gt.f32.partialorder %v3236, 0.0
    %vm3285 = vcmp.gt.f32.partialorder %v3237, 0.0
    %vm3286 = vcmp.gt.f32.partialorder %v3238, 0.0
    %vm3287 = vcmp.gt.f32.partialorder %v3239, 0.0
    %vm3288 = vcmp.gt.f32.partialorder %v3240, 0.0
    %vm3289 = vcmp.gt.f32.partialorder %v3241, 0.0
    %vm3290 = vcmp.gt.f32.partialorder %v3242, 0.0
    %vm3291 = vcmp.gt.f32.partialorder %v3243, 0.0
    %vm3292 = vcmp.gt.f32.partialorder %v3244, 0.0
    %vm3293 = vcmp.gt.f32.partialorder %v3245, 0.0
    %vm3294 = vcmp.gt.f32.partialorder %v3246, 0.0
    %vm3295 = vcmp.gt.f32.partialorder %v3247, 0.0
    %vm3296 = vcmp.gt.f32.partialorder %v3248, 0.0
    %vm3297 = vcmp.gt.f32.partialorder %v3249, 0.0
    %vm3298 = vcmp.gt.f32.partialorder %v3250, 0.0
    %vm3299 = vcmp.gt.f32.partialorder %v3251, 0.0
    %vm3300 = vcmp.gt.f32.partialorder %v3252, 0.0
    %vm3301 = vcmp.gt.f32.partialorder %v3253, 0.0
    %vm3302 = vcmp.gt.f32.partialorder %v3254, 0.0
    %vm3303 = vcmp.gt.f32.partialorder %v3255, 0.0
    %vm3304 = vcmp.gt.f32.partialorder %v3256, 0.0
    %vm3305 = vcmp.gt.f32.partialorder %v3257, 0.0
    %vm3306 = vcmp.gt.f32.partialorder %v3258, 0.0
    %vm3307 = vcmp.gt.f32.partialorder %v3259, 0.0
    %vm3308 = vcmp.gt.f32.partialorder %v3260, 0.0
    %vm3309 = vcmp.gt.f32.partialorder %v3261, 0.0
    %vm3310 = vcmp.gt.f32.partialorder %v3262, 0.0
    %vm3311 = vcmp.gt.f32.partialorder %v3263, 0.0
    %vm3312 = vcmp.gt.f32.partialorder %v3264, 0.0
    %vm3313 = vcmp.gt.f32.partialorder %v3265, 0.0
    %vm3314 = vcmp.gt.f32.partialorder %v3266, 0.0
    %vm3315 = vcmp.gt.f32.partialorder %v3267, 0.0
    %vm3316 = vcmp.gt.f32.partialorder %v3268, 0.0
    %vm3317 = vcmp.gt.f32.partialorder %v3269, 0.0
    %vm3318 = vcmp.gt.f32.partialorder %v3270, 0.0
    %vm3319 = vcmp.gt.f32.partialorder %v3271, 0.0
    %vm3320 = vcmp.gt.f32.partialorder %v3272, 0.0
    %v3321 = vmin.f32 %v3225, 0.0
    %v3322 = vmin.f32 %v3226, 0.0
    %v3323 = vmin.f32 %v3227, 0.0
    %v3324 = vmin.f32 %v3228, 0.0
    %v3325 = vmin.f32 %v3229, 0.0
    %v3326 = vmin.f32 %v3230, 0.0
    %v3327 = vmin.f32 %v3231, 0.0
    %v3328 = vmin.f32 %v3232, 0.0
    %v3329 = vmin.f32 %v3233, 0.0
    %v3330 = vmin.f32 %v3234, 0.0
    %v3331 = vmin.f32 %v3235, 0.0
    %v3332 = vmin.f32 %v3236, 0.0
    %v3333 = vmin.f32 %v3237, 0.0
    %v3334 = vmin.f32 %v3238, 0.0
    %v3335 = vmin.f32 %v3239, 0.0
    %v3336 = vmin.f32 %v3240, 0.0
    %v3337 = vmin.f32 %v3241, 0.0
    %v3338 = vmin.f32 %v3242, 0.0
    %v3339 = vmin.f32 %v3243, 0.0
    %v3340 = vmin.f32 %v3244, 0.0
    %v3341 = vmin.f32 %v3245, 0.0
    %v3342 = vmin.f32 %v3246, 0.0
    %v3343 = vmin.f32 %v3247, 0.0
    %v3344 = vmin.f32 %v3248, 0.0
    %v3345 = vmin.f32 %v3249, 0.0
    %v3346 = vmin.f32 %v3250, 0.0
    %v3347 = vmin.f32 %v3251, 0.0
    %v3348 = vmin.f32 %v3252, 0.0
    %v3349 = vmin.f32 %v3253, 0.0
    %v3350 = vmin.f32 %v3254, 0.0
    %v3351 = vmin.f32 %v3255, 0.0
    %v3352 = vmin.f32 %v3256, 0.0
    %v3353 = vmin.f32 %v3257, 0.0
    %v3354 = vmin.f32 %v3258, 0.0
    %v3355 = vmin.f32 %v3259, 0.0
    %v3356 = vmin.f32 %v3260, 0.0
    %v3357 = vmin.f32 %v3261, 0.0
    %v3358 = vmin.f32 %v3262, 0.0
    %v3359 = vmin.f32 %v3263, 0.0
    %v3360 = vmin.f32 %v3264, 0.0
    %v3361 = vmin.f32 %v3265, 0.0
    %v3362 = vmin.f32 %v3266, 0.0
    %v3363 = vmin.f32 %v3267, 0.0
    %v3364 = vmin.f32 %v3268, 0.0
    %v3365 = vmin.f32 %v3269, 0.0
    %v3366 = vmin.f32 %v3270, 0.0
    %v3367 = vmin.f32 %v3271, 0.0
    %v3368 = vmin.f32 %v3272, 0.0
    %v3369 = vmul.f32 %v3321, 1.442695
    %v3370 = vpow.pop %v3369
    %v3371 = vmul.f32 %v3322, 1.442695
    %v3372 = vpow.pop %v3371
    %v3373 = vmul.f32 %v3323, 1.442695
    %v3374 = vpow.pop %v3373
    %v3375 = vmul.f32 %v3324, 1.442695
    %v3376 = vpow.pop %v3375
    %v3377 = vmul.f32 %v3325, 1.442695
    %v3378 = vpow.pop %v3377
    %v3379 = vmul.f32 %v3326, 1.442695
    %v3380 = vpow.pop %v3379
    %v3381 = vmul.f32 %v3327, 1.442695
    %v3382 = vpow.pop %v3381
    %v3383 = vmul.f32 %v3328, 1.442695
    %v3384 = vpow.pop %v3383
    %v3385 = vmul.f32 %v3329, 1.442695
    %v3386 = vpow.pop %v3385
    %v3387 = vmul.f32 %v3330, 1.442695
    %v3388 = vpow.pop %v3387
    %v3389 = vmul.f32 %v3331, 1.442695
    %v3390 = vpow.pop %v3389
    %v3391 = vmul.f32 %v3332, 1.442695
    %v3392 = vpow.pop %v3391
    %v3393 = vmul.f32 %v3333, 1.442695
    %v3394 = vpow.pop %v3393
    %v3395 = vmul.f32 %v3334, 1.442695
    %v3396 = vpow.pop %v3395
    %v3397 = vmul.f32 %v3335, 1.442695
    %v3398 = vpow.pop %v3397
    %v3399 = vmul.f32 %v3336, 1.442695
    %v3400 = vpow.pop %v3399
    %v3401 = vmul.f32 %v3337, 1.442695
    %v3402 = vpow.pop %v3401
    %v3403 = vmul.f32 %v3338, 1.442695
    %v3404 = vpow.pop %v3403
    %v3405 = vmul.f32 %v3339, 1.442695
    %v3406 = vpow.pop %v3405
    %v3407 = vmul.f32 %v3340, 1.442695
    %v3408 = vpow.pop %v3407
    %v3409 = vmul.f32 %v3341, 1.442695
    %v3410 = vpow.pop %v3409
    %v3411 = vmul.f32 %v3342, 1.442695
    %v3412 = vpow.pop %v3411
    %v3413 = vmul.f32 %v3343, 1.442695
    %v3414 = vpow.pop %v3413
    %v3415 = vmul.f32 %v3344, 1.442695
    %v3416 = vpow.pop %v3415
    %v3417 = vmul.f32 %v3345, 1.442695
    %v3418 = vpow.pop %v3417
    %v3419 = vmul.f32 %v3346, 1.442695
    %v3420 = vpow.pop %v3419
    %v3421 = vmul.f32 %v3347, 1.442695
    %v3422 = vpow.pop %v3421
    %v3423 = vmul.f32 %v3348, 1.442695
    %v3424 = vpow.pop %v3423
    %v3425 = vmul.f32 %v3349, 1.442695
    %v3426 = vpow.pop %v3425
    %v3427 = vmul.f32 %v3350, 1.442695
    %v3428 = vpow.pop %v3427
    %v3429 = vmul.f32 %v3351, 1.442695
    %v3430 = vpow.pop %v3429
    %v3431 = vmul.f32 %v3352, 1.442695
    %v3432 = vpow.pop %v3431
    %v3433 = vmul.f32 %v3353, 1.442695
    %v3434 = vpow.pop %v3433
    %v3435 = vmul.f32 %v3354, 1.442695
    %v3436 = vpow.pop %v3435
    %v3437 = vmul.f32 %v3355, 1.442695
    %v3438 = vpow.pop %v3437
    %v3439 = vmul.f32 %v3356, 1.442695
    %v3440 = vpow.pop %v3439
    %v3441 = vmul.f32 %v3357, 1.442695
    %v3442 = vpow.pop %v3441
    %v3443 = vmul.f32 %v3358, 1.442695
    %v3444 = vpow.pop %v3443
    %v3445 = vmul.f32 %v3359, 1.442695
    %v3446 = vpow.pop %v3445
    %v3447 = vmul.f32 %v3360, 1.442695
    %v3448 = vpow.pop %v3447
    %v3449 = vmul.f32 %v3361, 1.442695
    %v3450 = vpow.pop %v3449
    %v3451 = vmul.f32 %v3362, 1.442695
    %v3452 = vpow.pop %v3451
    %v3453 = vmul.f32 %v3363, 1.442695
    %v3454 = vpow.pop %v3453
    %v3455 = vmul.f32 %v3364, 1.442695
    %v3456 = vpow.pop %v3455
    %v3457 = vmul.f32 %v3365, 1.442695
    %v3458 = vpow.pop %v3457
    %v3459 = vmul.f32 %v3366, 1.442695
    %v3460 = vpow.pop %v3459
    %v3461 = vmul.f32 %v3367, 1.442695
    %v3462 = vpow.pop %v3461
    %v3463 = vmul.f32 %v3368, 1.442695
    %v3464 = vpow.pop %v3463
    %v3465 = vsub.f32 %v3370, 1.0
    %v3466 = vsub.f32 %v3372, 1.0
    %v3467 = vsub.f32 %v3374, 1.0
    %v3468 = vsub.f32 %v3376, 1.0
    %v3469 = vsub.f32 %v3378, 1.0
    %v3470 = vsub.f32 %v3380, 1.0
    %v3471 = vsub.f32 %v3382, 1.0
    %v3472 = vsub.f32 %v3384, 1.0
    %v3473 = vsub.f32 %v3386, 1.0
    %v3474 = vsub.f32 %v3388, 1.0
    %v3475 = vsub.f32 %v3390, 1.0
    %v3476 = vsub.f32 %v3392, 1.0
    %v3477 = vsub.f32 %v3394, 1.0
    %v3478 = vsub.f32 %v3396, 1.0
    %v3479 = vsub.f32 %v3398, 1.0
    %v3480 = vsub.f32 %v3400, 1.0
    %v3481 = vsub.f32 %v3402, 1.0
    %v3482 = vsub.f32 %v3404, 1.0
    %v3483 = vsub.f32 %v3406, 1.0
    %v3484 = vsub.f32 %v3408, 1.0
    %v3485 = vsub.f32 %v3410, 1.0
    %v3486 = vsub.f32 %v3412, 1.0
    %v3487 = vsub.f32 %v3414, 1.0
    %v3488 = vsub.f32 %v3416, 1.0
    %v3489 = vsub.f32 %v3418, 1.0
    %v3490 = vsub.f32 %v3420, 1.0
    %v3491 = vsub.f32 %v3422, 1.0
    %v3492 = vsub.f32 %v3424, 1.0
    %v3493 = vsub.f32 %v3426, 1.0
    %v3494 = vsub.f32 %v3428, 1.0
    %v3495 = vsub.f32 %v3430, 1.0
    %v3496 = vsub.f32 %v3432, 1.0
    %v3497 = vsub.f32 %v3434, 1.0
    %v3498 = vsub.f32 %v3436, 1.0
    %v3499 = vsub.f32 %v3438, 1.0
    %v3500 = vsub.f32 %v3440, 1.0
    %v3501 = vsub.f32 %v3442, 1.0
    %v3502 = vsub.f32 %v3444, 1.0
    %v3503 = vsub.f32 %v3446, 1.0
    %v3504 = vsub.f32 %v3448, 1.0
    %v3505 = vsub.f32 %v3450, 1.0
    %v3506 = vsub.f32 %v3452, 1.0
    %v3507 = vsub.f32 %v3454, 1.0
    %v3508 = vsub.f32 %v3456, 1.0
    %v3509 = vsub.f32 %v3458, 1.0
    %v3510 = vsub.f32 %v3460, 1.0
    %v3511 = vsub.f32 %v3462, 1.0
    %v3512 = vsub.f32 %v3464, 1.0
    %v3513 = vsel %vm3273, %v3225, %v3465
    %v3514 = vsel %vm3274, %v3226, %v3466
    %v3515 = vsel %vm3275, %v3227, %v3467
    %v3516 = vsel %vm3276, %v3228, %v3468
    %v3517 = vsel %vm3277, %v3229, %v3469
    %v3518 = vsel %vm3278, %v3230, %v3470
    %v3519 = vsel %vm3279, %v3231, %v3471
    %v3520 = vsel %vm3280, %v3232, %v3472
    %v3521 = vsel %vm3281, %v3233, %v3473
    %v3522 = vsel %vm3282, %v3234, %v3474
    %v3523 = vsel %vm3283, %v3235, %v3475
    %v3524 = vsel %vm3284, %v3236, %v3476
    %v3525 = vsel %vm3285, %v3237, %v3477
    %v3526 = vsel %vm3286, %v3238, %v3478
    %v3527 = vsel %vm3287, %v3239, %v3479
    %v3528 = vsel %vm3288, %v3240, %v3480
    %v3529 = vsel %vm3289, %v3241, %v3481
    %v3530 = vsel %vm3290, %v3242, %v3482
    %v3531 = vsel %vm3291, %v3243, %v3483
    %v3532 = vsel %vm3292, %v3244, %v3484
    %v3533 = vsel %vm3293, %v3245, %v3485
    %v3534 = vsel %vm3294, %v3246, %v3486
    %v3535 = vsel %vm3295, %v3247, %v3487
    %v3536 = vsel %vm3296, %v3248, %v3488
    %v3537 = vsel %vm3297, %v3249, %v3489
    %v3538 = vsel %vm3298, %v3250, %v3490
    %v3539 = vsel %vm3299, %v3251, %v3491
    %v3540 = vsel %vm3300, %v3252, %v3492
    %v3541 = vsel %vm3301, %v3253, %v3493
    %v3542 = vsel %vm3302, %v3254, %v3494
    %v3543 = vsel %vm3303, %v3255, %v3495
    %v3544 = vsel %vm3304, %v3256, %v3496
    %v3545 = vsel %vm3305, %v3257, %v3497
    %v3546 = vsel %vm3306, %v3258, %v3498
    %v3547 = vsel %vm3307, %v3259, %v3499
    %v3548 = vsel %vm3308, %v3260, %v3500
    %v3549 = vsel %vm3309, %v3261, %v3501
    %v3550 = vsel %vm3310, %v3262, %v3502
    %v3551 = vsel %vm3311, %v3263, %v3503
    %v3552 = vsel %vm3312, %v3264, %v3504
    %v3553 = vsel %vm3313, %v3265, %v3505
    %v3554 = vsel %vm3314, %v3266, %v3506
    %v3555 = vsel %vm3315, %v3267, %v3507
    %v3556 = vsel %vm3316, %v3268, %v3508
    %v3557 = vsel %vm3317, %v3269, %v3509
    %v3558 = vsel %vm3318, %v3270, %v3510
    %v3559 = vsel %vm3319, %v3271, %v3511
    %v3560 = vsel %vm3320, %v3272, %v3512
    %v3561 = vpack.c.bf16 %v3525, %v3513
    %v3562 = vpack.c.bf16 %v3526, %v3514
    %v3563 = vpack.c.bf16 %v3527, %v3515
    %v3564 = vpack.c.bf16 %v3528, %v3516
    %v3565 = vpack.c.bf16 %v3529, %v3517
    %v3566 = vpack.c.bf16 %v3530, %v3518
    %v3567 = vpack.c.bf16 %v3531, %v3519
    %v3568 = vpack.c.bf16 %v3532, %v3520
    %v3569 = vpack.c.bf16 %v3533, %v3521
    %v3570 = vpack.c.bf16 %v3534, %v3522
    %v3571 = vpack.c.bf16 %v3535, %v3523
    %v3572 = vpack.c.bf16 %v3536, %v3524
    %v3573 = vpack.c.bf16 %v3549, %v3537
    %v3574 = vpack.c.bf16 %v3550, %v3538
    %v3575 = vpack.c.bf16 %v3551, %v3539
    %v3576 = vpack.c.bf16 %v3552, %v3540
    %v3577 = vpack.c.bf16 %v3553, %v3541
    %v3578 = vpack.c.bf16 %v3554, %v3542
    %v3579 = vpack.c.bf16 %v3555, %v3543
    %v3580 = vpack.c.bf16 %v3556, %v3544
    %v3581 = vpack.c.bf16 %v3557, %v3545
    %v3582 = vpack.c.bf16 %v3558, %v3546
    %v3583 = vpack.c.bf16 %v3559, %v3547
    %v3584 = vpack.c.bf16 %v3560, %v3548
    %s3585 = scalar_lea.vmem %s3, 64
    %v3586 = vld [vmem:[%s3585] sm:$0xff]
    %v3587 = vld [vmem:[%s3585 + $0x8] sm:$0xff]
    %v3588 = vld [vmem:[%s3585 + $0x10] sm:$0xff]
    %v3589 = vld [vmem:[%s3585 + $0x18] sm:$0xff]
    %s3590 = scalar_lea.vmem %s2, 48
    %v3591 = vld [vmem:[%s3590] sm:$0xf]
    %v3592 = vld [vmem:[%s3590 + $0x4] sm:$0xf]
    %v3593 = vld [vmem:[%s3590 + $0x8] sm:$0xf]
    %v3594 = vld [vmem:[%s3590 + $0xc] sm:$0xf]
    %s3595 = scalar_lea.vmem %s2, 64
    %v3596 = vld [vmem:[%s3595] sm:$0xf]
    %v3597 = vld [vmem:[%s3595 + $0x4] sm:$0xf]
    %v3598 = vld [vmem:[%s3595 + $0x8] sm:$0xf]
    %v3599 = vld [vmem:[%s3595 + $0xc] sm:$0xf]
    %v3604 = vunpack.c.l.b16 %v3596
    %v3605 = vunpack.c.l.b16 %v3597
    %v3606 = vunpack.c.l.b16 %v3598
    %v3607 = vunpack.c.l.b16 %v3599
    %v3608 = vpack.c.b16 %v3605, %v3604
    %v3609 = vpack.c.b16 %v3607, %v3606
    %v3611 = vsel %vm2024, %v3608, 0
    %v3614 = vsel %vm2024, %v3609, 0
    %3616 = vmatprep.subr.bf16.mxu0 0
    %3617 = vmatpush1.bf16.msra.mxu0 0
    %3618 = vmatprep.subr.bf16.mxu0 0
    %3619 = vmatpush1.bf16.msra.mxu0 0
    %3620 = vmatprep.subr.bf16.mxu0 0
    %3621 = vmatpush1.bf16.msra.mxu0 0
    %3622 = vmatprep.subr.bf16.mxu0 0
    %3623 = vmatpush1.bf16.msra.mxu0 0
    %3624 = vmatprep.subr.bf16.mxu0 0
    %3625 = vmatpush1.bf16.msra.mxu0 0
    %3626 = vmatprep.subr.bf16.mxu0 0
    %3627 = vmatpush1.bf16.msra.mxu0 0
    %3628 = vmatprep.subr.bf16.mxu0 %v3576
    %3629 = vmatpush1.bf16.msra.mxu0 %v3575
    %3630 = vmatprep.subr.bf16.mxu0 %v3564
    %3631 = vmatpush1.bf16.msra.mxu0 %v3563
    %3632 = vmatprep.subr.bf16.mxu0 0
    %3633 = vmatpush2.bf16.msra.mxu0 0
    %3634 = vmatprep.subr.bf16.mxu0 0
    %3635 = vmatpush2.bf16.msra.mxu0 0
    %3636 = vmatprep.subr.bf16.mxu0 0
    %3637 = vmatpush2.bf16.msra.mxu0 0
    %3638 = vmatprep.subr.bf16.mxu0 0
    %3639 = vmatpush2.bf16.msra.mxu0 0
    %3640 = vmatprep.subr.bf16.mxu0 0
    %3641 = vmatpush2.bf16.msra.mxu0 0
    %3642 = vmatprep.subr.bf16.mxu0 0
    %3643 = vmatpush2.bf16.msra.mxu0 0
    %3644 = vmatprep.subr.bf16.mxu0 0
    %3645 = vmatpush2.bf16.msra.mxu0 0
    %3646 = vmatprep.subr.bf16.mxu0 0
    %3647 = vmatpush2.bf16.msra.mxu0 0
    %3648 = vmatprep.mubr.bf16.mxu0 0
    %3649 = vmatmul.mubr.bf16.gmra.mxu0 %v3611
    %v3650 = vpop.f32.mrf.mxu0
    %v3651 = vadd.f32 0.0, %v3650
    %v3652 = vpop.f32.mrf.mxu0
    %v3653 = vpop.f32.mrf.mxu0
    %v3654 = vadd.f32 0.0, %v3653
    %v3655 = vpop.f32.mrf.mxu0
    %3656 = vmatprep.mubr.bf16.mxu0 0
    %3657 = vmatmul.mubr.bf16.gmra.mxu0 %v3614
    %v3658 = vpop.f32.mrf.mxu0
    %v3659 = vadd.f32 0.0, %v3658
    %v3660 = vpop.f32.mrf.mxu0
    %v3661 = vpop.f32.mrf.mxu0
    %v3662 = vadd.f32 0.0, %v3661
    %v3663 = vpop.f32.mrf.mxu0
    %3664 = vdwg.mxu0
    %3665 = vmatprep.subr.bf16.mxu0 0
    %3666 = vmatpush1.bf16.msra.mxu0 0
    %3667 = vmatprep.subr.bf16.mxu0 0
    %3668 = vmatpush1.bf16.msra.mxu0 0
    %3669 = vmatprep.subr.bf16.mxu0 0
    %3670 = vmatpush1.bf16.msra.mxu0 0
    %3671 = vmatprep.subr.bf16.mxu0 0
    %3672 = vmatpush1.bf16.msra.mxu0 0
    %3673 = vmatprep.subr.bf16.mxu0 0
    %3674 = vmatpush1.bf16.msra.mxu0 0
    %3675 = vmatprep.subr.bf16.mxu0 0
    %3676 = vmatpush1.bf16.msra.mxu0 0
    %3677 = vmatprep.subr.bf16.mxu0 %v3580
    %3678 = vmatpush1.bf16.msra.mxu0 %v3579
    %3679 = vmatprep.subr.bf16.mxu0 %v3568
    %3680 = vmatpush1.bf16.msra.mxu0 %v3567
    %3681 = vmatprep.subr.bf16.mxu0 0
    %3682 = vmatpush2.bf16.msra.mxu0 0
    %3683 = vmatprep.subr.bf16.mxu0 0
    %3684 = vmatpush2.bf16.msra.mxu0 0
    %3685 = vmatprep.subr.bf16.mxu0 0
    %3686 = vmatpush2.bf16.msra.mxu0 0
    %3687 = vmatprep.subr.bf16.mxu0 0
    %3688 = vmatpush2.bf16.msra.mxu0 0
    %3689 = vmatprep.subr.bf16.mxu0 0
    %3690 = vmatpush2.bf16.msra.mxu0 0
    %3691 = vmatprep.subr.bf16.mxu0 0
    %3692 = vmatpush2.bf16.msra.mxu0 0
    %3693 = vmatprep.subr.bf16.mxu0 0
    %3694 = vmatpush2.bf16.msra.mxu0 0
    %3695 = vmatprep.subr.bf16.mxu0 0
    %3696 = vmatpush2.bf16.msra.mxu0 0
    %3697 = vmatprep.mubr.bf16.mxu0 0
    %3698 = vmatmul.mubr.bf16.gmra.mxu0 %v3611
    %v3699 = vpop.f32.mrf.mxu0
    %v3700 = vadd.f32 0.0, %v3699
    %v3701 = vpop.f32.mrf.mxu0
    %v3702 = vpop.f32.mrf.mxu0
    %v3703 = vadd.f32 0.0, %v3702
    %v3704 = vpop.f32.mrf.mxu0
    %3705 = vmatprep.mubr.bf16.mxu0 0
    %3706 = vmatmul.mubr.bf16.gmra.mxu0 %v3614
    %v3707 = vpop.f32.mrf.mxu0
    %v3708 = vadd.f32 0.0, %v3707
    %v3709 = vpop.f32.mrf.mxu0
    %v3710 = vpop.f32.mrf.mxu0
    %v3711 = vadd.f32 0.0, %v3710
    %v3712 = vpop.f32.mrf.mxu0
    %3713 = vdwg.mxu0
    %3714 = vmatprep.subr.bf16.mxu0 0
    %3715 = vmatpush1.bf16.msra.mxu0 0
    %3716 = vmatprep.subr.bf16.mxu0 0
    %3717 = vmatpush1.bf16.msra.mxu0 0
    %3718 = vmatprep.subr.bf16.mxu0 0
    %3719 = vmatpush1.bf16.msra.mxu0 0
    %3720 = vmatprep.subr.bf16.mxu0 0
    %3721 = vmatpush1.bf16.msra.mxu0 0
    %3722 = vmatprep.subr.bf16.mxu0 0
    %3723 = vmatpush1.bf16.msra.mxu0 0
    %3724 = vmatprep.subr.bf16.mxu0 0
    %3725 = vmatpush1.bf16.msra.mxu0 0
    %3726 = vmatprep.subr.bf16.mxu0 0
    %3727 = vmatpush1.bf16.msra.mxu0 %v3583
    %3728 = vmatprep.subr.bf16.mxu0 0
    %3729 = vmatpush1.bf16.msra.mxu0 %v3571
    %3730 = vmatprep.subr.bf16.mxu0 0
    %3731 = vmatpush2.bf16.msra.mxu0 0
    %3732 = vmatprep.subr.bf16.mxu0 0
    %3733 = vmatpush2.bf16.msra.mxu0 0
    %3734 = vmatprep.subr.bf16.mxu0 0
    %3735 = vmatpush2.bf16.msra.mxu0 0
    %3736 = vmatprep.subr.bf16.mxu0 0
    %3737 = vmatpush2.bf16.msra.mxu0 0
    %3738 = vmatprep.subr.bf16.mxu0 0
    %3739 = vmatpush2.bf16.msra.mxu0 0
    %3740 = vmatprep.subr.bf16.mxu0 0
    %3741 = vmatpush2.bf16.msra.mxu0 0
    %3742 = vmatprep.subr.bf16.mxu0 0
    %3743 = vmatpush2.bf16.msra.mxu0 0
    %3744 = vmatprep.subr.bf16.mxu0 0
    %3745 = vmatpush2.bf16.msra.mxu0 0
    %3746 = vmatprep.mubr.bf16.mxu0 0
    %3747 = vmatmul.mubr.bf16.gmra.mxu0 %v3611
    %v3748 = vpop.f32.mrf.mxu0
    %v3749 = vadd.f32 0.0, %v3748
    %v3750 = vpop.f32.mrf.mxu0
    %v3751 = vpop.f32.mrf.mxu0
    %v3752 = vadd.f32 0.0, %v3751
    %v3753 = vpop.f32.mrf.mxu0
    %3754 = vmatprep.mubr.bf16.mxu0 0
    %3755 = vmatmul.mubr.bf16.gmra.mxu0 %v3614
    %v3756 = vpop.f32.mrf.mxu0
    %v3757 = vadd.f32 0.0, %v3756
    %v3758 = vpop.f32.mrf.mxu0
    %v3759 = vpop.f32.mrf.mxu0
    %v3760 = vadd.f32 0.0, %v3759
    %v3761 = vpop.f32.mrf.mxu0
    %3762 = vdwg.mxu0
    %v3767 = vunpack.c.l.b16 %v3591
    %v3768 = vunpack.c.l.b16 %v3592
    %v3769 = vunpack.c.l.b16 %v3593
    %v3770 = vunpack.c.l.b16 %v3594
    %v3771 = vpack.c.b16 %v3768, %v3767
    %v3772 = vpack.c.b16 %v3770, %v3769
    %v3774 = vsel %vm2024, %v3771, 0
    %v3777 = vsel %vm2024, %v3772, 0
    %3779 = vmatprep.subr.bf16.mxu0 0
    %3780 = vmatpush1.bf16.msra.mxu0 0
    %3781 = vmatprep.subr.bf16.mxu0 0
    %3782 = vmatpush1.bf16.msra.mxu0 0
    %3783 = vmatprep.subr.bf16.mxu0 0
    %3784 = vmatpush1.bf16.msra.mxu0 0
    %3785 = vmatprep.subr.bf16.mxu0 0
    %3786 = vmatpush1.bf16.msra.mxu0 0
    %3787 = vmatprep.subr.bf16.mxu0 0
    %3788 = vmatpush1.bf16.msra.mxu0 0
    %3789 = vmatprep.subr.bf16.mxu0 0
    %3790 = vmatpush1.bf16.msra.mxu0 0
    %3791 = vmatprep.subr.bf16.mxu0 %v3574
    %3792 = vmatpush1.bf16.msra.mxu0 %v3573
    %3793 = vmatprep.subr.bf16.mxu0 %v3562
    %3794 = vmatpush1.bf16.msra.mxu0 %v3561
    %3795 = vmatprep.subr.bf16.mxu0 0
    %3796 = vmatpush2.bf16.msra.mxu0 0
    %3797 = vmatprep.subr.bf16.mxu0 0
    %3798 = vmatpush2.bf16.msra.mxu0 0
    %3799 = vmatprep.subr.bf16.mxu0 0
    %3800 = vmatpush2.bf16.msra.mxu0 0
    %3801 = vmatprep.subr.bf16.mxu0 0
    %3802 = vmatpush2.bf16.msra.mxu0 0
    %3803 = vmatprep.subr.bf16.mxu0 0
    %3804 = vmatpush2.bf16.msra.mxu0 0
    %3805 = vmatprep.subr.bf16.mxu0 0
    %3806 = vmatpush2.bf16.msra.mxu0 0
    %3807 = vmatprep.subr.bf16.mxu0 0
    %3808 = vmatpush2.bf16.msra.mxu0 0
    %3809 = vmatprep.subr.bf16.mxu0 0
    %3810 = vmatpush2.bf16.msra.mxu0 0
    %3811 = vmatprep.mubr.bf16.mxu0 0
    %3812 = vmatmul.mubr.bf16.gmra.mxu0 %v3774
    %v3813 = vpop.f32.mrf.mxu0
    %v3814 = vadd.f32 %v3651, %v3813
    %v3815 = vpop.f32.mrf.mxu0
    %v3816 = vpop.f32.mrf.mxu0
    %v3817 = vadd.f32 %v3654, %v3816
    %v3818 = vpop.f32.mrf.mxu0
    %3819 = vmatprep.mubr.bf16.mxu0 0
    %3820 = vmatmul.mubr.bf16.gmra.mxu0 %v3777
    %v3821 = vpop.f32.mrf.mxu0
    %v3822 = vadd.f32 %v3659, %v3821
    %v3823 = vpop.f32.mrf.mxu0
    %v3824 = vpop.f32.mrf.mxu0
    %v3825 = vadd.f32 %v3662, %v3824
    %v3826 = vpop.f32.mrf.mxu0
    %3827 = vdwg.mxu0
    %3828 = vmatprep.subr.bf16.mxu0 0
    %3829 = vmatpush1.bf16.msra.mxu0 0
    %3830 = vmatprep.subr.bf16.mxu0 0
    %3831 = vmatpush1.bf16.msra.mxu0 0
    %3832 = vmatprep.subr.bf16.mxu0 0
    %3833 = vmatpush1.bf16.msra.mxu0 0
    %3834 = vmatprep.subr.bf16.mxu0 0
    %3835 = vmatpush1.bf16.msra.mxu0 0
    %3836 = vmatprep.subr.bf16.mxu0 0
    %3837 = vmatpush1.bf16.msra.mxu0 0
    %3838 = vmatprep.subr.bf16.mxu0 0
    %3839 = vmatpush1.bf16.msra.mxu0 0
    %3840 = vmatprep.subr.bf16.mxu0 %v3578
    %3841 = vmatpush1.bf16.msra.mxu0 %v3577
    %3842 = vmatprep.subr.bf16.mxu0 %v3566
    %3843 = vmatpush1.bf16.msra.mxu0 %v3565
    %3844 = vmatprep.subr.bf16.mxu0 0
    %3845 = vmatpush2.bf16.msra.mxu0 0
    %3846 = vmatprep.subr.bf16.mxu0 0
    %3847 = vmatpush2.bf16.msra.mxu0 0
    %3848 = vmatprep.subr.bf16.mxu0 0
    %3849 = vmatpush2.bf16.msra.mxu0 0
    %3850 = vmatprep.subr.bf16.mxu0 0
    %3851 = vmatpush2.bf16.msra.mxu0 0
    %3852 = vmatprep.subr.bf16.mxu0 0
    %3853 = vmatpush2.bf16.msra.mxu0 0
    %3854 = vmatprep.subr.bf16.mxu0 0
    %3855 = vmatpush2.bf16.msra.mxu0 0
    %3856 = vmatprep.subr.bf16.mxu0 0
    %3857 = vmatpush2.bf16.msra.mxu0 0
    %3858 = vmatprep.subr.bf16.mxu0 0
    %3859 = vmatpush2.bf16.msra.mxu0 0
    %3860 = vmatprep.mubr.bf16.mxu0 0
    %3861 = vmatmul.mubr.bf16.gmra.mxu0 %v3774
    %v3862 = vpop.f32.mrf.mxu0
    %v3863 = vadd.f32 %v3700, %v3862
    %v3864 = vpop.f32.mrf.mxu0
    %v3865 = vpop.f32.mrf.mxu0
    %v3866 = vadd.f32 %v3703, %v3865
    %v3867 = vpop.f32.mrf.mxu0
    %3868 = vmatprep.mubr.bf16.mxu0 0
    %3869 = vmatmul.mubr.bf16.gmra.mxu0 %v3777
    %v3870 = vpop.f32.mrf.mxu0
    %v3871 = vadd.f32 %v3708, %v3870
    %v3872 = vpop.f32.mrf.mxu0
    %v3873 = vpop.f32.mrf.mxu0
    %v3874 = vadd.f32 %v3711, %v3873
    %v3875 = vpop.f32.mrf.mxu0
    %3876 = vdwg.mxu0
    %3877 = vmatprep.subr.bf16.mxu0 0
    %3878 = vmatpush1.bf16.msra.mxu0 0
    %3879 = vmatprep.subr.bf16.mxu0 0
    %3880 = vmatpush1.bf16.msra.mxu0 0
    %3881 = vmatprep.subr.bf16.mxu0 0
    %3882 = vmatpush1.bf16.msra.mxu0 0
    %3883 = vmatprep.subr.bf16.mxu0 0
    %3884 = vmatpush1.bf16.msra.mxu0 0
    %3885 = vmatprep.subr.bf16.mxu0 0
    %3886 = vmatpush1.bf16.msra.mxu0 0
    %3887 = vmatprep.subr.bf16.mxu0 0
    %3888 = vmatpush1.bf16.msra.mxu0 0
    %3889 = vmatprep.subr.bf16.mxu0 0
    %3890 = vmatpush1.bf16.msra.mxu0 %v3581
    %3891 = vmatprep.subr.bf16.mxu0 0
    %3892 = vmatpush1.bf16.msra.mxu0 %v3569
    %3893 = vmatprep.subr.bf16.mxu0 0
    %3894 = vmatpush2.bf16.msra.mxu0 0
    %3895 = vmatprep.subr.bf16.mxu0 0
    %3896 = vmatpush2.bf16.msra.mxu0 0
    %3897 = vmatprep.subr.bf16.mxu0 0
    %3898 = vmatpush2.bf16.msra.mxu0 0
    %3899 = vmatprep.subr.bf16.mxu0 0
    %3900 = vmatpush2.bf16.msra.mxu0 0
    %3901 = vmatprep.subr.bf16.mxu0 0
    %3902 = vmatpush2.bf16.msra.mxu0 0
    %3903 = vmatprep.subr.bf16.mxu0 0
    %3904 = vmatpush2.bf16.msra.mxu0 0
    %3905 = vmatprep.subr.bf16.mxu0 0
    %3906 = vmatpush2.bf16.msra.mxu0 0
    %3907 = vmatprep.subr.bf16.mxu0 0
    %3908 = vmatpush2.bf16.msra.mxu0 0
    %3909 = vmatprep.mubr.bf16.mxu0 0
    %3910 = vmatmul.mubr.bf16.gmra.mxu0 %v3774
    %v3911 = vpop.f32.mrf.mxu0
    %v3912 = vadd.f32 %v3749, %v3911
    %v3913 = vpop.f32.mrf.mxu0
    %v3914 = vpop.f32.mrf.mxu0
    %v3915 = vadd.f32 %v3752, %v3914
    %v3916 = vpop.f32.mrf.mxu0
    %3917 = vmatprep.mubr.bf16.mxu0 0
    %3918 = vmatmul.mubr.bf16.gmra.mxu0 %v3777
    %v3919 = vpop.f32.mrf.mxu0
    %v3920 = vadd.f32 %v3757, %v3919
    %v3921 = vpop.f32.mrf.mxu0
    %v3922 = vpop.f32.mrf.mxu0
    %v3923 = vadd.f32 %v3760, %v3922
    %v3924 = vpop.f32.mrf.mxu0
    %3925 = vdwg.mxu0
    %s3926 = scalar_lea.vmem %s2, 80
    %v3927 = vld [vmem:[%s3926] sm:$0xf]
    %v3928 = vld [vmem:[%s3926 + $0x4] sm:$0xf]
    %v3929 = vld [vmem:[%s3926 + $0x8] sm:$0xf]
    %v3930 = vld [vmem:[%s3926 + $0xc] sm:$0xf]
    %v3935 = vunpack.c.l.b16 %v3927
    %v3936 = vunpack.c.l.b16 %v3928
    %v3937 = vunpack.c.l.b16 %v3929
    %v3938 = vunpack.c.l.b16 %v3930
    %v3939 = vpack.c.b16 %v3936, %v3935
    %v3940 = vpack.c.b16 %v3938, %v3937
    %v3942 = vsel %vm2024, %v3939, 0
    %v3945 = vsel %vm2024, %v3940, 0
    %3947 = vmatprep.subr.bf16.mxu0 0
    %3948 = vmatpush1.bf16.msra.mxu0 0
    %3949 = vmatprep.subr.bf16.mxu0 0
    %3950 = vmatpush1.bf16.msra.mxu0 0
    %3951 = vmatprep.subr.bf16.mxu0 0
    %3952 = vmatpush1.bf16.msra.mxu0 0
    %3953 = vmatprep.subr.bf16.mxu0 0
    %3954 = vmatpush1.bf16.msra.mxu0 0
    %3955 = vmatprep.subr.bf16.mxu0 0
    %3956 = vmatpush1.bf16.msra.mxu0 0
    %3957 = vmatprep.subr.bf16.mxu0 0
    %3958 = vmatpush1.bf16.msra.mxu0 0
    %3959 = vmatprep.subr.bf16.mxu0 %v3578
    %3960 = vmatpush1.bf16.msra.mxu0 %v3577
    %3961 = vmatprep.subr.bf16.mxu0 %v3566
    %3962 = vmatpush1.bf16.msra.mxu0 %v3565
    %3963 = vmatprep.subr.bf16.mxu0 0
    %3964 = vmatpush2.bf16.msra.mxu0 0
    %3965 = vmatprep.subr.bf16.mxu0 0
    %3966 = vmatpush2.bf16.msra.mxu0 0
    %3967 = vmatprep.subr.bf16.mxu0 0
    %3968 = vmatpush2.bf16.msra.mxu0 0
    %3969 = vmatprep.subr.bf16.mxu0 0
    %3970 = vmatpush2.bf16.msra.mxu0 0
    %3971 = vmatprep.subr.bf16.mxu0 0
    %3972 = vmatpush2.bf16.msra.mxu0 0
    %3973 = vmatprep.subr.bf16.mxu0 0
    %3974 = vmatpush2.bf16.msra.mxu0 0
    %3975 = vmatprep.subr.bf16.mxu0 0
    %3976 = vmatpush2.bf16.msra.mxu0 0
    %3977 = vmatprep.subr.bf16.mxu0 0
    %3978 = vmatpush2.bf16.msra.mxu0 0
    %3979 = vmatprep.mubr.bf16.mxu0 0
    %3980 = vmatmul.mubr.bf16.gmra.mxu0 %v3942
    %v3981 = vpop.f32.mrf.mxu0
    %v3982 = vadd.f32 0.0, %v3981
    %v3983 = vpop.f32.mrf.mxu0
    %v3984 = vpop.f32.mrf.mxu0
    %v3985 = vadd.f32 0.0, %v3984
    %v3986 = vpop.f32.mrf.mxu0
    %3987 = vmatprep.mubr.bf16.mxu0 0
    %3988 = vmatmul.mubr.bf16.gmra.mxu0 %v3945
    %v3989 = vpop.f32.mrf.mxu0
    %v3990 = vadd.f32 0.0, %v3989
    %v3991 = vpop.f32.mrf.mxu0
    %v3992 = vpop.f32.mrf.mxu0
    %v3993 = vadd.f32 0.0, %v3992
    %v3994 = vpop.f32.mrf.mxu0
    %3995 = vdwg.mxu0
    %3996 = vmatprep.subr.bf16.mxu0 0
    %3997 = vmatpush1.bf16.msra.mxu0 0
    %3998 = vmatprep.subr.bf16.mxu0 0
    %3999 = vmatpush1.bf16.msra.mxu0 0
    %4000 = vmatprep.subr.bf16.mxu0 0
    %4001 = vmatpush1.bf16.msra.mxu0 0
    %4002 = vmatprep.subr.bf16.mxu0 0
    %4003 = vmatpush1.bf16.msra.mxu0 0
    %4004 = vmatprep.subr.bf16.mxu0 0
    %4005 = vmatpush1.bf16.msra.mxu0 0
    %4006 = vmatprep.subr.bf16.mxu0 0
    %4007 = vmatpush1.bf16.msra.mxu0 0
    %4008 = vmatprep.subr.bf16.mxu0 %v3582
    %4009 = vmatpush1.bf16.msra.mxu0 %v3581
    %4010 = vmatprep.subr.bf16.mxu0 %v3570
    %4011 = vmatpush1.bf16.msra.mxu0 %v3569
    %4012 = vmatprep.subr.bf16.mxu0 0
    %4013 = vmatpush2.bf16.msra.mxu0 0
    %4014 = vmatprep.subr.bf16.mxu0 0
    %4015 = vmatpush2.bf16.msra.mxu0 0
    %4016 = vmatprep.subr.bf16.mxu0 0
    %4017 = vmatpush2.bf16.msra.mxu0 0
    %4018 = vmatprep.subr.bf16.mxu0 0
    %4019 = vmatpush2.bf16.msra.mxu0 0
    %4020 = vmatprep.subr.bf16.mxu0 0
    %4021 = vmatpush2.bf16.msra.mxu0 0
    %4022 = vmatprep.subr.bf16.mxu0 0
    %4023 = vmatpush2.bf16.msra.mxu0 0
    %4024 = vmatprep.subr.bf16.mxu0 0
    %4025 = vmatpush2.bf16.msra.mxu0 0
    %4026 = vmatprep.subr.bf16.mxu0 0
    %4027 = vmatpush2.bf16.msra.mxu0 0
    %4028 = vmatprep.mubr.bf16.mxu0 0
    %4029 = vmatmul.mubr.bf16.gmra.mxu0 %v3942
    %v4030 = vpop.f32.mrf.mxu0
    %v4031 = vadd.f32 0.0, %v4030
    %v4032 = vpop.f32.mrf.mxu0
    %v4033 = vpop.f32.mrf.mxu0
    %v4034 = vadd.f32 0.0, %v4033
    %v4035 = vpop.f32.mrf.mxu0
    %4036 = vmatprep.mubr.bf16.mxu0 0
    %4037 = vmatmul.mubr.bf16.gmra.mxu0 %v3945
    %v4038 = vpop.f32.mrf.mxu0
    %v4039 = vadd.f32 0.0, %v4038
    %v4040 = vpop.f32.mrf.mxu0
    %v4041 = vpop.f32.mrf.mxu0
    %v4042 = vadd.f32 0.0, %v4041
    %v4043 = vpop.f32.mrf.mxu0
    %4044 = vdwg.mxu0
    %4045 = vmatprep.subr.bf16.mxu0 0
    %4046 = vmatpush1.bf16.msra.mxu0 0
    %4047 = vmatprep.subr.bf16.mxu0 0
    %4048 = vmatpush1.bf16.msra.mxu0 0
    %4049 = vmatprep.subr.bf16.mxu0 0
    %4050 = vmatpush1.bf16.msra.mxu0 0
    %4051 = vmatprep.subr.bf16.mxu0 0
    %4052 = vmatpush1.bf16.msra.mxu0 0
    %4053 = vmatprep.subr.bf16.mxu0 0
    %4054 = vmatpush1.bf16.msra.mxu0 0
    %4055 = vmatprep.subr.bf16.mxu0 0
    %4056 = vmatpush1.bf16.msra.mxu0 0
    %4057 = vmatprep.subr.bf16.mxu0 0
    %4058 = vmatpush1.bf16.msra.mxu0 %v3584
    %4059 = vmatprep.subr.bf16.mxu0 0
    %4060 = vmatpush1.bf16.msra.mxu0 %v3572
    %4061 = vmatprep.subr.bf16.mxu0 0
    %4062 = vmatpush2.bf16.msra.mxu0 0
    %4063 = vmatprep.subr.bf16.mxu0 0
    %4064 = vmatpush2.bf16.msra.mxu0 0
    %4065 = vmatprep.subr.bf16.mxu0 0
    %4066 = vmatpush2.bf16.msra.mxu0 0
    %4067 = vmatprep.subr.bf16.mxu0 0
    %4068 = vmatpush2.bf16.msra.mxu0 0
    %4069 = vmatprep.subr.bf16.mxu0 0
    %4070 = vmatpush2.bf16.msra.mxu0 0
    %4071 = vmatprep.subr.bf16.mxu0 0
    %4072 = vmatpush2.bf16.msra.mxu0 0
    %4073 = vmatprep.subr.bf16.mxu0 0
    %4074 = vmatpush2.bf16.msra.mxu0 0
    %4075 = vmatprep.subr.bf16.mxu0 0
    %4076 = vmatpush2.bf16.msra.mxu0 0
    %4077 = vmatprep.mubr.bf16.mxu0 0
    %4078 = vmatmul.mubr.bf16.gmra.mxu0 %v3942
    %v4079 = vpop.f32.mrf.mxu0
    %v4080 = vadd.f32 0.0, %v4079
    %v4081 = vpop.f32.mrf.mxu0
    %v4082 = vpop.f32.mrf.mxu0
    %v4083 = vadd.f32 0.0, %v4082
    %v4084 = vpop.f32.mrf.mxu0
    %4085 = vmatprep.mubr.bf16.mxu0 0
    %4086 = vmatmul.mubr.bf16.gmra.mxu0 %v3945
    %v4087 = vpop.f32.mrf.mxu0
    %v4088 = vadd.f32 0.0, %v4087
    %v4089 = vpop.f32.mrf.mxu0
    %v4090 = vpop.f32.mrf.mxu0
    %v4091 = vadd.f32 0.0, %v4090
    %v4092 = vpop.f32.mrf.mxu0
    %4093 = vdwg.mxu0
    %v4094 = vadd.f32 %v3814, %v3982
    %v4095 = vadd.f32 %v3863, %v4031
    %v4096 = vadd.f32 %v3912, %v4080
    %v4097 = vadd.f32 %v3817, %v3985
    %v4098 = vadd.f32 %v3866, %v4034
    %v4099 = vadd.f32 %v3915, %v4083
    %v4100 = vadd.f32 %v3822, %v3990
    %v4101 = vadd.f32 %v3871, %v4039
    %v4102 = vadd.f32 %v3920, %v4088
    %v4103 = vadd.f32 %v3825, %v3993
    %v4104 = vadd.f32 %v3874, %v4042
    %v4105 = vadd.f32 %v3923, %v4091
    %4107 = vset.pattern.permute.xlu0 0
    %4108 = vperm.xlu0 %4107, %v3586
    %v4109 = vpop.permute.xlu0 %4108
    %4112 = vset.pattern.permute.xlu0 0
    %4113 = vperm.xlu0 %4112, %v3587
    %v4114 = vpop.permute.xlu0 %4113
    %4117 = vset.pattern.permute.xlu0 0
    %4118 = vperm.xlu0 %4117, %v3588
    %v4119 = vpop.permute.xlu0 %4118
    %4122 = vset.pattern.permute.xlu0 0
    %4123 = vperm.xlu0 %4122, %v3589
    %v4124 = vpop.permute.xlu0 %4123
    %v4126 = vadd.f32 %v4094, %v4109
    %v4127 = vadd.f32 %v4095, %v4109
    %v4128 = vadd.f32 %v4096, %v4109
    %v4129 = vadd.f32 %v4097, %v4114
    %v4130 = vadd.f32 %v4098, %v4114
    %v4131 = vadd.f32 %v4099, %v4114
    %v4132 = vadd.f32 %v4100, %v4119
    %v4133 = vadd.f32 %v4101, %v4119
    %v4134 = vadd.f32 %v4102, %v4119
    %v4135 = vadd.f32 %v4103, %v4124
    %v4136 = vadd.f32 %v4104, %v4124
    %v4137 = vadd.f32 %v4105, %v4124
    %vm4138 = vcmp.gt.f32.partialorder %v4126, 0.0
    %vm4139 = vcmp.gt.f32.partialorder %v4127, 0.0
    %vm4140 = vcmp.gt.f32.partialorder %v4128, 0.0
    %vm4141 = vcmp.gt.f32.partialorder %v4129, 0.0
    %vm4142 = vcmp.gt.f32.partialorder %v4130, 0.0
    %vm4143 = vcmp.gt.f32.partialorder %v4131, 0.0
    %vm4144 = vcmp.gt.f32.partialorder %v4132, 0.0
    %vm4145 = vcmp.gt.f32.partialorder %v4133, 0.0
    %vm4146 = vcmp.gt.f32.partialorder %v4134, 0.0
    %vm4147 = vcmp.gt.f32.partialorder %v4135, 0.0
    %vm4148 = vcmp.gt.f32.partialorder %v4136, 0.0
    %vm4149 = vcmp.gt.f32.partialorder %v4137, 0.0
    %v4150 = vmin.f32 %v4126, 0.0
    %v4151 = vmin.f32 %v4127, 0.0
    %v4152 = vmin.f32 %v4128, 0.0
    %v4153 = vmin.f32 %v4129, 0.0
    %v4154 = vmin.f32 %v4130, 0.0
    %v4155 = vmin.f32 %v4131, 0.0
    %v4156 = vmin.f32 %v4132, 0.0
    %v4157 = vmin.f32 %v4133, 0.0
    %v4158 = vmin.f32 %v4134, 0.0
    %v4159 = vmin.f32 %v4135, 0.0
    %v4160 = vmin.f32 %v4136, 0.0
    %v4161 = vmin.f32 %v4137, 0.0
    %v4162 = vmul.f32 %v4150, 1.442695
    %v4163 = vpow.pop %v4162
    %v4164 = vmul.f32 %v4151, 1.442695
    %v4165 = vpow.pop %v4164
    %v4166 = vmul.f32 %v4152, 1.442695
    %v4167 = vpow.pop %v4166
    %v4168 = vmul.f32 %v4153, 1.442695
    %v4169 = vpow.pop %v4168
    %v4170 = vmul.f32 %v4154, 1.442695
    %v4171 = vpow.pop %v4170
    %v4172 = vmul.f32 %v4155, 1.442695
    %v4173 = vpow.pop %v4172
    %v4174 = vmul.f32 %v4156, 1.442695
    %v4175 = vpow.pop %v4174
    %v4176 = vmul.f32 %v4157, 1.442695
    %v4177 = vpow.pop %v4176
    %v4178 = vmul.f32 %v4158, 1.442695
    %v4179 = vpow.pop %v4178
    %v4180 = vmul.f32 %v4159, 1.442695
    %v4181 = vpow.pop %v4180
    %v4182 = vmul.f32 %v4160, 1.442695
    %v4183 = vpow.pop %v4182
    %v4184 = vmul.f32 %v4161, 1.442695
    %v4185 = vpow.pop %v4184
    %v4186 = vsub.f32 %v4163, 1.0
    %v4187 = vsub.f32 %v4165, 1.0
    %v4188 = vsub.f32 %v4167, 1.0
    %v4189 = vsub.f32 %v4169, 1.0
    %v4190 = vsub.f32 %v4171, 1.0
    %v4191 = vsub.f32 %v4173, 1.0
    %v4192 = vsub.f32 %v4175, 1.0
    %v4193 = vsub.f32 %v4177, 1.0
    %v4194 = vsub.f32 %v4179, 1.0
    %v4195 = vsub.f32 %v4181, 1.0
    %v4196 = vsub.f32 %v4183, 1.0
    %v4197 = vsub.f32 %v4185, 1.0
    %v4198 = vsel %vm4138, %v4126, %v4186
    %v4199 = vsel %vm4139, %v4127, %v4187
    %v4200 = vsel %vm4140, %v4128, %v4188
    %v4201 = vsel %vm4141, %v4129, %v4189
    %v4202 = vsel %vm4142, %v4130, %v4190
    %v4203 = vsel %vm4143, %v4131, %v4191
    %v4204 = vsel %vm4144, %v4132, %v4192
    %v4205 = vsel %vm4145, %v4133, %v4193
    %v4206 = vsel %vm4146, %v4134, %v4194
    %v4207 = vsel %vm4147, %v4135, %v4195
    %v4208 = vsel %vm4148, %v4136, %v4196
    %v4209 = vsel %vm4149, %v4137, %v4197
    %v4210 = vpack.c.bf16 %v4201, %v4198
    %v4211 = vpack.c.bf16 %v4202, %v4199
    %v4212 = vpack.c.bf16 %v4203, %v4200
    %v4213 = vpack.c.bf16 %v4207, %v4204
    %v4214 = vpack.c.bf16 %v4208, %v4205
    %v4215 = vpack.c.bf16 %v4209, %v4206
    %s4216 = scalar_lea.vmem %s3, 96
    %v4217 = vld [vmem:[%s4216] sm:$0xff]
    %v4218 = vld [vmem:[%s4216 + $0x8] sm:$0xff]
    %v4219 = vld [vmem:[%s4216 + $0x10] sm:$0xff]
    %v4220 = vld [vmem:[%s4216 + $0x18] sm:$0xff]
    %s4221 = scalar_lea.vmem %s2, 96
    %v4222 = vld [vmem:[%s4221] sm:$0xf]
    %v4223 = vld [vmem:[%s4221 + $0x4] sm:$0xf]
    %v4224 = vld [vmem:[%s4221 + $0x8] sm:$0xf]
    %v4225 = vld [vmem:[%s4221 + $0xc] sm:$0xf]
    %s4226 = scalar_lea.vmem %s2, 112
    %v4227 = vld [vmem:[%s4226] sm:$0xf]
    %v4228 = vld [vmem:[%s4226 + $0x4] sm:$0xf]
    %v4229 = vld [vmem:[%s4226 + $0x8] sm:$0xf]
    %v4230 = vld [vmem:[%s4226 + $0xc] sm:$0xf]
    %v4235 = vunpack.c.l.b16 %v4227
    %v4236 = vunpack.c.l.b16 %v4228
    %v4237 = vunpack.c.l.b16 %v4229
    %v4238 = vunpack.c.l.b16 %v4230
    %v4239 = vpack.c.b16 %v4236, %v4235
    %v4240 = vpack.c.b16 %v4238, %v4237
    %v4242 = vsel %vm2024, %v4239, 0
    %v4245 = vsel %vm2024, %v4240, 0
    %4247 = vmatprep.subr.bf16.mxu0 0
    %4248 = vmatpush1.bf16.msra.mxu0 0
    %4249 = vmatprep.subr.bf16.mxu0 0
    %4250 = vmatpush1.bf16.msra.mxu0 0
    %4251 = vmatprep.subr.bf16.mxu0 0
    %4252 = vmatpush1.bf16.msra.mxu0 0
    %4253 = vmatprep.subr.bf16.mxu0 0
    %4254 = vmatpush1.bf16.msra.mxu0 0
    %4255 = vmatprep.subr.bf16.mxu0 0
    %4256 = vmatpush1.bf16.msra.mxu0 0
    %4257 = vmatprep.subr.bf16.mxu0 0
    %4258 = vmatpush1.bf16.msra.mxu0 0
    %4259 = vmatprep.subr.bf16.mxu0 0
    %4260 = vmatpush1.bf16.msra.mxu0 %v4214
    %4261 = vmatprep.subr.bf16.mxu0 0
    %4262 = vmatpush1.bf16.msra.mxu0 %v4211
    %4263 = vmatprep.subr.bf16.mxu0 0
    %4264 = vmatpush2.bf16.msra.mxu0 0
    %4265 = vmatprep.subr.bf16.mxu0 0
    %4266 = vmatpush2.bf16.msra.mxu0 0
    %4267 = vmatprep.subr.bf16.mxu0 0
    %4268 = vmatpush2.bf16.msra.mxu0 0
    %4269 = vmatprep.subr.bf16.mxu0 0
    %4270 = vmatpush2.bf16.msra.mxu0 0
    %4271 = vmatprep.subr.bf16.mxu0 0
    %4272 = vmatpush2.bf16.msra.mxu0 0
    %4273 = vmatprep.subr.bf16.mxu0 0
    %4274 = vmatpush2.bf16.msra.mxu0 0
    %4275 = vmatprep.subr.bf16.mxu0 0
    %4276 = vmatpush2.bf16.msra.mxu0 0
    %4277 = vmatprep.subr.bf16.mxu0 0
    %4278 = vmatpush2.bf16.msra.mxu0 0
    %4279 = vmatprep.mubr.bf16.mxu0 0
    %4280 = vmatmul.mubr.bf16.gmra.mxu0 %v4242
    %v4281 = vpop.f32.mrf.mxu0
    %v4282 = vadd.f32 0.0, %v4281
    %v4283 = vpop.f32.mrf.mxu0
    %v4284 = vpop.f32.mrf.mxu0
    %v4285 = vadd.f32 0.0, %v4284
    %v4286 = vpop.f32.mrf.mxu0
    %4287 = vmatprep.mubr.bf16.mxu0 0
    %4288 = vmatmul.mubr.bf16.gmra.mxu0 %v4245
    %v4289 = vpop.f32.mrf.mxu0
    %v4290 = vadd.f32 0.0, %v4289
    %v4291 = vpop.f32.mrf.mxu0
    %v4292 = vpop.f32.mrf.mxu0
    %v4293 = vadd.f32 0.0, %v4292
    %v4294 = vpop.f32.mrf.mxu0
    %4295 = vdwg.mxu0
    %v4300 = vunpack.c.l.b16 %v4222
    %v4301 = vunpack.c.l.b16 %v4223
    %v4302 = vunpack.c.l.b16 %v4224
    %v4303 = vunpack.c.l.b16 %v4225
    %v4304 = vpack.c.b16 %v4301, %v4300
    %v4305 = vpack.c.b16 %v4303, %v4302
    %v4307 = vsel %vm2024, %v4304, 0
    %v4310 = vsel %vm2024, %v4305, 0
    %4312 = vmatprep.subr.bf16.mxu0 0
    %4313 = vmatpush1.bf16.msra.mxu0 0
    %4314 = vmatprep.subr.bf16.mxu0 0
    %4315 = vmatpush1.bf16.msra.mxu0 0
    %4316 = vmatprep.subr.bf16.mxu0 0
    %4317 = vmatpush1.bf16.msra.mxu0 0
    %4318 = vmatprep.subr.bf16.mxu0 0
    %4319 = vmatpush1.bf16.msra.mxu0 0
    %4320 = vmatprep.subr.bf16.mxu0 0
    %4321 = vmatpush1.bf16.msra.mxu0 0
    %4322 = vmatprep.subr.bf16.mxu0 0
    %4323 = vmatpush1.bf16.msra.mxu0 0
    %4324 = vmatprep.subr.bf16.mxu0 0
    %4325 = vmatpush1.bf16.msra.mxu0 %v4213
    %4326 = vmatprep.subr.bf16.mxu0 0
    %4327 = vmatpush1.bf16.msra.mxu0 %v4210
    %4328 = vmatprep.subr.bf16.mxu0 0
    %4329 = vmatpush2.bf16.msra.mxu0 0
    %4330 = vmatprep.subr.bf16.mxu0 0
    %4331 = vmatpush2.bf16.msra.mxu0 0
    %4332 = vmatprep.subr.bf16.mxu0 0
    %4333 = vmatpush2.bf16.msra.mxu0 0
    %4334 = vmatprep.subr.bf16.mxu0 0
    %4335 = vmatpush2.bf16.msra.mxu0 0
    %4336 = vmatprep.subr.bf16.mxu0 0
    %4337 = vmatpush2.bf16.msra.mxu0 0
    %4338 = vmatprep.subr.bf16.mxu0 0
    %4339 = vmatpush2.bf16.msra.mxu0 0
    %4340 = vmatprep.subr.bf16.mxu0 0
    %4341 = vmatpush2.bf16.msra.mxu0 0
    %4342 = vmatprep.subr.bf16.mxu0 0
    %4343 = vmatpush2.bf16.msra.mxu0 0
    %4344 = vmatprep.mubr.bf16.mxu0 0
    %4345 = vmatmul.mubr.bf16.gmra.mxu0 %v4307
    %v4346 = vpop.f32.mrf.mxu0
    %v4347 = vadd.f32 %v4282, %v4346
    %v4348 = vpop.f32.mrf.mxu0
    %v4349 = vpop.f32.mrf.mxu0
    %v4350 = vadd.f32 %v4285, %v4349
    %v4351 = vpop.f32.mrf.mxu0
    %4352 = vmatprep.mubr.bf16.mxu0 0
    %4353 = vmatmul.mubr.bf16.gmra.mxu0 %v4310
    %v4354 = vpop.f32.mrf.mxu0
    %v4355 = vadd.f32 %v4290, %v4354
    %v4356 = vpop.f32.mrf.mxu0
    %v4357 = vpop.f32.mrf.mxu0
    %v4358 = vadd.f32 %v4293, %v4357
    %v4359 = vpop.f32.mrf.mxu0
    %4360 = vdwg.mxu0
    %s4361 = scalar_lea.vmem %s2, 128
    %v4362 = vld [vmem:[%s4361] sm:$0xf]
    %v4363 = vld [vmem:[%s4361 + $0x4] sm:$0xf]
    %v4364 = vld [vmem:[%s4361 + $0x8] sm:$0xf]
    %v4365 = vld [vmem:[%s4361 + $0xc] sm:$0xf]
    %v4370 = vunpack.c.l.b16 %v4362
    %v4371 = vunpack.c.l.b16 %v4363
    %v4372 = vunpack.c.l.b16 %v4364
    %v4373 = vunpack.c.l.b16 %v4365
    %v4374 = vpack.c.b16 %v4371, %v4370
    %v4375 = vpack.c.b16 %v4373, %v4372
    %v4377 = vsel %vm2024, %v4374, 0
    %v4380 = vsel %vm2024, %v4375, 0
    %4382 = vmatprep.subr.bf16.mxu0 0
    %4383 = vmatpush1.bf16.msra.mxu0 0
    %4384 = vmatprep.subr.bf16.mxu0 0
    %4385 = vmatpush1.bf16.msra.mxu0 0
    %4386 = vmatprep.subr.bf16.mxu0 0
    %4387 = vmatpush1.bf16.msra.mxu0 0
    %4388 = vmatprep.subr.bf16.mxu0 0
    %4389 = vmatpush1.bf16.msra.mxu0 0
    %4390 = vmatprep.subr.bf16.mxu0 0
    %4391 = vmatpush1.bf16.msra.mxu0 0
    %4392 = vmatprep.subr.bf16.mxu0 0
    %4393 = vmatpush1.bf16.msra.mxu0 0
    %4394 = vmatprep.subr.bf16.mxu0 0
    %4395 = vmatpush1.bf16.msra.mxu0 %v4215
    %4396 = vmatprep.subr.bf16.mxu0 0
    %4397 = vmatpush1.bf16.msra.mxu0 %v4212
    %4398 = vmatprep.subr.bf16.mxu0 0
    %4399 = vmatpush2.bf16.msra.mxu0 0
    %4400 = vmatprep.subr.bf16.mxu0 0
    %4401 = vmatpush2.bf16.msra.mxu0 0
    %4402 = vmatprep.subr.bf16.mxu0 0
    %4403 = vmatpush2.bf16.msra.mxu0 0
    %4404 = vmatprep.subr.bf16.mxu0 0
    %4405 = vmatpush2.bf16.msra.mxu0 0
    %4406 = vmatprep.subr.bf16.mxu0 0
    %4407 = vmatpush2.bf16.msra.mxu0 0
    %4408 = vmatprep.subr.bf16.mxu0 0
    %4409 = vmatpush2.bf16.msra.mxu0 0
    %4410 = vmatprep.subr.bf16.mxu0 0
    %4411 = vmatpush2.bf16.msra.mxu0 0
    %4412 = vmatprep.subr.bf16.mxu0 0
    %4413 = vmatpush2.bf16.msra.mxu0 0
    %4414 = vmatprep.mubr.bf16.mxu0 0
    %4415 = vmatmul.mubr.bf16.gmra.mxu0 %v4377
    %v4416 = vpop.f32.mrf.mxu0
    %v4417 = vadd.f32 0.0, %v4416
    %v4418 = vpop.f32.mrf.mxu0
    %v4419 = vpop.f32.mrf.mxu0
    %v4420 = vadd.f32 0.0, %v4419
    %v4421 = vpop.f32.mrf.mxu0
    %4422 = vmatprep.mubr.bf16.mxu0 0
    %4423 = vmatmul.mubr.bf16.gmra.mxu0 %v4380
    %v4424 = vpop.f32.mrf.mxu0
    %v4425 = vadd.f32 0.0, %v4424
    %v4426 = vpop.f32.mrf.mxu0
    %v4427 = vpop.f32.mrf.mxu0
    %v4428 = vadd.f32 0.0, %v4427
    %v4429 = vpop.f32.mrf.mxu0
    %4430 = vdwg.mxu0
    %v4431 = vadd.f32 %v4347, %v4417
    %v4432 = vadd.f32 %v4350, %v4420
    %v4433 = vadd.f32 %v4355, %v4425
    %v4434 = vadd.f32 %v4358, %v4428
    %4436 = vset.pattern.permute.xlu0 0
    %4437 = vperm.xlu0 %4436, %v4217
    %v4438 = vpop.permute.xlu0 %4437
    %4441 = vset.pattern.permute.xlu0 0
    %4442 = vperm.xlu0 %4441, %v4218
    %v4443 = vpop.permute.xlu0 %4442
    %4446 = vset.pattern.permute.xlu0 0
    %4447 = vperm.xlu0 %4446, %v4219
    %v4448 = vpop.permute.xlu0 %4447
    %4451 = vset.pattern.permute.xlu0 0
    %4452 = vperm.xlu0 %4451, %v4220
    %v4453 = vpop.permute.xlu0 %4452
    %v4455 = vadd.f32 %v4431, %v4438
    %v4456 = vadd.f32 %v4432, %v4443
    %v4457 = vadd.f32 %v4433, %v4448
    %v4458 = vadd.f32 %v4434, %v4453
    %vm4459 = vcmp.gt.f32.partialorder %v4455, 0.0
    %vm4460 = vcmp.gt.f32.partialorder %v4456, 0.0
    %vm4461 = vcmp.gt.f32.partialorder %v4457, 0.0
    %vm4462 = vcmp.gt.f32.partialorder %v4458, 0.0
    %v4463 = vmin.f32 %v4455, 0.0
    %v4464 = vmin.f32 %v4456, 0.0
    %v4465 = vmin.f32 %v4457, 0.0
    %v4466 = vmin.f32 %v4458, 0.0
    %v4467 = vmul.f32 %v4463, 1.442695
    %v4468 = vpow.pop %v4467
    %v4469 = vmul.f32 %v4464, 1.442695
    %v4470 = vpow.pop %v4469
    %v4471 = vmul.f32 %v4465, 1.442695
    %v4472 = vpow.pop %v4471
    %v4473 = vmul.f32 %v4466, 1.442695
    %v4474 = vpow.pop %v4473
    %v4475 = vsub.f32 %v4468, 1.0
    %v4476 = vsub.f32 %v4470, 1.0
    %v4477 = vsub.f32 %v4472, 1.0
    %v4478 = vsub.f32 %v4474, 1.0
    %v4479 = vsel %vm4459, %v4455, %v4475
    %v4480 = vsel %vm4460, %v4456, %v4476
    %v4481 = vsel %vm4461, %v4457, %v4477
    %v4482 = vsel %vm4462, %v4458, %v4478
    %v4483 = vld [vmem:[#allocation2] sm:$0xf]
    %v4484 = vld [vmem:[#allocation2 + $0x4] sm:$0xf]
    %v4485 = vpack.c.bf16 %v4480, %v4479
    %v4486 = vpack.c.bf16 %v4482, %v4481
    %v4487 = vld [vmem:[%s5] sm:$0xff]
    %v4488 = vld [vmem:[%s5 + $0x8] sm:$0xff]
    %4490 = vset.pattern.permute.xlu0 0
    %4491 = vperm.xlu0 %4490, %v4487
    %v4492 = vpop.permute.xlu0 %4491
    %4495 = vset.pattern.permute.xlu0 0
    %4496 = vperm.xlu0 %4495, %v4488
    %v4497 = vpop.permute.xlu0 %4496
    %v4501 = vunpack.c.l.b16 %v4483
    %v4502 = vunpack.c.l.b16 %v4484
    %v4503 = vpack.c.b16 %v4502, %v4501
    %v4505 = vsel %vm2024, %v4503, 0
    %4507 = vmatprep.subr.bf16.mxu0 0
    %4508 = vmatpush1.bf16.msra.mxu0 0
    %4509 = vmatprep.subr.bf16.mxu0 0
    %4510 = vmatpush1.bf16.msra.mxu0 0
    %4511 = vmatprep.subr.bf16.mxu0 0
    %4512 = vmatpush1.bf16.msra.mxu0 0
    %4513 = vmatprep.subr.bf16.mxu0 0
    %4514 = vmatpush1.bf16.msra.mxu0 0
    %4515 = vmatprep.subr.bf16.mxu0 0
    %4516 = vmatpush1.bf16.msra.mxu0 0
    %4517 = vmatprep.subr.bf16.mxu0 0
    %4518 = vmatpush1.bf16.msra.mxu0 0
    %4519 = vmatprep.subr.bf16.mxu0 0
    %4520 = vmatpush1.bf16.msra.mxu0 %v4486
    %4521 = vmatprep.subr.bf16.mxu0 0
    %4522 = vmatpush1.bf16.msra.mxu0 %v4485
    %4523 = vmatprep.subr.bf16.mxu0 0
    %4524 = vmatpush2.bf16.msra.mxu0 0
    %4525 = vmatprep.subr.bf16.mxu0 0
    %4526 = vmatpush2.bf16.msra.mxu0 0
    %4527 = vmatprep.subr.bf16.mxu0 0
    %4528 = vmatpush2.bf16.msra.mxu0 0
    %4529 = vmatprep.subr.bf16.mxu0 0
    %4530 = vmatpush2.bf16.msra.mxu0 0
    %4531 = vmatprep.subr.bf16.mxu0 0
    %4532 = vmatpush2.bf16.msra.mxu0 0
    %4533 = vmatprep.subr.bf16.mxu0 0
    %4534 = vmatpush2.bf16.msra.mxu0 0
    %4535 = vmatprep.subr.bf16.mxu0 0
    %4536 = vmatpush2.bf16.msra.mxu0 0
    %4537 = vmatprep.subr.bf16.mxu0 0
    %4538 = vmatpush2.bf16.msra.mxu0 0
    %4539 = vmatprep.mubr.bf16.mxu0 0
    %4540 = vmatmul.mubr.bf16.gmra.mxu0 %v4505
    %v4541 = vpop.f32.mrf.mxu0
    %v4542 = vadd.f32 %v4492, %v4541
    %v4543 = vpop.f32.mrf.mxu0
    %v4544 = vpop.f32.mrf.mxu0
    %v4545 = vadd.f32 %v4497, %v4544
    %v4546 = vpop.f32.mrf.mxu0
    %4547 = vdwg.mxu0
    %4548 = vst [vmem:[#allocation5] sm:$0xff] %v4542
    %4549 = vst [vmem:[#allocation5 + $0x8] sm:$0xff] %v4545
    // Predicated region
    $region30: #{tpu_custom_call.1} parent=1 // pred_check
      _
    $region31: #{tpu_custom_call.1} parent=1 // pred_check_branch
      %4551 = sbr.rel (0) target = $region33
    $region32: #{tpu_custom_call.1} parent=1 // pred_region
      %s4553 = ssub.s32 256, 256
      %4554 = vsyncadd [#allocation4], %s4553
      %s4555 = sshll.u32 [#allocation5], 4
      %s4556 = int_to_ptr.vmem [resolvable:$true] %s4555
      %4561 = dma.vmem_to_hbm [thread:$0]  %s4556, 256, %s6, [#allocation4], 128, 128, 8
    $region33: #{tpu_custom_call.1} parent=1 // pred_fallthru
      _
    // Predicated region
    $region34: #{tpu_custom_call.1} parent=1 // pred_check
      _
    $region35: #{tpu_custom_call.1} parent=1 // pred_check_branch
      %4563 = sbr.rel (0) target = $region37
    $region36: #{tpu_custom_call.1} parent=1 // pred_region
      %4564 = dma.done [#allocation4], 256
    $region37: #{tpu_custom_call.1} parent=1 // pred_fallthru
      _
    %4565 = vsyncpa [#allocation3], 1
    %4566 = vsyncpa [#allocation4], 1

</llo_original>
